<compile_context>
chip_gen: v5e
topology: v5e:2x2
jax: 0.10.0
libtpu: 0.0.40
codegen_flags: <defaults>
</compile_context>

<pallas_src>
import functools

import jax
import jax.numpy as jnp
from jax.experimental import pallas as pl
from jax.experimental.pallas import tpu as pltpu

# Explicit scoped-VMEM budget: v5e defaults to 16 MiB, v6e/v7x to 32 MiB;
# 32 MiB is safe on every generation (v7x physical VMEM is 64 MiB).
_VMEM_LIMIT = 32 * 1024 * 1024


def _row_tile(h):
    """Largest multiple-of-8 divisor of h (<=32) for row-block tiling."""
    for t in (32, 24, 16, 8):
        if h % t == 0:
            return t
    return h  # full height: block dim == array dim is always legal


# -----------------------------------------------------------------------------
# bilinear_sampler_1d_h : horizontal bilinear warp (border -> zero-padded +1).
# -----------------------------------------------------------------------------
def _sampler_kernel(src_ref, disp_ref, out_ref):
    # src_ref : (C, 1, Hp, Wp)  padded, channel-shuffled source slab for this
    #                           batch element (faithful to the reference's
    #                           `padded.view(num_channels, -1)` gather).
    # disp_ref: (1, th, W)      horizontal pixel offsets for this row block.
    # out_ref : (1, C, th, W)
    rb = pl.program_id(1)
    C = src_ref.shape[0]
    Wp = src_ref.shape[3]
    th = disp_ref.shape[1]
    W = disp_ref.shape[2]

    d = disp_ref[0]                                              # (th, W)
    cols = jax.lax.broadcasted_iota(jnp.int32, (th, W), 1).astype(jnp.float32)
    x = jnp.clip(cols + 1.0 + d, 0.0, float(W + 1))
    x0 = jnp.floor(x)
    x1 = jnp.minimum(x0 + 1.0, float(W + 1))
    w_l = (x1 - x)[:, :, None]
    w_r = (x - x0)[:, :, None]
    x0 = x0[:, :, None]
    x1 = x1[:, :, None]

    # Source rows y0 = global_row + edge_size(=1) for this row block.
    rows = src_ref[:, 0, pl.ds(rb * th + 1, th), :]              # (C, th, Wp)

    # One-hot contraction over the padded width, chunked in <=128-lane pieces
    # so VMEM stays bounded at large W.  Selection weights are built once per
    # chunk and reused for every channel.
    acc = [jnp.zeros((th, W), jnp.float32) for _ in range(C)]
    for k0 in range(0, Wp, 128):
        kc = min(128, Wp - k0)
        k = (jax.lax.broadcasted_iota(jnp.int32, (th, W, kc), 2) + k0
             ).astype(jnp.float32)
        sel = (w_l * (k == x0).astype(jnp.float32)
               + w_r * (k == x1).astype(jnp.float32))            # (th, W, kc)
        for c in range(C):
            rc = rows[c, :, k0:k0 + kc]                          # (th, kc)
            acc[c] = acc[c] + jnp.sum(sel * rc[:, None, :], axis=-1)

    for c in range(C):
        out_ref[0, c] = acc[c]


def bilinear_sampler_1d_h(input_images, x_offset):
    """Horizontal bilinear warp, border mode, faithful to the reference
    (including its channel-shuffled flat gather semantics)."""
    N, C, H, W = input_images.shape
    Hp, Wp = H + 2, W + 2
    th = _row_tile(H)

    padded = jnp.pad(input_images.astype(jnp.float32),
                     ((0, 0), (0, 0), (1, 1), (1, 1)))
    # Pure row-major reshape (bitcast, no HBM copy): block [c, n] of this view
    # is flat block c*N + n of `padded`, which is exactly what the reference's
    # flat gather reads for output (n, c).
    src = padded.reshape(C, N, Hp, Wp)
    disp = x_offset[:, 0].astype(jnp.float32)                    # (N, H, W)

    out = pl.pallas_call(
        _sampler_kernel,
        out_shape=jax.ShapeDtypeStruct((N, C, H, W), jnp.float32),
        grid=(N, H // th),
        in_specs=[
            pl.BlockSpec((C, 1, Hp, Wp), lambda n, rb: (0, n, 0, 0)),
            pl.BlockSpec((1, th, W), lambda n, rb: (n, rb, 0)),
        ],
        out_specs=pl.BlockSpec((1, C, th, W), lambda n, rb: (n, 0, rb, 0)),
        compiler_params=pltpu.CompilerParams(
            dimension_semantics=("parallel", "parallel"),
            vmem_limit_bytes=_VMEM_LIMIT),
    )(src, disp)
    return out


# -----------------------------------------------------------------------------
# Fused per-side reduction: SAD + SSIM + disparity smoothness + LR consistency.
# -----------------------------------------------------------------------------
def _fused_terms_kernel(img_ref, est_ref, disp_ref, wdisp_ref, out_ref, *,
                        counts):
    # img_ref/est_ref : (1, C, H, W)  original and warped RGB images
    # disp_ref        : (1, H, W)     this side's disparity
    # wdisp_ref       : (1, H, W)     other side's disparity warped to here
    # out_ref         : (1, 4) SMEM   running [SAD, SSIM, smooth, LR] sums,
    #                                 normalized to means on the last step.
    n = pl.program_id(0)

    @pl.when(n == 0)
    def _():
        out_ref[0, 0] = 0.0
        out_ref[0, 1] = 0.0
        out_ref[0, 2] = 0.0
        out_ref[0, 3] = 0.0

    img = img_ref[0]                                             # (C, H, W)
    est = est_ref[0]
    d = disp_ref[0]                                              # (H, W)
    wd = wdisp_ref[0]
    H, W = d.shape

    sad_sum = jnp.sum(jnp.abs(img - est))
    lr_sum = jnp.sum(jnp.abs(wd - d))

    # Grayscale with the reference's channel convention (0.114 on channel 0,
    # 0.299 on channel 2) -- kept verbatim.
    gray_x = 0.114 * img[0] + 0.587 * img[1] + 0.299 * img[2]
    gray_y = 0.114 * est[0] + 0.587 * est[1] + 0.299 * est[2]

    def box3(z):
        # Valid 3x3 box sum, separable (6 shifted slices instead of 9).
        h, w = z.shape
        t = z[:, 0:w - 2] + z[:, 1:w - 1] + z[:, 2:w]
        return t[0:h - 2, :] + t[1:h - 1, :] + t[2:h, :]

    # ---- SSIM (window 3, stride 1, valid) -> clamp(1 - SSIM, 0, 2) ----
    inv9 = 1.0 / 9.0
    mu_x = box3(gray_x) * inv9                                   # (H-2, W-2)
    mu_y = box3(gray_y) * inv9
    xc = gray_x[1:H - 1, 1:W - 1]
    yc = gray_y[1:H - 1, 1:W - 1]
    dx = xc - mu_x
    dy = yc - mu_y
    sigma_x = box3(dx * dx) * inv9                               # (H-4, W-4)
    sigma_y = box3(dy * dy) * inv9
    sigma_xy = box3(dx * dy) * inv9
    mu_xc = mu_x[1:-1, 1:-1]
    mu_yc = mu_y[1:-1, 1:-1]
    c1 = 0.01 ** 2
    c2 = 0.03 ** 2
    ssim_n = (2.0 * mu_xc * mu_yc + c1) * (2.0 * sigma_xy + c2)
    ssim_d = (mu_xc * mu_xc + mu_yc * mu_yc + c1) * (sigma_x + sigma_y + c2)
    ssim_map = jnp.clip(1.0 - ssim_n * pl.reciprocal(ssim_d, approx=True),
                        0.0, 2.0)
    ssim_sum = jnp.sum(ssim_map)

    # ---- Disparity smoothness: valid 3x3 Laplacian == box_sum - 9*center ----
    def lap(z):
        h, w = z.shape
        return box3(z) - 9.0 * z[1:h - 1, 1:w - 1]

    disp_lap = jnp.abs(lap(d))
    img_lap = jnp.abs(lap(gray_x))
    smooth_sum = jnp.sum(jnp.exp(-img_lap) * disp_lap)

    out_ref[0, 0] += sad_sum
    out_ref[0, 1] += ssim_sum
    out_ref[0, 2] += smooth_sum
    out_ref[0, 3] += lr_sum

    @pl.when(n == pl.num_programs(0) - 1)
    def _():
        out_ref[0, 0] = out_ref[0, 0] * (1.0 / counts[0])
        out_ref[0, 1] = out_ref[0, 1] * (1.0 / counts[1])
        out_ref[0, 2] = out_ref[0, 2] * (1.0 / counts[2])
        out_ref[0, 3] = out_ref[0, 3] * (1.0 / counts[3])


def _fused_terms(img, est, disp, wdisp):
    N, C, H, W = img.shape
    counts = (float(N * C * H * W),            # SAD mean
              float(N * (H - 4) * (W - 4)),    # SSIM mean (two valid windows)
              float(N * (H - 2) * (W - 2)),    # smoothness mean
              float(N * H * W))                # LR-consistency mean
    kernel = functools.partial(_fused_terms_kernel, counts=counts)
    out = pl.pallas_call(
        kernel,
        out_shape=jax.ShapeDtypeStruct((1, 4), jnp.float32),
        grid=(N,),
        in_specs=[
            pl.BlockSpec((1, C, H, W), lambda n: (n, 0, 0, 0)),
            pl.BlockSpec((1, C, H, W), lambda n: (n, 0, 0, 0)),
            pl.BlockSpec((1, H, W), lambda n: (n, 0, 0)),
            pl.BlockSpec((1, H, W), lambda n: (n, 0, 0)),
        ],
        out_specs=pl.BlockSpec((1, 4), lambda n: (0, 0),
                               memory_space=pltpu.MemorySpace.SMEM),
        compiler_params=pltpu.CompilerParams(
            dimension_semantics=("arbitrary",),
            vmem_limit_bytes=_VMEM_LIMIT),
    )(img.astype(jnp.float32), est.astype(jnp.float32),
      disp.astype(jnp.float32), wdisp.astype(jnp.float32))
    return out[0, 0], out[0, 1], out[0, 2], out[0, 3]


# -----------------------------------------------------------------------------
# LRLoss.forward
# -----------------------------------------------------------------------------
def lr_loss(disp_left, disp_right, left, right):
    # Warps (4 pallas_calls).
    est_right = bilinear_sampler_1d_h(left, disp_right)
    est_left = bilinear_sampler_1d_h(right, -1.0 * disp_left)
    l_to_r = bilinear_sampler_1d_h(disp_left, disp_right)
    r_to_l = bilinear_sampler_1d_h(disp_right, -1.0 * disp_left)

    # One fused reduction kernel per side (2 pallas_calls).
    sad_l, ssim_l, smooth_l, lr_l = _fused_terms(
        left, est_left, disp_left[:, 0], r_to_l[:, 0])
    sad_r, ssim_r, smooth_r, lr_r = _fused_terms(
        right, est_right, disp_right[:, 0], l_to_r[:, 0])

    alpha = 0.85
    rec_loss = (alpha * ssim_l + (1.0 - alpha) * sad_l
                + alpha * ssim_r + (1.0 - alpha) * sad_r)
    disp_smooth_loss = smooth_l + smooth_r
    lr = lr_l + lr_r
    return 1.0 * rec_loss, 0.1 * disp_smooth_loss, 0.1 * lr


if __name__ == "__main__":
    key = jax.random.PRNGKey(0)
    k1, k2, k3, k4 = jax.random.split(key, 4)
    N, C, H, W = 2, 3, 16, 16
    left = jax.random.uniform(k1, (N, C, H, W), jnp.float32)
    right = jax.random.uniform(k2, (N, C, H, W), jnp.float32)
    disp_left = jax.random.uniform(k3, (N, 1, H, W), jnp.float32) * 3.0
    disp_right = jax.random.uniform(k4, (N, 1, H, W), jnp.float32) * 3.0

    rec, smooth, lr = jax.jit(lr_loss)(disp_left, disp_right, left, right)
    jax.block_until_ready((rec, smooth, lr))
    print("KERNEL_OK")
</pallas_src>

<mosaic_0001>
module attributes {stable_mosaic.version = 11 : i64} {
  func.func @_sampler_kernel(%arg0: i32, %arg1: i32, %arg2: memref<3x1x18x18xf32, #tpu.memory_space<vmem>>, %arg3: memref<1x16x16xf32, #tpu.memory_space<vmem>>, %arg4: memref<1x3x16x16xf32, #tpu.memory_space<vmem>>) attributes {dimension_semantics = [#tpu.dimension_semantics<parallel>, #tpu.dimension_semantics<parallel>], iteration_bounds = array<i64: 2, 1>, scalar_prefetch = 0 : i64, scratch_operands = 0 : i64, tpu.core_type = #tpu.core_type<tc>, window_params = [{transform_indices = @transform_0, window_bounds = array<i64: 3, 1, 18, 18>}, {transform_indices = @transform_1, window_bounds = array<i64: 1, 16, 16>}, {transform_indices = @transform_2, window_bounds = array<i64: 1, 3, 16, 16>}]} {
    %c0 = arith.constant 0 : index
    %c0_0 = arith.constant 0 : index
    %c0_1 = arith.constant 0 : index
    %0 = vector.load %arg3[%c0, %c0_0, %c0_1] : memref<1x16x16xf32, #tpu.memory_space<vmem>>, vector<1x16x16xf32>
    %1 = vector.shape_cast %0 : vector<1x16x16xf32> to vector<16x16xf32>
    %2 = tpu.iota {dimensions = array<i32: 1>} : vector<16x16xi32>
    %3 = arith.sitofp %2 : vector<16x16xi32> to vector<16x16xf32>
    %cst = arith.constant 1.000000e+00 : f32
    %4 = vector.broadcast %cst : f32 to vector<16x16xf32>
    %5 = arith.addf %3, %4 : vector<16x16xf32>
    %6 = arith.addf %5, %1 : vector<16x16xf32>
    %cst_2 = arith.constant 0.000000e+00 : f32
    %cst_3 = arith.constant 1.700000e+01 : f32
    %7 = vector.broadcast %cst_2 : f32 to vector<16x16xf32>
    %8 = arith.maximumf %7, %6 : vector<16x16xf32>
    %9 = vector.broadcast %cst_3 : f32 to vector<16x16xf32>
    %10 = arith.minimumf %9, %8 : vector<16x16xf32>
    %11 = math.floor %10 : vector<16x16xf32>
    %cst_4 = arith.constant 1.000000e+00 : f32
    %12 = vector.broadcast %cst_4 : f32 to vector<16x16xf32>
    %13 = arith.addf %11, %12 : vector<16x16xf32>
    %cst_5 = arith.constant 1.700000e+01 : f32
    %14 = vector.broadcast %cst_5 : f32 to vector<16x16xf32>
    %15 = arith.minimumf %13, %14 : vector<16x16xf32>
    %16 = arith.subf %15, %10 : vector<16x16xf32>
    %17 = vector.shape_cast %16 : vector<16x16xf32> to vector<16x16x1xf32>
    %18 = arith.subf %10, %11 : vector<16x16xf32>
    %19 = vector.shape_cast %18 : vector<16x16xf32> to vector<16x16x1xf32>
    %20 = vector.shape_cast %11 : vector<16x16xf32> to vector<16x16x1xf32>
    %21 = vector.shape_cast %15 : vector<16x16xf32> to vector<16x16x1xf32>
    %c16_i32 = arith.constant 16 : i32
    %22 = arith.muli %arg1, %c16_i32 : i32
    %c1_i32 = arith.constant 1 : i32
    %23 = arith.addi %22, %c1_i32 : i32
    %c0_6 = arith.constant 0 : index
    %c0_7 = arith.constant 0 : index
    %24 = arith.index_cast %23 : i32 to index
    %c0_8 = arith.constant 0 : index
    %25 = vector.load %arg2[%c0_6, %c0_7, %24, %c0_8] : memref<3x1x18x18xf32, #tpu.memory_space<vmem>>, vector<3x1x16x18xf32>
    %26 = vector.shape_cast %25 : vector<3x1x16x18xf32> to vector<3x16x18xf32>
    %cst_9 = arith.constant 0.000000e+00 : f32
    %27 = vector.broadcast %cst_9 : f32 to vector<16x16xf32>
    %cst_10 = arith.constant 0.000000e+00 : f32
    %28 = vector.broadcast %cst_10 : f32 to vector<16x16xf32>
    %cst_11 = arith.constant 0.000000e+00 : f32
    %29 = vector.broadcast %cst_11 : f32 to vector<16x16xf32>
    %30 = tpu.iota {dimensions = array<i32: 2>} : vector<16x16x18xi32>
    %c0_i32 = arith.constant 0 : i32
    %31 = vector.broadcast %c0_i32 : i32 to vector<16x16x18xi32>
    %32 = arith.addi %30, %31 : vector<16x16x18xi32>
    %33 = arith.sitofp %32 : vector<16x16x18xi32> to vector<16x16x18xf32>
    %34 = vector.broadcast %20 : vector<16x16x1xf32> to vector<16x16x18xf32>
    %35 = arith.cmpf oeq, %33, %34 : vector<16x16x18xf32>
    %36 = arith.extui %35 : vector<16x16x18xi1> to vector<16x16x18xi32>
    %37 = arith.sitofp %36 : vector<16x16x18xi32> to vector<16x16x18xf32>
    %38 = vector.broadcast %17 : vector<16x16x1xf32> to vector<16x16x18xf32>
    %39 = arith.mulf %38, %37 : vector<16x16x18xf32>
    %40 = vector.broadcast %21 : vector<16x16x1xf32> to vector<16x16x18xf32>
    %41 = arith.cmpf oeq, %33, %40 : vector<16x16x18xf32>
    %42 = arith.extui %41 : vector<16x16x18xi1> to vector<16x16x18xi32>
    %43 = arith.sitofp %42 : vector<16x16x18xi32> to vector<16x16x18xf32>
    %44 = vector.broadcast %19 : vector<16x16x1xf32> to vector<16x16x18xf32>
    %45 = arith.mulf %44, %43 : vector<16x16x18xf32>
    %46 = arith.addf %39, %45 : vector<16x16x18xf32>
    %47 = vector.extract_strided_slice %26 {offsets = [0, 0, 0], sizes = [1, 16, 18], strides = [1, 1, 1]} : vector<3x16x18xf32> to vector<1x16x18xf32>
    %48 = vector.shape_cast %47 : vector<1x16x18xf32> to vector<16x18xf32>
    %49 = vector.shape_cast %48 : vector<16x18xf32> to vector<16x1x18xf32>
    %50 = vector.broadcast %49 : vector<16x1x18xf32> to vector<16x16x18xf32>
    %51 = arith.mulf %46, %50 : vector<16x16x18xf32>
    %cst_12 = arith.constant dense<0.000000e+00> : vector<16x16xf32>
    %52 = vector.multi_reduction <add>, %51, %cst_12 [2] : vector<16x16x18xf32> to vector<16x16xf32>
    %53 = arith.addf %27, %52 : vector<16x16xf32>
    %54 = vector.extract_strided_slice %26 {offsets = [1, 0, 0], sizes = [1, 16, 18], strides = [1, 1, 1]} : vector<3x16x18xf32> to vector<1x16x18xf32>
    %55 = vector.shape_cast %54 : vector<1x16x18xf32> to vector<16x18xf32>
    %56 = vector.shape_cast %55 : vector<16x18xf32> to vector<16x1x18xf32>
    %57 = vector.broadcast %56 : vector<16x1x18xf32> to vector<16x16x18xf32>
    %58 = arith.mulf %46, %57 : vector<16x16x18xf32>
    %cst_13 = arith.constant dense<0.000000e+00> : vector<16x16xf32>
    %59 = vector.multi_reduction <add>, %58, %cst_13 [2] : vector<16x16x18xf32> to vector<16x16xf32>
    %60 = arith.addf %28, %59 : vector<16x16xf32>
    %61 = vector.extract_strided_slice %26 {offsets = [2, 0, 0], sizes = [1, 16, 18], strides = [1, 1, 1]} : vector<3x16x18xf32> to vector<1x16x18xf32>
    %62 = vector.shape_cast %61 : vector<1x16x18xf32> to vector<16x18xf32>
    %63 = vector.shape_cast %62 : vector<16x18xf32> to vector<16x1x18xf32>
    %64 = vector.broadcast %63 : vector<16x1x18xf32> to vector<16x16x18xf32>
    %65 = arith.mulf %46, %64 : vector<16x16x18xf32>
    %cst_14 = arith.constant dense<0.000000e+00> : vector<16x16xf32>
    %66 = vector.multi_reduction <add>, %65, %cst_14 [2] : vector<16x16x18xf32> to vector<16x16xf32>
    %67 = arith.addf %29, %66 : vector<16x16xf32>
    %c0_15 = arith.constant 0 : index
    %c0_16 = arith.constant 0 : index
    %c0_17 = arith.constant 0 : index
    %c0_18 = arith.constant 0 : index
    %68 = vector.load %arg4[%c0_15, %c0_16, %c0_17, %c0_18] : memref<1x3x16x16xf32, #tpu.memory_space<vmem>>, vector<1x1x16x16xf32>
    %69 = vector.shape_cast %68 : vector<1x1x16x16xf32> to vector<16x16xf32>
    %70 = vector.shape_cast %53 : vector<16x16xf32> to vector<1x1x16x16xf32>
    tpu.vector_store %arg4[%c0_15, %c0_16, %c0_17, %c0_18], %70 {strides = array<i32>} : memref<1x3x16x16xf32, #tpu.memory_space<vmem>>, vector<1x1x16x16xf32>,
    %c0_19 = arith.constant 0 : index
    %c1 = arith.constant 1 : index
    %c0_20 = arith.constant 0 : index
    %c0_21 = arith.constant 0 : index
    %71 = vector.load %arg4[%c0_19, %c1, %c0_20, %c0_21] : memref<1x3x16x16xf32, #tpu.memory_space<vmem>>, vector<1x1x16x16xf32>
    %72 = vector.shape_cast %71 : vector<1x1x16x16xf32> to vector<16x16xf32>
    %73 = vector.shape_cast %60 : vector<16x16xf32> to vector<1x1x16x16xf32>
    tpu.vector_store %arg4[%c0_19, %c1, %c0_20, %c0_21], %73 {strides = array<i32>} : memref<1x3x16x16xf32, #tpu.memory_space<vmem>>, vector<1x1x16x16xf32>,
    %c0_22 = arith.constant 0 : index
    %c2 = arith.constant 2 : index
    %c0_23 = arith.constant 0 : index
    %c0_24 = arith.constant 0 : index
    %74 = vector.load %arg4[%c0_22, %c2, %c0_23, %c0_24] : memref<1x3x16x16xf32, #tpu.memory_space<vmem>>, vector<1x1x16x16xf32>
    %75 = vector.shape_cast %74 : vector<1x1x16x16xf32> to vector<16x16xf32>
    %76 = vector.shape_cast %67 : vector<16x16xf32> to vector<1x1x16x16xf32>
    tpu.vector_store %arg4[%c0_22, %c2, %c0_23, %c0_24], %76 {strides = array<i32>} : memref<1x3x16x16xf32, #tpu.memory_space<vmem>>, vector<1x1x16x16xf32>,
    return
  }
  func.func @transform_0(%arg0: i32, %arg1: i32) -> (i32, i32, i32, i32) {
    %c0_i32 = arith.constant 0 : i32
    %c0_i32_0 = arith.constant 0 : i32
    %c0_i32_1 = arith.constant 0 : i32
    %c0_i32_2 = arith.constant 0 : i32
    return %c0_i32, %arg0, %c0_i32_0, %c0_i32_1 : i32, i32, i32, i32
  }
  func.func @transform_1(%arg0: i32, %arg1: i32) -> (i32, i32, i32) {
    %c0_i32 = arith.constant 0 : i32
    %c0_i32_0 = arith.constant 0 : i32
    return %arg0, %arg1, %c0_i32 : i32, i32, i32
  }
  func.func @transform_2(%arg0: i32, %arg1: i32) -> (i32, i32, i32, i32) {
    %c0_i32 = arith.constant 0 : i32
    %c0_i32_0 = arith.constant 0 : i32
    %c0_i32_1 = arith.constant 0 : i32
    return %arg0, %c0_i32, %arg1, %c0_i32_0 : i32, i32, i32, i32
  }
}

module attributes {stable_mosaic.version = 11 : i64} {
  func.func @_sampler_kernel(%arg0: i32, %arg1: i32, %arg2: memref<1x1x18x18xf32, #tpu.memory_space<vmem>>, %arg3: memref<1x16x16xf32, #tpu.memory_space<vmem>>, %arg4: memref<1x1x16x16xf32, #tpu.memory_space<vmem>>) attributes {dimension_semantics = [#tpu.dimension_semantics<parallel>, #tpu.dimension_semantics<parallel>], iteration_bounds = array<i64: 2, 1>, scalar_prefetch = 0 : i64, scratch_operands = 0 : i64, tpu.core_type = #tpu.core_type<tc>, window_params = [{transform_indices = @transform_0, window_bounds = array<i64: 1, 1, 18, 18>}, {transform_indices = @transform_1, window_bounds = array<i64: 1, 16, 16>}, {transform_indices = @transform_2, window_bounds = array<i64: 1, 1, 16, 16>}]} {
    %c0 = arith.constant 0 : index
    %c0_0 = arith.constant 0 : index
    %c0_1 = arith.constant 0 : index
    %0 = vector.load %arg3[%c0, %c0_0, %c0_1] : memref<1x16x16xf32, #tpu.memory_space<vmem>>, vector<1x16x16xf32>
    %1 = vector.shape_cast %0 : vector<1x16x16xf32> to vector<16x16xf32>
    %2 = tpu.iota {dimensions = array<i32: 1>} : vector<16x16xi32>
    %3 = arith.sitofp %2 : vector<16x16xi32> to vector<16x16xf32>
    %cst = arith.constant 1.000000e+00 : f32
    %4 = vector.broadcast %cst : f32 to vector<16x16xf32>
    %5 = arith.addf %3, %4 : vector<16x16xf32>
    %6 = arith.addf %5, %1 : vector<16x16xf32>
    %cst_2 = arith.constant 0.000000e+00 : f32
    %cst_3 = arith.constant 1.700000e+01 : f32
    %7 = vector.broadcast %cst_2 : f32 to vector<16x16xf32>
    %8 = arith.maximumf %7, %6 : vector<16x16xf32>
    %9 = vector.broadcast %cst_3 : f32 to vector<16x16xf32>
    %10 = arith.minimumf %9, %8 : vector<16x16xf32>
    %11 = math.floor %10 : vector<16x16xf32>
    %cst_4 = arith.constant 1.000000e+00 : f32
    %12 = vector.broadcast %cst_4 : f32 to vector<16x16xf32>
    %13 = arith.addf %11, %12 : vector<16x16xf32>
    %cst_5 = arith.constant 1.700000e+01 : f32
    %14 = vector.broadcast %cst_5 : f32 to vector<16x16xf32>
    %15 = arith.minimumf %13, %14 : vector<16x16xf32>
    %16 = arith.subf %15, %10 : vector<16x16xf32>
    %17 = vector.shape_cast %16 : vector<16x16xf32> to vector<16x16x1xf32>
    %18 = arith.subf %10, %11 : vector<16x16xf32>
    %19 = vector.shape_cast %18 : vector<16x16xf32> to vector<16x16x1xf32>
    %20 = vector.shape_cast %11 : vector<16x16xf32> to vector<16x16x1xf32>
    %21 = vector.shape_cast %15 : vector<16x16xf32> to vector<16x16x1xf32>
    %c16_i32 = arith.constant 16 : i32
    %22 = arith.muli %arg1, %c16_i32 : i32
    %c1_i32 = arith.constant 1 : i32
    %23 = arith.addi %22, %c1_i32 : i32
    %c0_6 = arith.constant 0 : index
    %c0_7 = arith.constant 0 : index
    %24 = arith.index_cast %23 : i32 to index
    %c0_8 = arith.constant 0 : index
    %25 = vector.load %arg2[%c0_6, %c0_7, %24, %c0_8] : memref<1x1x18x18xf32, #tpu.memory_space<vmem>>, vector<1x1x16x18xf32>
    %26 = vector.shape_cast %25 : vector<1x1x16x18xf32> to vector<1x16x18xf32>
    %cst_9 = arith.constant 0.000000e+00 : f32
    %27 = vector.broadcast %cst_9 : f32 to vector<16x16xf32>
    %28 = tpu.iota {dimensions = array<i32: 2>} : vector<16x16x18xi32>
    %c0_i32 = arith.constant 0 : i32
    %29 = vector.broadcast %c0_i32 : i32 to vector<16x16x18xi32>
    %30 = arith.addi %28, %29 : vector<16x16x18xi32>
    %31 = arith.sitofp %30 : vector<16x16x18xi32> to vector<16x16x18xf32>
    %32 = vector.broadcast %20 : vector<16x16x1xf32> to vector<16x16x18xf32>
    %33 = arith.cmpf oeq, %31, %32 : vector<16x16x18xf32>
    %34 = arith.extui %33 : vector<16x16x18xi1> to vector<16x16x18xi32>
    %35 = arith.sitofp %34 : vector<16x16x18xi32> to vector<16x16x18xf32>
    %36 = vector.broadcast %17 : vector<16x16x1xf32> to vector<16x16x18xf32>
    %37 = arith.mulf %36, %35 : vector<16x16x18xf32>
    %38 = vector.broadcast %21 : vector<16x16x1xf32> to vector<16x16x18xf32>
    %39 = arith.cmpf oeq, %31, %38 : vector<16x16x18xf32>
    %40 = arith.extui %39 : vector<16x16x18xi1> to vector<16x16x18xi32>
    %41 = arith.sitofp %40 : vector<16x16x18xi32> to vector<16x16x18xf32>
    %42 = vector.broadcast %19 : vector<16x16x1xf32> to vector<16x16x18xf32>
    %43 = arith.mulf %42, %41 : vector<16x16x18xf32>
    %44 = arith.addf %37, %43 : vector<16x16x18xf32>
    %45 = vector.shape_cast %26 : vector<1x16x18xf32> to vector<16x18xf32>
    %46 = vector.shape_cast %45 : vector<16x18xf32> to vector<16x1x18xf32>
    %47 = vector.broadcast %46 : vector<16x1x18xf32> to vector<16x16x18xf32>
    %48 = arith.mulf %44, %47 : vector<16x16x18xf32>
    %cst_10 = arith.constant dense<0.000000e+00> : vector<16x16xf32>
    %49 = vector.multi_reduction <add>, %48, %cst_10 [2] : vector<16x16x18xf32> to vector<16x16xf32>
    %50 = arith.addf %27, %49 : vector<16x16xf32>
    %c0_11 = arith.constant 0 : index
    %c0_12 = arith.constant 0 : index
    %c0_13 = arith.constant 0 : index
    %c0_14 = arith.constant 0 : index
    %51 = vector.load %arg4[%c0_11, %c0_12, %c0_13, %c0_14] : memref<1x1x16x16xf32, #tpu.memory_space<vmem>>, vector<1x1x16x16xf32>
    %52 = vector.shape_cast %51 : vector<1x1x16x16xf32> to vector<16x16xf32>
    %53 = vector.shape_cast %50 : vector<16x16xf32> to vector<1x1x16x16xf32>
    tpu.vector_store %arg4[%c0_11, %c0_12, %c0_13, %c0_14], %53 {strides = array<i32>} : memref<1x1x16x16xf32, #tpu.memory_space<vmem>>, vector<1x1x16x16xf32>,
    return
  }
  func.func @transform_0(%arg0: i32, %arg1: i32) -> (i32, i32, i32, i32) {
    %c0_i32 = arith.constant 0 : i32
    %c0_i32_0 = arith.constant 0 : i32
    %c0_i32_1 = arith.constant 0 : i32
    %c0_i32_2 = arith.constant 0 : i32
    return %c0_i32, %arg0, %c0_i32_0, %c0_i32_1 : i32, i32, i32, i32
  }
  func.func @transform_1(%arg0: i32, %arg1: i32) -> (i32, i32, i32) {
    %c0_i32 = arith.constant 0 : i32
    %c0_i32_0 = arith.constant 0 : i32
    return %arg0, %arg1, %c0_i32 : i32, i32, i32
  }
  func.func @transform_2(%arg0: i32, %arg1: i32) -> (i32, i32, i32, i32) {
    %c0_i32 = arith.constant 0 : i32
    %c0_i32_0 = arith.constant 0 : i32
    %c0_i32_1 = arith.constant 0 : i32
    return %arg0, %c0_i32, %arg1, %c0_i32_0 : i32, i32, i32, i32
  }
}

module attributes {stable_mosaic.version = 11 : i64} {
  func.func @_fused_terms_kernel(%arg0: i32, %arg1: memref<1x3x16x16xf32, #tpu.memory_space<vmem>>, %arg2: memref<1x3x16x16xf32, #tpu.memory_space<vmem>>, %arg3: memref<1x16x16xf32, #tpu.memory_space<vmem>>, %arg4: memref<1x16x16xf32, #tpu.memory_space<vmem>>, %arg5: memref<1x4xf32, #tpu.memory_space<smem>>) attributes {dimension_semantics = [#tpu.dimension_semantics<arbitrary>], iteration_bounds = array<i64: 2>, scalar_prefetch = 0 : i64, scratch_operands = 0 : i64, tpu.core_type = #tpu.core_type<tc>, window_params = [{transform_indices = @transform_0, window_bounds = array<i64: 1, 3, 16, 16>}, {transform_indices = @transform_1, window_bounds = array<i64: 1, 3, 16, 16>}, {transform_indices = @transform_2, window_bounds = array<i64: 1, 16, 16>}, {transform_indices = @transform_3, window_bounds = array<i64: 1, 16, 16>}, {transform_indices = @transform_4, window_bounds = array<i64: 1, 4>}]} {
    %c0_i32 = arith.constant 0 : i32
    %0 = arith.cmpi eq, %arg0, %c0_i32 : i32
    %1 = arith.extui %0 : i1 to i32
    %c0_i32_0 = arith.constant 0 : i32
    %2 = arith.cmpi ne, %1, %c0_i32_0 : i32
    scf.if %2 {
      %cst_54 = arith.constant 0.000000e+00 : f32
      %c0_55 = arith.constant 0 : index
      %c0_56 = arith.constant 0 : index
      %204 = memref.load %arg5[%c0_55, %c0_56] : memref<1x4xf32, #tpu.memory_space<smem>>
      memref.store %cst_54, %arg5[%c0_55, %c0_56] : memref<1x4xf32, #tpu.memory_space<smem>>
      %cst_57 = arith.constant 0.000000e+00 : f32
      %c0_58 = arith.constant 0 : index
      %c1_59 = arith.constant 1 : index
      %205 = memref.load %arg5[%c0_58, %c1_59] : memref<1x4xf32, #tpu.memory_space<smem>>
      memref.store %cst_57, %arg5[%c0_58, %c1_59] : memref<1x4xf32, #tpu.memory_space<smem>>
      %cst_60 = arith.constant 0.000000e+00 : f32
      %c0_61 = arith.constant 0 : index
      %c2_62 = arith.constant 2 : index
      %206 = memref.load %arg5[%c0_61, %c2_62] : memref<1x4xf32, #tpu.memory_space<smem>>
      memref.store %cst_60, %arg5[%c0_61, %c2_62] : memref<1x4xf32, #tpu.memory_space<smem>>
      %cst_63 = arith.constant 0.000000e+00 : f32
      %c0_64 = arith.constant 0 : index
      %c3_65 = arith.constant 3 : index
      %207 = memref.load %arg5[%c0_64, %c3_65] : memref<1x4xf32, #tpu.memory_space<smem>>
      memref.store %cst_63, %arg5[%c0_64, %c3_65] : memref<1x4xf32, #tpu.memory_space<smem>>
    } else {
    }
    %c0 = arith.constant 0 : index
    %c0_1 = arith.constant 0 : index
    %c0_2 = arith.constant 0 : index
    %c0_3 = arith.constant 0 : index
    %3 = vector.load %arg1[%c0, %c0_1, %c0_2, %c0_3] : memref<1x3x16x16xf32, #tpu.memory_space<vmem>>, vector<1x3x16x16xf32>
    %4 = vector.shape_cast %3 : vector<1x3x16x16xf32> to vector<3x16x16xf32>
    %c0_4 = arith.constant 0 : index
    %c0_5 = arith.constant 0 : index
    %c0_6 = arith.constant 0 : index
    %c0_7 = arith.constant 0 : index
    %5 = vector.load %arg2[%c0_4, %c0_5, %c0_6, %c0_7] : memref<1x3x16x16xf32, #tpu.memory_space<vmem>>, vector<1x3x16x16xf32>
    %6 = vector.shape_cast %5 : vector<1x3x16x16xf32> to vector<3x16x16xf32>
    %c0_8 = arith.constant 0 : index
    %c0_9 = arith.constant 0 : index
    %c0_10 = arith.constant 0 : index
    %7 = vector.load %arg3[%c0_8, %c0_9, %c0_10] : memref<1x16x16xf32, #tpu.memory_space<vmem>>, vector<1x16x16xf32>
    %8 = vector.shape_cast %7 : vector<1x16x16xf32> to vector<16x16xf32>
    %c0_11 = arith.constant 0 : index
    %c0_12 = arith.constant 0 : index
    %c0_13 = arith.constant 0 : index
    %9 = vector.load %arg4[%c0_11, %c0_12, %c0_13] : memref<1x16x16xf32, #tpu.memory_space<vmem>>, vector<1x16x16xf32>
    %10 = vector.shape_cast %9 : vector<1x16x16xf32> to vector<16x16xf32>
    %11 = arith.subf %4, %6 : vector<3x16x16xf32>
    %12 = math.absf %11 : vector<3x16x16xf32>
    %13 = vector.shape_cast %12 : vector<3x16x16xf32> to vector<1x3x16x16xf32>
    %cst = arith.constant dense<0.000000e+00> : vector<1xf32>
    %14 = vector.multi_reduction <add>, %13, %cst [1, 2, 3] : vector<1x3x16x16xf32> to vector<1xf32>
    %15 = vector.shape_cast %14 : vector<1xf32> to vector<1x1x1x1xf32>
    %16 = vector.extract %15[0, 0, 0, 0] : f32 from vector<1x1x1x1xf32>
    %17 = arith.subf %10, %8 : vector<16x16xf32>
    %18 = math.absf %17 : vector<16x16xf32>
    %19 = vector.shape_cast %18 : vector<16x16xf32> to vector<1x16x16xf32>
    %cst_14 = arith.constant dense<0.000000e+00> : vector<1xf32>
    %20 = vector.multi_reduction <add>, %19, %cst_14 [1, 2] : vector<1x16x16xf32> to vector<1xf32>
    %21 = vector.shape_cast %20 : vector<1xf32> to vector<1x1x1xf32>
    %22 = vector.extract %21[0, 0, 0] : f32 from vector<1x1x1xf32>
    %23 = vector.extract_strided_slice %4 {offsets = [0, 0, 0], sizes = [1, 16, 16], strides = [1, 1, 1]} : vector<3x16x16xf32> to vector<1x16x16xf32>
    %24 = vector.shape_cast %23 : vector<1x16x16xf32> to vector<16x16xf32>
    %cst_15 = arith.constant 1.140000e-01 : f32
    %25 = vector.broadcast %cst_15 : f32 to vector<16x16xf32>
    %26 = arith.mulf %25, %24 : vector<16x16xf32>
    %27 = vector.extract_strided_slice %4 {offsets = [1, 0, 0], sizes = [1, 16, 16], strides = [1, 1, 1]} : vector<3x16x16xf32> to vector<1x16x16xf32>
    %28 = vector.shape_cast %27 : vector<1x16x16xf32> to vector<16x16xf32>
    %cst_16 = arith.constant 5.870000e-01 : f32
    %29 = vector.broadcast %cst_16 : f32 to vector<16x16xf32>
    %30 = arith.mulf %29, %28 : vector<16x16xf32>
    %31 = arith.addf %26, %30 : vector<16x16xf32>
    %32 = vector.extract_strided_slice %4 {offsets = [2, 0, 0], sizes = [1, 16, 16], strides = [1, 1, 1]} : vector<3x16x16xf32> to vector<1x16x16xf32>
    %33 = vector.shape_cast %32 : vector<1x16x16xf32> to vector<16x16xf32>
    %cst_17 = arith.constant 2.990000e-01 : f32
    %34 = vector.broadcast %cst_17 : f32 to vector<16x16xf32>
    %35 = arith.mulf %34, %33 : vector<16x16xf32>
    %36 = arith.addf %31, %35 : vector<16x16xf32>
    %37 = vector.extract_strided_slice %6 {offsets = [0, 0, 0], sizes = [1, 16, 16], strides = [1, 1, 1]} : vector<3x16x16xf32> to vector<1x16x16xf32>
    %38 = vector.shape_cast %37 : vector<1x16x16xf32> to vector<16x16xf32>
    %cst_18 = arith.constant 1.140000e-01 : f32
    %39 = vector.broadcast %cst_18 : f32 to vector<16x16xf32>
    %40 = arith.mulf %39, %38 : vector<16x16xf32>
    %41 = vector.extract_strided_slice %6 {offsets = [1, 0, 0], sizes = [1, 16, 16], strides = [1, 1, 1]} : vector<3x16x16xf32> to vector<1x16x16xf32>
    %42 = vector.shape_cast %41 : vector<1x16x16xf32> to vector<16x16xf32>
    %cst_19 = arith.constant 5.870000e-01 : f32
    %43 = vector.broadcast %cst_19 : f32 to vector<16x16xf32>
    %44 = arith.mulf %43, %42 : vector<16x16xf32>
    %45 = arith.addf %40, %44 : vector<16x16xf32>
    %46 = vector.extract_strided_slice %6 {offsets = [2, 0, 0], sizes = [1, 16, 16], strides = [1, 1, 1]} : vector<3x16x16xf32> to vector<1x16x16xf32>
    %47 = vector.shape_cast %46 : vector<1x16x16xf32> to vector<16x16xf32>
    %cst_20 = arith.constant 2.990000e-01 : f32
    %48 = vector.broadcast %cst_20 : f32 to vector<16x16xf32>
    %49 = arith.mulf %48, %47 : vector<16x16xf32>
    %50 = arith.addf %45, %49 : vector<16x16xf32>
    %51 = vector.extract_strided_slice %36 {offsets = [0, 0], sizes = [16, 14], strides = [1, 1]} : vector<16x16xf32> to vector<16x14xf32>
    %52 = vector.extract_strided_slice %36 {offsets = [0, 1], sizes = [16, 14], strides = [1, 1]} : vector<16x16xf32> to vector<16x14xf32>
    %53 = arith.addf %51, %52 : vector<16x14xf32>
    %54 = vector.extract_strided_slice %36 {offsets = [0, 2], sizes = [16, 14], strides = [1, 1]} : vector<16x16xf32> to vector<16x14xf32>
    %55 = arith.addf %53, %54 : vector<16x14xf32>
    %56 = vector.extract_strided_slice %55 {offsets = [0, 0], sizes = [14, 14], strides = [1, 1]} : vector<16x14xf32> to vector<14x14xf32>
    %57 = vector.extract_strided_slice %55 {offsets = [1, 0], sizes = [14, 14], strides = [1, 1]} : vector<16x14xf32> to vector<14x14xf32>
    %58 = arith.addf %56, %57 : vector<14x14xf32>
    %59 = vector.extract_strided_slice %55 {offsets = [2, 0], sizes = [14, 14], strides = [1, 1]} : vector<16x14xf32> to vector<14x14xf32>
    %60 = arith.addf %58, %59 : vector<14x14xf32>
    %cst_21 = arith.constant 0.111111112 : f32
    %61 = vector.broadcast %cst_21 : f32 to vector<14x14xf32>
    %62 = arith.mulf %60, %61 : vector<14x14xf32>
    %63 = vector.extract_strided_slice %50 {offsets = [0, 0], sizes = [16, 14], strides = [1, 1]} : vector<16x16xf32> to vector<16x14xf32>
    %64 = vector.extract_strided_slice %50 {offsets = [0, 1], sizes = [16, 14], strides = [1, 1]} : vector<16x16xf32> to vector<16x14xf32>
    %65 = arith.addf %63, %64 : vector<16x14xf32>
    %66 = vector.extract_strided_slice %50 {offsets = [0, 2], sizes = [16, 14], strides = [1, 1]} : vector<16x16xf32> to vector<16x14xf32>
    %67 = arith.addf %65, %66 : vector<16x14xf32>
    %68 = vector.extract_strided_slice %67 {offsets = [0, 0], sizes = [14, 14], strides = [1, 1]} : vector<16x14xf32> to vector<14x14xf32>
    %69 = vector.extract_strided_slice %67 {offsets = [1, 0], sizes = [14, 14], strides = [1, 1]} : vector<16x14xf32> to vector<14x14xf32>
    %70 = arith.addf %68, %69 : vector<14x14xf32>
    %71 = vector.extract_strided_slice %67 {offsets = [2, 0], sizes = [14, 14], strides = [1, 1]} : vector<16x14xf32> to vector<14x14xf32>
    %72 = arith.addf %70, %71 : vector<14x14xf32>
    %cst_22 = arith.constant 0.111111112 : f32
    %73 = vector.broadcast %cst_22 : f32 to vector<14x14xf32>
    %74 = arith.mulf %72, %73 : vector<14x14xf32>
    %75 = vector.extract_strided_slice %36 {offsets = [1, 1], sizes = [14, 14], strides = [1, 1]} : vector<16x16xf32> to vector<14x14xf32>
    %76 = vector.extract_strided_slice %50 {offsets = [1, 1], sizes = [14, 14], strides = [1, 1]} : vector<16x16xf32> to vector<14x14xf32>
    %77 = arith.subf %75, %62 : vector<14x14xf32>
    %78 = arith.subf %76, %74 : vector<14x14xf32>
    %79 = arith.mulf %77, %77 : vector<14x14xf32>
    %80 = vector.extract_strided_slice %79 {offsets = [0, 0], sizes = [14, 12], strides = [1, 1]} : vector<14x14xf32> to vector<14x12xf32>
    %81 = vector.extract_strided_slice %79 {offsets = [0, 1], sizes = [14, 12], strides = [1, 1]} : vector<14x14xf32> to vector<14x12xf32>
    %82 = arith.addf %80, %81 : vector<14x12xf32>
    %83 = vector.extract_strided_slice %79 {offsets = [0, 2], sizes = [14, 12], strides = [1, 1]} : vector<14x14xf32> to vector<14x12xf32>
    %84 = arith.addf %82, %83 : vector<14x12xf32>
    %85 = vector.extract_strided_slice %84 {offsets = [0, 0], sizes = [12, 12], strides = [1, 1]} : vector<14x12xf32> to vector<12x12xf32>
    %86 = vector.extract_strided_slice %84 {offsets = [1, 0], sizes = [12, 12], strides = [1, 1]} : vector<14x12xf32> to vector<12x12xf32>
    %87 = arith.addf %85, %86 : vector<12x12xf32>
    %88 = vector.extract_strided_slice %84 {offsets = [2, 0], sizes = [12, 12], strides = [1, 1]} : vector<14x12xf32> to vector<12x12xf32>
    %89 = arith.addf %87, %88 : vector<12x12xf32>
    %cst_23 = arith.constant 0.111111112 : f32
    %90 = vector.broadcast %cst_23 : f32 to vector<12x12xf32>
    %91 = arith.mulf %89, %90 : vector<12x12xf32>
    %92 = arith.mulf %78, %78 : vector<14x14xf32>
    %93 = vector.extract_strided_slice %92 {offsets = [0, 0], sizes = [14, 12], strides = [1, 1]} : vector<14x14xf32> to vector<14x12xf32>
    %94 = vector.extract_strided_slice %92 {offsets = [0, 1], sizes = [14, 12], strides = [1, 1]} : vector<14x14xf32> to vector<14x12xf32>
    %95 = arith.addf %93, %94 : vector<14x12xf32>
    %96 = vector.extract_strided_slice %92 {offsets = [0, 2], sizes = [14, 12], strides = [1, 1]} : vector<14x14xf32> to vector<14x12xf32>
    %97 = arith.addf %95, %96 : vector<14x12xf32>
    %98 = vector.extract_strided_slice %97 {offsets = [0, 0], sizes = [12, 12], strides = [1, 1]} : vector<14x12xf32> to vector<12x12xf32>
    %99 = vector.extract_strided_slice %97 {offsets = [1, 0], sizes = [12, 12], strides = [1, 1]} : vector<14x12xf32> to vector<12x12xf32>
    %100 = arith.addf %98, %99 : vector<12x12xf32>
    %101 = vector.extract_strided_slice %97 {offsets = [2, 0], sizes = [12, 12], strides = [1, 1]} : vector<14x12xf32> to vector<12x12xf32>
    %102 = arith.addf %100, %101 : vector<12x12xf32>
    %cst_24 = arith.constant 0.111111112 : f32
    %103 = vector.broadcast %cst_24 : f32 to vector<12x12xf32>
    %104 = arith.mulf %102, %103 : vector<12x12xf32>
    %105 = arith.mulf %77, %78 : vector<14x14xf32>
    %106 = vector.extract_strided_slice %105 {offsets = [0, 0], sizes = [14, 12], strides = [1, 1]} : vector<14x14xf32> to vector<14x12xf32>
    %107 = vector.extract_strided_slice %105 {offsets = [0, 1], sizes = [14, 12], strides = [1, 1]} : vector<14x14xf32> to vector<14x12xf32>
    %108 = arith.addf %106, %107 : vector<14x12xf32>
    %109 = vector.extract_strided_slice %105 {offsets = [0, 2], sizes = [14, 12], strides = [1, 1]} : vector<14x14xf32> to vector<14x12xf32>
    %110 = arith.addf %108, %109 : vector<14x12xf32>
    %111 = vector.extract_strided_slice %110 {offsets = [0, 0], sizes = [12, 12], strides = [1, 1]} : vector<14x12xf32> to vector<12x12xf32>
    %112 = vector.extract_strided_slice %110 {offsets = [1, 0], sizes = [12, 12], strides = [1, 1]} : vector<14x12xf32> to vector<12x12xf32>
    %113 = arith.addf %111, %112 : vector<12x12xf32>
    %114 = vector.extract_strided_slice %110 {offsets = [2, 0], sizes = [12, 12], strides = [1, 1]} : vector<14x12xf32> to vector<12x12xf32>
    %115 = arith.addf %113, %114 : vector<12x12xf32>
    %cst_25 = arith.constant 0.111111112 : f32
    %116 = vector.broadcast %cst_25 : f32 to vector<12x12xf32>
    %117 = arith.mulf %115, %116 : vector<12x12xf32>
    %118 = vector.extract_strided_slice %62 {offsets = [1, 1], sizes = [12, 12], strides = [1, 1]} : vector<14x14xf32> to vector<12x12xf32>
    %119 = vector.extract_strided_slice %74 {offsets = [1, 1], sizes = [12, 12], strides = [1, 1]} : vector<14x14xf32> to vector<12x12xf32>
    %cst_26 = arith.constant 2.000000e+00 : f32
    %120 = vector.broadcast %cst_26 : f32 to vector<12x12xf32>
    %121 = arith.mulf %120, %118 : vector<12x12xf32>
    %122 = arith.mulf %121, %119 : vector<12x12xf32>
    %cst_27 = arith.constant 9.99999974E-5 : f32
    %123 = vector.broadcast %cst_27 : f32 to vector<12x12xf32>
    %124 = arith.addf %122, %123 : vector<12x12xf32>
    %cst_28 = arith.constant 2.000000e+00 : f32
    %125 = vector.broadcast %cst_28 : f32 to vector<12x12xf32>
    %126 = arith.mulf %125, %117 : vector<12x12xf32>
    %cst_29 = arith.constant 8.99999984E-4 : f32
    %127 = vector.broadcast %cst_29 : f32 to vector<12x12xf32>
    %128 = arith.addf %126, %127 : vector<12x12xf32>
    %129 = arith.mulf %124, %128 : vector<12x12xf32>
    %130 = arith.mulf %118, %118 : vector<12x12xf32>
    %131 = arith.mulf %119, %119 : vector<12x12xf32>
    %132 = arith.addf %130, %131 : vector<12x12xf32>
    %cst_30 = arith.constant 9.99999974E-5 : f32
    %133 = vector.broadcast %cst_30 : f32 to vector<12x12xf32>
    %134 = arith.addf %132, %133 : vector<12x12xf32>
    %135 = arith.addf %91, %104 : vector<12x12xf32>
    %cst_31 = arith.constant 8.99999984E-4 : f32
    %136 = vector.broadcast %cst_31 : f32 to vector<12x12xf32>
    %137 = arith.addf %135, %136 : vector<12x12xf32>
    %138 = arith.mulf %134, %137 : vector<12x12xf32>
    %139 = tpu.reciprocal %138 {approx = true} : vector<12x12xf32> -> vector<12x12xf32>
    %140 = arith.mulf %129, %139 : vector<12x12xf32>
    %cst_32 = arith.constant 1.000000e+00 : f32
    %141 = vector.broadcast %cst_32 : f32 to vector<12x12xf32>
    %142 = arith.subf %141, %140 : vector<12x12xf32>
    %cst_33 = arith.constant 0.000000e+00 : f32
    %cst_34 = arith.constant 2.000000e+00 : f32
    %143 = vector.broadcast %cst_33 : f32 to vector<12x12xf32>
    %144 = arith.maximumf %143, %142 : vector<12x12xf32>
    %145 = vector.broadcast %cst_34 : f32 to vector<12x12xf32>
    %146 = arith.minimumf %145, %144 : vector<12x12xf32>
    %147 = vector.shape_cast %146 : vector<12x12xf32> to vector<1x12x12xf32>
    %cst_35 = arith.constant dense<0.000000e+00> : vector<1xf32>
    %148 = vector.multi_reduction <add>, %147, %cst_35 [1, 2] : vector<1x12x12xf32> to vector<1xf32>
    %149 = vector.shape_cast %148 : vector<1xf32> to vector<1x1x1xf32>
    %150 = vector.extract %149[0, 0, 0] : f32 from vector<1x1x1xf32>
    %151 = vector.extract_strided_slice %8 {offsets = [0, 0], sizes = [16, 14], strides = [1, 1]} : vector<16x16xf32> to vector<16x14xf32>
    %152 = vector.extract_strided_slice %8 {offsets = [0, 1], sizes = [16, 14], strides = [1, 1]} : vector<16x16xf32> to vector<16x14xf32>
    %153 = arith.addf %151, %152 : vector<16x14xf32>
    %154 = vector.extract_strided_slice %8 {offsets = [0, 2], sizes = [16, 14], strides = [1, 1]} : vector<16x16xf32> to vector<16x14xf32>
    %155 = arith.addf %153, %154 : vector<16x14xf32>
    %156 = vector.extract_strided_slice %155 {offsets = [0, 0], sizes = [14, 14], strides = [1, 1]} : vector<16x14xf32> to vector<14x14xf32>
    %157 = vector.extract_strided_slice %155 {offsets = [1, 0], sizes = [14, 14], strides = [1, 1]} : vector<16x14xf32> to vector<14x14xf32>
    %158 = arith.addf %156, %157 : vector<14x14xf32>
    %159 = vector.extract_strided_slice %155 {offsets = [2, 0], sizes = [14, 14], strides = [1, 1]} : vector<16x14xf32> to vector<14x14xf32>
    %160 = arith.addf %158, %159 : vector<14x14xf32>
    %161 = vector.extract_strided_slice %8 {offsets = [1, 1], sizes = [14, 14], strides = [1, 1]} : vector<16x16xf32> to vector<14x14xf32>
    %cst_36 = arith.constant 9.000000e+00 : f32
    %162 = vector.broadcast %cst_36 : f32 to vector<14x14xf32>
    %163 = arith.mulf %162, %161 : vector<14x14xf32>
    %164 = arith.subf %160, %163 : vector<14x14xf32>
    %165 = math.absf %164 : vector<14x14xf32>
    %166 = vector.extract_strided_slice %36 {offsets = [0, 0], sizes = [16, 14], strides = [1, 1]} : vector<16x16xf32> to vector<16x14xf32>
    %167 = vector.extract_strided_slice %36 {offsets = [0, 1], sizes = [16, 14], strides = [1, 1]} : vector<16x16xf32> to vector<16x14xf32>
    %168 = arith.addf %166, %167 : vector<16x14xf32>
    %169 = vector.extract_strided_slice %36 {offsets = [0, 2], sizes = [16, 14], strides = [1, 1]} : vector<16x16xf32> to vector<16x14xf32>
    %170 = arith.addf %168, %169 : vector<16x14xf32>
    %171 = vector.extract_strided_slice %170 {offsets = [0, 0], sizes = [14, 14], strides = [1, 1]} : vector<16x14xf32> to vector<14x14xf32>
    %172 = vector.extract_strided_slice %170 {offsets = [1, 0], sizes = [14, 14], strides = [1, 1]} : vector<16x14xf32> to vector<14x14xf32>
    %173 = arith.addf %171, %172 : vector<14x14xf32>
    %174 = vector.extract_strided_slice %170 {offsets = [2, 0], sizes = [14, 14], strides = [1, 1]} : vector<16x14xf32> to vector<14x14xf32>
    %175 = arith.addf %173, %174 : vector<14x14xf32>
    %176 = vector.extract_strided_slice %36 {offsets = [1, 1], sizes = [14, 14], strides = [1, 1]} : vector<16x16xf32> to vector<14x14xf32>
    %cst_37 = arith.constant 9.000000e+00 : f32
    %177 = vector.broadcast %cst_37 : f32 to vector<14x14xf32>
    %178 = arith.mulf %177, %176 : vector<14x14xf32>
    %179 = arith.subf %175, %178 : vector<14x14xf32>
    %180 = math.absf %179 : vector<14x14xf32>
    %cst_38 = arith.constant 0.000000e+00 : f32
    %181 = vector.broadcast %cst_38 : f32 to vector<14x14xf32>
    %182 = arith.subf %181, %180 : vector<14x14xf32>
    %183 = math.exp %182 : vector<14x14xf32>
    %184 = arith.mulf %183, %165 : vector<14x14xf32>
    %185 = vector.shape_cast %184 : vector<14x14xf32> to vector<1x14x14xf32>
    %cst_39 = arith.constant dense<0.000000e+00> : vector<1xf32>
    %186 = vector.multi_reduction <add>, %185, %cst_39 [1, 2] : vector<1x14x14xf32> to vector<1xf32>
    %187 = vector.shape_cast %186 : vector<1xf32> to vector<1x1x1xf32>
    %188 = vector.extract %187[0, 0, 0] : f32 from vector<1x1x1xf32>
    %c0_40 = arith.constant 0 : index
    %c0_41 = arith.constant 0 : index
    %189 = memref.load %arg5[%c0_40, %c0_41] : memref<1x4xf32, #tpu.memory_space<smem>>
    %190 = arith.addf %189, %16 : f32
    %c0_42 = arith.constant 0 : index
    %c0_43 = arith.constant 0 : index
    %191 = memref.load %arg5[%c0_42, %c0_43] : memref<1x4xf32, #tpu.memory_space<smem>>
    memref.store %190, %arg5[%c0_42, %c0_43] : memref<1x4xf32, #tpu.memory_space<smem>>
    %c0_44 = arith.constant 0 : index
    %c1 = arith.constant 1 : index
    %192 = memref.load %arg5[%c0_44, %c1] : memref<1x4xf32, #tpu.memory_space<smem>>
    %193 = arith.addf %192, %150 : f32
    %c0_45 = arith.constant 0 : index
    %c1_46 = arith.constant 1 : index
    %194 = memref.load %arg5[%c0_45, %c1_46] : memref<1x4xf32, #tpu.memory_space<smem>>
    memref.store %193, %arg5[%c0_45, %c1_46] : memref<1x4xf32, #tpu.memory_space<smem>>
    %c0_47 = arith.constant 0 : index
    %c2 = arith.constant 2 : index
    %195 = memref.load %arg5[%c0_47, %c2] : memref<1x4xf32, #tpu.memory_space<smem>>
    %196 = arith.addf %195, %188 : f32
    %c0_48 = arith.constant 0 : index
    %c2_49 = arith.constant 2 : index
    %197 = memref.load %arg5[%c0_48, %c2_49] : memref<1x4xf32, #tpu.memory_space<smem>>
    memref.store %196, %arg5[%c0_48, %c2_49] : memref<1x4xf32, #tpu.memory_space<smem>>
    %c0_50 = arith.constant 0 : index
    %c3 = arith.constant 3 : index
    %198 = memref.load %arg5[%c0_50, %c3] : memref<1x4xf32, #tpu.memory_space<smem>>
    %199 = arith.addf %198, %22 : f32
    %c0_51 = arith.constant 0 : index
    %c3_52 = arith.constant 3 : index
    %200 = memref.load %arg5[%c0_51, %c3_52] : memref<1x4xf32, #tpu.memory_space<smem>>
    memref.store %199, %arg5[%c0_51, %c3_52] : memref<1x4xf32, #tpu.memory_space<smem>>
    %c1_i32 = arith.constant 1 : i32
    %201 = arith.cmpi eq, %arg0, %c1_i32 : i32
    %202 = arith.extui %201 : i1 to i32
    %c0_i32_53 = arith.constant 0 : i32
    %203 = arith.cmpi ne, %202, %c0_i32_53 : i32
    scf.if %203 {
      %c0_54 = arith.constant 0 : index
      %c0_55 = arith.constant 0 : index
      %204 = memref.load %arg5[%c0_54, %c0_55] : memref<1x4xf32, #tpu.memory_space<smem>>
      %cst_56 = arith.constant 6.51041686E-4 : f32
      %205 = arith.mulf %204, %cst_56 : f32
      %c0_57 = arith.constant 0 : index
      %c0_58 = arith.constant 0 : index
      %206 = memref.load %arg5[%c0_57, %c0_58] : memref<1x4xf32, #tpu.memory_space<smem>>
      memref.store %205, %arg5[%c0_57, %c0_58] : memref<1x4xf32, #tpu.memory_space<smem>>
      %c0_59 = arith.constant 0 : index
      %c1_60 = arith.constant 1 : index
      %207 = memref.load %arg5[%c0_59, %c1_60] : memref<1x4xf32, #tpu.memory_space<smem>>
      %cst_61 = arith.constant 0.00347222225 : f32
      %208 = arith.mulf %207, %cst_61 : f32
      %c0_62 = arith.constant 0 : index
      %c1_63 = arith.constant 1 : index
      %209 = memref.load %arg5[%c0_62, %c1_63] : memref<1x4xf32, #tpu.memory_space<smem>>
      memref.store %208, %arg5[%c0_62, %c1_63] : memref<1x4xf32, #tpu.memory_space<smem>>
      %c0_64 = arith.constant 0 : index
      %c2_65 = arith.constant 2 : index
      %210 = memref.load %arg5[%c0_64, %c2_65] : memref<1x4xf32, #tpu.memory_space<smem>>
      %cst_66 = arith.constant 0.00255102036 : f32
      %211 = arith.mulf %210, %cst_66 : f32
      %c0_67 = arith.constant 0 : index
      %c2_68 = arith.constant 2 : index
      %212 = memref.load %arg5[%c0_67, %c2_68] : memref<1x4xf32, #tpu.memory_space<smem>>
      memref.store %211, %arg5[%c0_67, %c2_68] : memref<1x4xf32, #tpu.memory_space<smem>>
      %c0_69 = arith.constant 0 : index
      %c3_70 = arith.constant 3 : index
      %213 = memref.load %arg5[%c0_69, %c3_70] : memref<1x4xf32, #tpu.memory_space<smem>>
      %cst_71 = arith.constant 0.001953125 : f32
      %214 = arith.mulf %213, %cst_71 : f32
      %c0_72 = arith.constant 0 : index
      %c3_73 = arith.constant 3 : index
      %215 = memref.load %arg5[%c0_72, %c3_73] : memref<1x4xf32, #tpu.memory_space<smem>>
      memref.store %214, %arg5[%c0_72, %c3_73] : memref<1x4xf32, #tpu.memory_space<smem>>
    } else {
    }
    return
  }
  func.func @transform_0(%arg0: i32) -> (i32, i32, i32, i32) {
    %c0_i32 = arith.constant 0 : i32
    %c0_i32_0 = arith.constant 0 : i32
    %c0_i32_1 = arith.constant 0 : i32
    %c0_i32_2 = arith.constant 0 : i32
    return %arg0, %c0_i32, %c0_i32_0, %c0_i32_1 : i32, i32, i32, i32
  }
  func.func @transform_1(%arg0: i32) -> (i32, i32, i32, i32) {
    %c0_i32 = arith.constant 0 : i32
    %c0_i32_0 = arith.constant 0 : i32
    %c0_i32_1 = arith.constant 0 : i32
    %c0_i32_2 = arith.constant 0 : i32
    return %arg0, %c0_i32, %c0_i32_0, %c0_i32_1 : i32, i32, i32, i32
  }
  func.func @transform_2(%arg0: i32) -> (i32, i32, i32) {
    %c0_i32 = arith.constant 0 : i32
    %c0_i32_0 = arith.constant 0 : i32
    %c0_i32_1 = arith.constant 0 : i32
    return %arg0, %c0_i32, %c0_i32_0 : i32, i32, i32
  }
  func.func @transform_3(%arg0: i32) -> (i32, i32, i32) {
    %c0_i32 = arith.constant 0 : i32
    %c0_i32_0 = arith.constant 0 : i32
    %c0_i32_1 = arith.constant 0 : i32
    return %arg0, %c0_i32, %c0_i32_0 : i32, i32, i32
  }
  func.func @transform_4(%arg0: i32) -> (i32, i32) {
    %c0_i32 = arith.constant 0 : i32
    %c0_i32_0 = arith.constant 0 : i32
    %c0_i32_1 = arith.constant 0 : i32
    return %c0_i32, %c0_i32_0 : i32, i32
  }
}

</mosaic_0001>

<llo_original>
// kernel: lr_loss.10
$region0: #{lr_loss.10}
  #allocation0 [shape = 'u32[]', space=smem, size = 0x4, offset = 0x4, fixed_abs, tag = 'smem constant byte address 0x4 - core index']
  #allocation1 [shape = 'u32[72,128]{1,0:T(1,128)}', space=vmem, size = 0x9000, scoped, tag = 'internal scratch']
  %s0 = inlined_call_operand.vmem [shape: f32[2,3,16,16], index: 0, kind: input, shape index: {}]
  %s1 = inlined_call_operand.vmem [shape: f32[2,3,16,16], index: 1, kind: input, shape index: {}]
  %s2 = inlined_call_operand.vmem [shape: f32[2,16,16], index: 2, kind: input, shape index: {}]
  %s3 = inlined_call_operand.vmem [shape: f32[2,16,16], index: 3, kind: input, shape index: {}]
  %s4 = inlined_call_operand.vmem [shape: f32[1,4], index: 4, kind: output, shape index: {}]
  %s5 = sld [smem:[#allocation0]]
  $region57: #{lr_loss.10} parent=0
    _
  %s7 = ssub.s32 1, %s5
  %s8 = scalar_select 0, %s7, %s5
  $region1: #{lr_loss.10} parent=0
    #allocation2 [shape = 'u8[512]{0}', space=smem, size = 0x200, scoped, tag = 'output window, operand 0, single buffered']
    #allocation3 [shape = 's32[2]{0}', space=sflag, size = 0x8, scoped, tag = 'scoped memory for lr_loss.10']
    %9 = vsyncpa [#allocation3], 0
    loop: start=0, step=1, limit=4
    $region2: #{lr_loss.10} parent=1 // loop_pre_header
      _
    $region3: #{lr_loss.10} parent=1 // loop_header
      %s11 = sphi 0, %s15
      %p12 = scmp.ge.s32.totalorder %s11, 4
      %s21 = sphi 0, %s23
      %s24 = sphi 0, %s21
      %s25 = sphi 0, %s24
      %s41 = sphi 0, %s25
      %s47 = sphi 0, %s49
      %s50 = sphi 0, %s47
      %s51 = sphi 0, %s50
      %s67 = sphi 0, %s51
      %s73 = sphi 0, %s75
      %s76 = sphi 0, %s73
      %s77 = sphi 0, %s76
      %s93 = sphi 0, %s77
      %s99 = sphi 0, %s101
      %s102 = sphi 0, %s99
      %s103 = sphi 0, %s102
      %s119 = sphi 0, %s103
      %s123 = sphi 0, %s123
      %s125 = sphi 0, %s123
      %s126 = sphi 0, %s125
      %s140 = sphi 0, %s126
    $region4: #{lr_loss.10} parent=1 // loop_header_branch
      %14 = sbr.rel (%p12) target = $region8
    $region5: #{lr_loss.10} parent=1 // loop_body
      %s16 = ssub.s32 %s11, 1
      %s17 = ssub.s32 %s11, 2
      %s18 = sadd.s32 %s11, 1
      %s19 = ssub.s32 %s11, %s18
      %p20 = scmp.eq.s32.totalorder %s19, 0
      %s22 = sadd.s32 %s21, 1
      %s23 = scalar_select %p20, %s21, %s22
      %p26 = pneg %p20
      %p27 = scmp.eq.s32.totalorder %s11, 1
      %p28 = por %p26, %p27
      %p29 = scmp.ne.s32.totalorder %s21, %s24
      %p30 = scmp.eq.s32.totalorder %s11, 0
      %p31 = por %p29, %p30
      %p32 = scmp.ne.s32.totalorder %s21, %s24
      %p33 = scmp.eq.s32.totalorder %s16, 1
      %p34 = por %p32, %p33
      %p35 = scmp.ne.s32.totalorder %s24, %s25
      %p36 = scmp.eq.s32.totalorder %s16, 0
      %p37 = por %p35, %p36
      %p38 = scmp.ne.s32.totalorder %s24, %s25
      %p39 = scmp.eq.s32.totalorder %s17, 1
      %p40 = por %p38, %p39
      %p42 = scmp.ne.s32.totalorder %s25, %s41
      %p43 = scmp.eq.s32.totalorder %s17, 0
      %p44 = por %p42, %p43
      %s45 = ssub.s32 %s11, %s18
      %p46 = scmp.eq.s32.totalorder %s45, 0
      %s48 = sadd.s32 %s47, 1
      %s49 = scalar_select %p46, %s47, %s48
      %p52 = pneg %p46
      %p53 = scmp.eq.s32.totalorder %s11, 1
      %p54 = por %p52, %p53
      %p55 = scmp.ne.s32.totalorder %s47, %s50
      %p56 = scmp.eq.s32.totalorder %s11, 0
      %p57 = por %p55, %p56
      %p58 = scmp.ne.s32.totalorder %s47, %s50
      %p59 = scmp.eq.s32.totalorder %s16, 1
      %p60 = por %p58, %p59
      %p61 = scmp.ne.s32.totalorder %s50, %s51
      %p62 = scmp.eq.s32.totalorder %s16, 0
      %p63 = por %p61, %p62
      %p64 = scmp.ne.s32.totalorder %s50, %s51
      %p65 = scmp.eq.s32.totalorder %s17, 1
      %p66 = por %p64, %p65
      %p68 = scmp.ne.s32.totalorder %s51, %s67
      %p69 = scmp.eq.s32.totalorder %s17, 0
      %p70 = por %p68, %p69
      %s71 = ssub.s32 %s11, %s18
      %p72 = scmp.eq.s32.totalorder %s71, 0
      %s74 = sadd.s32 %s73, 1
      %s75 = scalar_select %p72, %s73, %s74
      %p78 = pneg %p72
      %p79 = scmp.eq.s32.totalorder %s11, 1
      %p80 = por %p78, %p79
      %p81 = scmp.ne.s32.totalorder %s73, %s76
      %p82 = scmp.eq.s32.totalorder %s11, 0
      %p83 = por %p81, %p82
      %p84 = scmp.ne.s32.totalorder %s73, %s76
      %p85 = scmp.eq.s32.totalorder %s16, 1
      %p86 = por %p84, %p85
      %p87 = scmp.ne.s32.totalorder %s76, %s77
      %p88 = scmp.eq.s32.totalorder %s16, 0
      %p89 = por %p87, %p88
      %p90 = scmp.ne.s32.totalorder %s76, %s77
      %p91 = scmp.eq.s32.totalorder %s17, 1
      %p92 = por %p90, %p91
      %p94 = scmp.ne.s32.totalorder %s77, %s93
      %p95 = scmp.eq.s32.totalorder %s17, 0
      %p96 = por %p94, %p95
      %s97 = ssub.s32 %s11, %s18
      %p98 = scmp.eq.s32.totalorder %s97, 0
      %s100 = sadd.s32 %s99, 1
      %s101 = scalar_select %p98, %s99, %s100
      %p104 = pneg %p98
      %p105 = scmp.eq.s32.totalorder %s11, 1
      %p106 = por %p104, %p105
      %p107 = scmp.ne.s32.totalorder %s99, %s102
      %p108 = scmp.eq.s32.totalorder %s11, 0
      %p109 = por %p107, %p108
      %p110 = scmp.ne.s32.totalorder %s99, %s102
      %p111 = scmp.eq.s32.totalorder %s16, 1
      %p112 = por %p110, %p111
      %p113 = scmp.ne.s32.totalorder %s102, %s103
      %p114 = scmp.eq.s32.totalorder %s16, 0
      %p115 = por %p113, %p114
      %p116 = scmp.ne.s32.totalorder %s102, %s103
      %p117 = scmp.eq.s32.totalorder %s17, 1
      %p118 = por %p116, %p117
      %p120 = scmp.ne.s32.totalorder %s103, %s119
      %p121 = scmp.eq.s32.totalorder %s17, 0
      %p122 = por %p120, %p121
      %s124 = sadd.s32 %s123, 1
      %p127 = scmp.eq.s32.totalorder %s11, 1
      %p128 = scmp.ne.s32.totalorder %s123, %s125
      %p129 = scmp.eq.s32.totalorder %s11, 0
      %p130 = por %p128, %p129
      %p131 = scmp.ne.s32.totalorder %s123, %s125
      %p132 = scmp.eq.s32.totalorder %s16, 1
      %p133 = por %p131, %p132
      %p134 = scmp.ne.s32.totalorder %s125, %s126
      %p135 = scmp.eq.s32.totalorder %s16, 0
      %p136 = por %p134, %p135
      %p137 = scmp.ne.s32.totalorder %s125, %s126
      %p138 = scmp.eq.s32.totalorder %s17, 1
      %p139 = por %p137, %p138
      %p141 = scmp.ne.s32.totalorder %s126, %s140
      %p142 = scmp.eq.s32.totalorder %s17, 0
      %p143 = por %p141, %p142
      %p144 = scmp.le.s32.totalorder 1, %s11
      %p145 = scmp.lt.s32.totalorder %s11, 3
      %p146 = pnand %p144, %p145
      %p147 = pneg %p146
      // Predicated region
      $region9: #{lr_loss.10} parent=5 // pred_check
        _
      $region10: #{lr_loss.10} parent=5 // pred_check_branch
        %149 = sbr.rel (%p146) target = $region12
      $region11: #{lr_loss.10} parent=5 // pred_region
        %s150 = ssub.s32 %s11, 1
      $region12: #{lr_loss.10} parent=5 // pred_fallthru
        _
      %p151 = scmp.lt.s32.totalorder %s11, 2
      // Predicated region
      $region13: #{lr_loss.10} parent=5 // pred_check
        %p152 = pneg %p151
      $region14: #{lr_loss.10} parent=5 // pred_check_branch
        %154 = sbr.rel (%p152) target = $region16
      $region15: #{lr_loss.10} parent=5 // pred_region
        // Predicated region
        $region17: #{lr_loss.10} parent=15 // pred_check
          %p155 = pneg %p31
        $region18: #{lr_loss.10} parent=15 // pred_check_branch
          %157 = sbr.rel (%p155) target = $region20
        $region19: #{lr_loss.10} parent=15 // pred_region
          %p158 = scmp.lt.s32.totalorder %s11, 1
          %s159 = scalar_select %p158, %s11, 1
          %s160 = smul.addr %s159, 6
          %s161 = smul.addr %s160, 8
          %s162 = scalar_lea.vmem %s0, %s161
        $region20: #{lr_loss.10} parent=15 // pred_fallthru
          _
        // Predicated region
        $region21: #{lr_loss.10} parent=15 // pred_check
          %p163 = pneg %p57
        $region22: #{lr_loss.10} parent=15 // pred_check_branch
          %165 = sbr.rel (%p163) target = $region24
        $region23: #{lr_loss.10} parent=15 // pred_region
          %p166 = scmp.lt.s32.totalorder %s11, 1
          %s167 = scalar_select %p166, %s11, 1
          %s168 = smul.addr %s167, 6
          %s169 = smul.addr %s168, 8
          %s170 = scalar_lea.vmem %s1, %s169
        $region24: #{lr_loss.10} parent=15 // pred_fallthru
          _
        // Predicated region
        $region25: #{lr_loss.10} parent=15 // pred_check
          %p171 = pneg %p83
        $region26: #{lr_loss.10} parent=15 // pred_check_branch
          %173 = sbr.rel (%p171) target = $region28
        $region27: #{lr_loss.10} parent=15 // pred_region
          %p174 = scmp.lt.s32.totalorder %s11, 1
          %s175 = scalar_select %p174, %s11, 1
          %s176 = smul.addr %s175, 2
          %s177 = smul.addr %s176, 8
          %s178 = scalar_lea.vmem %s2, %s177
        $region28: #{lr_loss.10} parent=15 // pred_fallthru
          _
        // Predicated region
        $region29: #{lr_loss.10} parent=15 // pred_check
          %p179 = pneg %p109
        $region30: #{lr_loss.10} parent=15 // pred_check_branch
          %181 = sbr.rel (%p179) target = $region32
        $region31: #{lr_loss.10} parent=15 // pred_region
          %p182 = scmp.lt.s32.totalorder %s11, 1
          %s183 = scalar_select %p182, %s11, 1
          %s184 = smul.addr %s183, 2
          %s185 = smul.addr %s184, 8
          %s186 = scalar_lea.vmem %s3, %s185
        $region32: #{lr_loss.10} parent=15 // pred_fallthru
          _
      $region16: #{lr_loss.10} parent=5 // pred_fallthru
        _
      %p187 = scmp.le.s32.totalorder 1, %s11
      %p188 = scmp.lt.s32.totalorder %s11, 3
      %p189 = pnand %p187, %p188
      %p190 = pneg %p189
      // Predicated region
      $region33: #{lr_loss.10} parent=5 // pred_check
        _
      $region34: #{lr_loss.10} parent=5 // pred_check_branch
        %192 = sbr.rel (%p189) target = $region36
      $region35: #{lr_loss.10} parent=5 // pred_region
        %s193 = ssub.s32 %s11, 1
        %p194 = scmp.lt.s32.totalorder %s16, 1
        %s195 = scalar_select %p194, %s16, 1
        %s196 = smul.addr %s195, 6
        %s197 = smul.addr %s196, 8
        %s198 = scalar_lea.vmem %s0, %s197
        %p199 = pneg %p37
        %p200 = pneg %p34
        %p201 = scmp.lt.s32.totalorder %s16, 1
        %s202 = scalar_select %p201, %s16, 1
        %s203 = smul.addr %s202, 6
        %s204 = smul.addr %s203, 8
        %s205 = scalar_lea.vmem %s1, %s204
        %p206 = pneg %p63
        %p207 = pneg %p60
        %p208 = scmp.lt.s32.totalorder %s16, 1
        %s209 = scalar_select %p208, %s16, 1
        %s210 = smul.addr %s209, 2
        %s211 = smul.addr %s210, 8
        %s212 = scalar_lea.vmem %s2, %s211
        %p213 = pneg %p89
        %p214 = pneg %p86
        %p215 = scmp.lt.s32.totalorder %s16, 1
        %s216 = scalar_select %p215, %s16, 1
        %s217 = smul.addr %s216, 2
        %s218 = smul.addr %s217, 8
        %s219 = scalar_lea.vmem %s3, %s218
        %p220 = pneg %p115
        %p221 = pneg %p112
        %p222 = pneg %p136
        %p223 = pneg %p133
        %p224 = scmp.lt.s32.totalorder %s16, 1
        %s225 = scalar_select %p224, %s16, 1
        %s226 = smul.addr %s225, 6
        %s227 = smul.addr %s226, 8
        %s228 = scalar_lea.vmem %s0, %s227
        %p229 = scmp.lt.s32.totalorder %s16, 1
        %s230 = scalar_select %p229, %s16, 1
        %s231 = smul.addr %s230, 6
        %s232 = smul.addr %s231, 8
        %s233 = scalar_lea.vmem %s1, %s232
        %p234 = scmp.lt.s32.totalorder %s16, 1
        %s235 = scalar_select %p234, %s16, 1
        %s236 = smul.addr %s235, 2
        %s237 = smul.addr %s236, 8
        %s238 = scalar_lea.vmem %s2, %s237
        %p239 = scmp.lt.s32.totalorder %s16, 1
        %s240 = scalar_select %p239, %s16, 1
        %s241 = smul.addr %s240, 2
        %s242 = smul.addr %s241, 8
        %s243 = scalar_lea.vmem %s3, %s242
        %p244 = scmp.eq.s32.totalorder %s16, 0
        // Predicated region
        $region37: #{lr_loss.10} parent=35 // pred_check
          %p245 = pneg %p244
        $region38: #{lr_loss.10} parent=35 // pred_check_branch
          %247 = sbr.rel (%p245) target = $region40
        $region39: #{lr_loss.10} parent=35 // pred_region
          %s248 = scalar_lea.smem [#allocation2], 0
          %249 = sst [smem:[%s248]] 0.0
          %s250 = scalar_lea.smem [#allocation2], 1
          %251 = sst [smem:[%s250]] 0.0
          %s252 = scalar_lea.smem [#allocation2], 2
          %253 = sst [smem:[%s252]] 0.0
          %s254 = scalar_lea.smem [#allocation2], 3
          %255 = sst [smem:[%s254]] 0.0
        $region40: #{lr_loss.10} parent=35 // pred_fallthru
          _
        %v256 = vld [vmem:[%s228] sm:$0xff]
        %v257 = vld [vmem:[%s228 + $0x8] sm:$0xff]
        %v258 = vld [vmem:[%s228 + $0x10] sm:$0xff]
        %v259 = vld [vmem:[%s228 + $0x18] sm:$0xff]
        %v260 = vld [vmem:[%s228 + $0x20] sm:$0xff]
        %v261 = vld [vmem:[%s228 + $0x28] sm:$0xff]
        %v262 = vld [vmem:[%s233] sm:$0xff]
        %v263 = vld [vmem:[%s233 + $0x8] sm:$0xff]
        %v264 = vld [vmem:[%s233 + $0x10] sm:$0xff]
        %v265 = vld [vmem:[%s233 + $0x18] sm:$0xff]
        %v266 = vld [vmem:[%s233 + $0x20] sm:$0xff]
        %v267 = vld [vmem:[%s233 + $0x28] sm:$0xff]
        %v268 = vld [vmem:[%s238] sm:$0xff]
        %v269 = vld [vmem:[%s238 + $0x8] sm:$0xff]
        %v270 = vld [vmem:[%s243] sm:$0xff]
        %v271 = vld [vmem:[%s243 + $0x8] sm:$0xff]
        %v272 = vsub.f32 %v256, %v262
        %v273 = vsub.f32 %v257, %v263
        %v274 = vsub.f32 %v258, %v264
        %v275 = vsub.f32 %v259, %v265
        %v276 = vsub.f32 %v260, %v266
        %v277 = vsub.f32 %v261, %v267
        %v278 = vand.u32 2147483647, %v272
        %v279 = vand.u32 2147483647, %v273
        %v280 = vand.u32 2147483647, %v274
        %v281 = vand.u32 2147483647, %v275
        %v282 = vand.u32 2147483647, %v276
        %v283 = vand.u32 2147483647, %v277
        %vm284 = vcmask 130048
        %v285 = vsel %vm284, %v278, 0.0
        %v286 = vsel %vm284, %v279, 0.0
        %v287 = vadd.f32 %v285, %v286
        %v288 = vsel %vm284, %v280, 0.0
        %v289 = vadd.f32 %v287, %v288
        %v290 = vsel %vm284, %v281, 0.0
        %v291 = vadd.f32 %v289, %v290
        %v292 = vsel %vm284, %v282, 0.0
        %v293 = vadd.f32 %v291, %v292
        %v294 = vsel %vm284, %v283, 0.0
        %v295 = vadd.f32 %v293, %v294
        %296 = vadd.xlane.f32.xlu0 %v295
        %v297 = vpop.xlane.xlu0 %296
        %v298 = vrot.slane %v297, 4
        %v299 = vadd.f32 %v297, %v298
        %v300 = vrot.slane %v299, 2
        %v301 = vadd.f32 %v299, %v300
        %v302 = vrot.slane %v301, 1
        %v303 = vadd.f32 %v301, %v302
        %s304 = vtos %v303
        %v305 = vsub.f32 %v270, %v268
        %v306 = vsub.f32 %v271, %v269
        %v307 = vand.u32 2147483647, %v305
        %v308 = vand.u32 2147483647, %v306
        %v309 = vsel %vm284, %v307, 0.0
        %v310 = vsel %vm284, %v308, 0.0
        %v311 = vadd.f32 %v309, %v310
        %312 = vadd.xlane.f32.xlu0 %v311
        %v313 = vpop.xlane.xlu0 %312
        %v314 = vrot.slane %v313, 4
        %v315 = vadd.f32 %v313, %v314
        %v316 = vrot.slane %v315, 2
        %v317 = vadd.f32 %v315, %v316
        %v318 = vrot.slane %v317, 1
        %v319 = vadd.f32 %v317, %v318
        %s320 = vtos %v319
        %v321 = vmul.f32 %v256, 0.114
        %v322 = vmul.f32 %v257, 0.114
        %v323 = vmul.f32 %v258, 0.587
        %v324 = vmul.f32 %v259, 0.587
        %v325 = vadd.f32 %v321, %v323
        %v326 = vadd.f32 %v322, %v324
        %v327 = vmul.f32 %v260, 0.299
        %v328 = vmul.f32 %v261, 0.299
        %v329 = vadd.f32 %v325, %v327
        %v330 = vadd.f32 %v326, %v328
        %v331 = vmul.f32 %v262, 0.114
        %v332 = vmul.f32 %v263, 0.114
        %v333 = vmul.f32 %v264, 0.587
        %v334 = vmul.f32 %v265, 0.587
        %v335 = vadd.f32 %v331, %v333
        %v336 = vadd.f32 %v332, %v334
        %v337 = vmul.f32 %v266, 0.299
        %v338 = vmul.f32 %v267, 0.299
        %v339 = vadd.f32 %v335, %v337
        %v340 = vadd.f32 %v336, %v338
        %343 = vrot.lane.b32.xlu0 %v329, 127
        %v344 = vpop.permute.xlu0 %343
        %345 = vrot.lane.b32.xlu0 %v330, 127
        %v346 = vpop.permute.xlu0 %345
        %v349 = vadd.f32 %v329, %v344
        %v350 = vadd.f32 %v330, %v346
        %351 = vrot.lane.b32.xlu0 %v329, 126
        %v352 = vpop.permute.xlu0 %351
        %353 = vrot.lane.b32.xlu0 %v330, 126
        %v354 = vpop.permute.xlu0 %353
        %v357 = vadd.f32 %v349, %v352
        %v358 = vadd.f32 %v350, %v354
        %vm361 = vcmask 1046528
        %v362 = vrot.slane %v357, 1
        %v363 = vrot.slane %v358, 1
        %v364 = vsel %vm361, %v362, %v363
        %v367 = vadd.f32 %v357, %v364
        %v368 = vadd.f32 %v358, %v363
        %vm369 = vcmask 1045504
        %v370 = vrot.slane %v357, 2
        %v371 = vrot.slane %v358, 2
        %v372 = vsel %vm369, %v370, %v371
        %v375 = vadd.f32 %v367, %v372
        %v376 = vadd.f32 %v368, %v371
        %v377 = vmul.f32 %v375, 0.11111111
        %v378 = vmul.f32 %v376, 0.11111111
        %381 = vrot.lane.b32.xlu0 %v339, 127
        %v382 = vpop.permute.xlu0 %381
        %383 = vrot.lane.b32.xlu0 %v340, 127
        %v384 = vpop.permute.xlu0 %383
        %v387 = vadd.f32 %v339, %v382
        %v388 = vadd.f32 %v340, %v384
        %389 = vrot.lane.b32.xlu0 %v339, 126
        %v390 = vpop.permute.xlu0 %389
        %391 = vrot.lane.b32.xlu0 %v340, 126
        %v392 = vpop.permute.xlu0 %391
        %v395 = vadd.f32 %v387, %v390
        %v396 = vadd.f32 %v388, %v392
        %v399 = vrot.slane %v395, 1
        %v400 = vrot.slane %v396, 1
        %v401 = vsel %vm361, %v399, %v400
        %v404 = vadd.f32 %v395, %v401
        %v405 = vadd.f32 %v396, %v400
        %v406 = vrot.slane %v395, 2
        %v407 = vrot.slane %v396, 2
        %v408 = vsel %vm369, %v406, %v407
        %v411 = vadd.f32 %v404, %v408
        %v412 = vadd.f32 %v405, %v407
        %v413 = vmul.f32 %v411, 0.11111111
        %v414 = vmul.f32 %v412, 0.11111111
        %vm417 = vcmask 1040384
        %v418 = vrot.slane %v377, 7
        %v419 = vrot.slane %v378, 7
        %v420 = vsel %vm417, %v418, %v419
        %421 = vrot.lane.b32.xlu0 %v418, 1
        %v422 = vpop.permute.xlu0 %421
        %423 = vrot.lane.b32.xlu0 %v420, 1
        %v424 = vpop.permute.xlu0 %423
        %v427 = vsub.f32 %v329, %v422
        %v428 = vsub.f32 %v330, %v424
        %v431 = vrot.slane %v413, 7
        %v432 = vrot.slane %v414, 7
        %v433 = vsel %vm417, %v431, %v432
        %434 = vrot.lane.b32.xlu0 %v431, 1
        %v435 = vpop.permute.xlu0 %434
        %436 = vrot.lane.b32.xlu0 %v433, 1
        %v437 = vpop.permute.xlu0 %436
        %v440 = vsub.f32 %v339, %v435
        %v441 = vsub.f32 %v340, %v437
        %v442 = vmul.f32 %v427, %v427
        %v443 = vmul.f32 %v428, %v428
        %446 = vrot.lane.b32.xlu0 %v442, 127
        %v447 = vpop.permute.xlu0 %446
        %448 = vrot.lane.b32.xlu0 %v443, 127
        %v449 = vpop.permute.xlu0 %448
        %v452 = vadd.f32 %v442, %v447
        %v453 = vadd.f32 %v443, %v449
        %454 = vrot.lane.b32.xlu0 %v442, 126
        %v455 = vpop.permute.xlu0 %454
        %456 = vrot.lane.b32.xlu0 %v443, 126
        %v457 = vpop.permute.xlu0 %456
        %v460 = vadd.f32 %v452, %v455
        %v461 = vadd.f32 %v453, %v457
        %v464 = vrot.slane %v460, 1
        %v465 = vrot.slane %v461, 1
        %v466 = vsel %vm361, %v464, %v465
        %v469 = vadd.f32 %v460, %v466
        %v470 = vadd.f32 %v461, %v465
        %v471 = vrot.slane %v460, 2
        %v472 = vrot.slane %v461, 2
        %v473 = vsel %vm369, %v471, %v472
        %v476 = vadd.f32 %v469, %v473
        %v477 = vadd.f32 %v470, %v472
        %v478 = vmul.f32 %v476, 0.11111111
        %v479 = vmul.f32 %v477, 0.11111111
        %v480 = vmul.f32 %v440, %v440
        %v481 = vmul.f32 %v441, %v441
        %484 = vrot.lane.b32.xlu0 %v480, 127
        %v485 = vpop.permute.xlu0 %484
        %486 = vrot.lane.b32.xlu0 %v481, 127
        %v487 = vpop.permute.xlu0 %486
        %v490 = vadd.f32 %v480, %v485
        %v491 = vadd.f32 %v481, %v487
        %492 = vrot.lane.b32.xlu0 %v480, 126
        %v493 = vpop.permute.xlu0 %492
        %494 = vrot.lane.b32.xlu0 %v481, 126
        %v495 = vpop.permute.xlu0 %494
        %v498 = vadd.f32 %v490, %v493
        %v499 = vadd.f32 %v491, %v495
        %v502 = vrot.slane %v498, 1
        %v503 = vrot.slane %v499, 1
        %v504 = vsel %vm361, %v502, %v503
        %v507 = vadd.f32 %v498, %v504
        %v508 = vadd.f32 %v499, %v503
        %v509 = vrot.slane %v498, 2
        %v510 = vrot.slane %v499, 2
        %v511 = vsel %vm369, %v509, %v510
        %v514 = vadd.f32 %v507, %v511
        %v515 = vadd.f32 %v508, %v510
        %v516 = vmul.f32 %v514, 0.11111111
        %v517 = vmul.f32 %v515, 0.11111111
        %v518 = vmul.f32 %v427, %v440
        %v519 = vmul.f32 %v428, %v441
        %522 = vrot.lane.b32.xlu0 %v518, 127
        %v523 = vpop.permute.xlu0 %522
        %524 = vrot.lane.b32.xlu0 %v519, 127
        %v525 = vpop.permute.xlu0 %524
        %v528 = vadd.f32 %v518, %v523
        %v529 = vadd.f32 %v519, %v525
        %530 = vrot.lane.b32.xlu0 %v518, 126
        %v531 = vpop.permute.xlu0 %530
        %532 = vrot.lane.b32.xlu0 %v519, 126
        %v533 = vpop.permute.xlu0 %532
        %v536 = vadd.f32 %v528, %v531
        %v537 = vadd.f32 %v529, %v533
        %v540 = vrot.slane %v536, 1
        %v541 = vrot.slane %v537, 1
        %v542 = vsel %vm361, %v540, %v541
        %v545 = vadd.f32 %v536, %v542
        %v546 = vadd.f32 %v537, %v541
        %v547 = vrot.slane %v536, 2
        %v548 = vrot.slane %v537, 2
        %v549 = vsel %vm369, %v547, %v548
        %v552 = vadd.f32 %v545, %v549
        %v553 = vadd.f32 %v546, %v548
        %v554 = vmul.f32 %v552, 0.11111111
        %v555 = vmul.f32 %v553, 0.11111111
        %v556 = vmul.f32 %v377, 2.0
        %v557 = vmul.f32 %v378, 2.0
        %v558 = vmul.f32 %v556, %v413
        %v559 = vmul.f32 %v557, %v414
        %v560 = vadd.f32 %v558, 0.0001
        %v561 = vadd.f32 %v559, 0.0001
        %v562 = vmul.f32 %v554, 2.0
        %v563 = vmul.f32 %v555, 2.0
        %v564 = vadd.f32 %v562, 0.0009
        %v565 = vadd.f32 %v563, 0.0009
        %v566 = vmul.f32 %v560, %v564
        %v567 = vmul.f32 %v561, %v565
        %v568 = vmul.f32 %v377, %v377
        %v569 = vmul.f32 %v378, %v378
        %v570 = vmul.f32 %v413, %v413
        %v571 = vmul.f32 %v414, %v414
        %v572 = vadd.f32 %v568, %v570
        %v573 = vadd.f32 %v569, %v571
        %v574 = vadd.f32 %v572, 0.0001
        %v575 = vadd.f32 %v573, 0.0001
        %v576 = vadd.f32 %v478, %v516
        %v577 = vadd.f32 %v479, %v517
        %v578 = vadd.f32 %v576, 0.0009
        %v579 = vadd.f32 %v577, 0.0009
        %v580 = vmul.f32 %v574, %v578
        %v581 = vmul.f32 %v575, %v579
        %v582 = vrcp.pop %v580
        %v583 = vrcp.pop %v581
        %v584 = vmul.f32 %v566, %v582
        %v585 = vmul.f32 %v567, %v583
        %v586 = vsub.f32 1.0, %v584
        %v587 = vsub.f32 1.0, %v585
        %v588 = vmax.f32 %v586, 0.0
        %v589 = vmax.f32 %v587, 0.0
        %v590 = vmin.f32 %v588, 2.0
        %v591 = vmin.f32 %v589, 2.0
        %v594 = vrot.slane %v590, 1
        %v595 = vrot.slane %v591, 1
        %v596 = vsel %vm361, %v594, %v595
        %597 = vrot.lane.b32.xlu0 %v596, 127
        %v598 = vpop.permute.xlu0 %597
        %599 = vrot.lane.b32.xlu0 %v595, 127
        %v600 = vpop.permute.xlu0 %599
        %vm603 = vcmask 97280
        %v604 = vsel %vm603, %v598, 0.0
        %vm605 = vcmask 93184
        %v606 = vsel %vm605, %v600, 0.0
        %v607 = vadd.f32 %v604, %v606
        %608 = vadd.xlane.f32.xlu0 %v607
        %v609 = vpop.xlane.xlu0 %608
        %v610 = vrot.slane %v609, 4
        %v611 = vadd.f32 %v609, %v610
        %v612 = vrot.slane %v611, 2
        %v613 = vadd.f32 %v611, %v612
        %v614 = vrot.slane %v613, 1
        %v615 = vadd.f32 %v613, %v614
        %s616 = vtos %v615
        %619 = vrot.lane.b32.xlu0 %v268, 127
        %v620 = vpop.permute.xlu0 %619
        %621 = vrot.lane.b32.xlu0 %v269, 127
        %v622 = vpop.permute.xlu0 %621
        %v625 = vadd.f32 %v268, %v620
        %v626 = vadd.f32 %v269, %v622
        %627 = vrot.lane.b32.xlu0 %v268, 126
        %v628 = vpop.permute.xlu0 %627
        %629 = vrot.lane.b32.xlu0 %v269, 126
        %v630 = vpop.permute.xlu0 %629
        %v633 = vadd.f32 %v625, %v628
        %v634 = vadd.f32 %v626, %v630
        %v637 = vrot.slane %v633, 1
        %v638 = vrot.slane %v634, 1
        %v639 = vsel %vm361, %v637, %v638
        %v642 = vadd.f32 %v633, %v639
        %v643 = vadd.f32 %v634, %v638
        %v644 = vrot.slane %v633, 2
        %v645 = vrot.slane %v634, 2
        %v646 = vsel %vm369, %v644, %v645
        %v649 = vadd.f32 %v642, %v646
        %v650 = vadd.f32 %v643, %v645
        %v651 = vmul.f32 %v268, 9.0
        %v652 = vmul.f32 %v269, 9.0
        %v655 = vrot.slane %v651, 1
        %v656 = vrot.slane %v652, 1
        %v657 = vsel %vm361, %v655, %v656
        %658 = vrot.lane.b32.xlu0 %v657, 127
        %v659 = vpop.permute.xlu0 %658
        %660 = vrot.lane.b32.xlu0 %v656, 127
        %v661 = vpop.permute.xlu0 %660
        %v664 = vsub.f32 %v649, %v659
        %v665 = vsub.f32 %v650, %v661
        %v666 = vand.u32 2147483647, %v664
        %v667 = vand.u32 2147483647, %v665
        %v668 = vmul.f32 %v329, 9.0
        %v669 = vmul.f32 %v330, 9.0
        %v672 = vrot.slane %v668, 1
        %v673 = vrot.slane %v669, 1
        %v674 = vsel %vm361, %v672, %v673
        %675 = vrot.lane.b32.xlu0 %v674, 127
        %v676 = vpop.permute.xlu0 %675
        %677 = vrot.lane.b32.xlu0 %v673, 127
        %v678 = vpop.permute.xlu0 %677
        %v681 = vsub.f32 %v375, %v676
        %v682 = vsub.f32 %v376, %v678
        %v683 = vand.u32 2147483647, %v681
        %v684 = vand.u32 2147483647, %v682
        %v685 = vsub.f32 0.0, %v683
        %v686 = vsub.f32 0.0, %v684
        %v687 = vmul.f32 %v685, 1.442695
        %v688 = vpow.pop %v687
        %v689 = vmul.f32 %v686, 1.442695
        %v690 = vpow.pop %v689
        %v691 = vmul.f32 %v688, %v666
        %v692 = vmul.f32 %v690, %v667
        %vm693 = vcmask 113664
        %v694 = vsel %vm693, %v691, 0.0
        %vm695 = vcmask 111616
        %v696 = vsel %vm695, %v692, 0.0
        %v697 = vadd.f32 %v694, %v696
        %698 = vadd.xlane.f32.xlu0 %v697
        %v699 = vpop.xlane.xlu0 %698
        %v700 = vrot.slane %v699, 4
        %v701 = vadd.f32 %v699, %v700
        %v702 = vrot.slane %v701, 2
        %v703 = vadd.f32 %v701, %v702
        %v704 = vrot.slane %v703, 1
        %v705 = vadd.f32 %v703, %v704
        %s706 = vtos %v705
        %s707 = sld [smem:[#allocation2]]
        %s708 = sadd.f32 %s707, %s304
        %s709 = scalar_lea.smem [#allocation2], 0
        %710 = sst [smem:[%s709]] %s708
        %s711 = sld [smem:[#allocation2 + $0x1]]
        %s712 = sadd.f32 %s711, %s616
        %s713 = scalar_lea.smem [#allocation2], 1
        %714 = sst [smem:[%s713]] %s712
        %s715 = sld [smem:[#allocation2 + $0x2]]
        %s716 = sadd.f32 %s715, %s706
        %s717 = scalar_lea.smem [#allocation2], 2
        %718 = sst [smem:[%s717]] %s716
        %s719 = sld [smem:[#allocation2 + $0x3]]
        %s720 = sadd.f32 %s719, %s320
        %s721 = scalar_lea.smem [#allocation2], 3
        %722 = sst [smem:[%s721]] %s720
        %p723 = scmp.eq.s32.totalorder %s16, 1
        // Predicated region
        $region41: #{lr_loss.10} parent=35 // pred_check
          %p724 = pneg %p723
        $region42: #{lr_loss.10} parent=35 // pred_check_branch
          %726 = sbr.rel (%p724) target = $region44
        $region43: #{lr_loss.10} parent=35 // pred_region
          %s727 = sld [smem:[#allocation2]]
          %s728 = smul.f32 %s727, 0.0006510417
          %729 = sst [smem:[%s709]] %s728
          %s730 = sld [smem:[#allocation2 + $0x1]]
          %s731 = smul.f32 %s730, 0.0034722222
          %732 = sst [smem:[%s713]] %s731
          %s733 = sld [smem:[#allocation2 + $0x2]]
          %s734 = smul.f32 %s733, 0.0025510204
          %735 = sst [smem:[%s717]] %s734
          %s736 = sld [smem:[#allocation2 + $0x3]]
          %s737 = smul.f32 %s736, 0.001953125
          %738 = sst [smem:[%s721]] %s737
        $region44: #{lr_loss.10} parent=35 // pred_fallthru
          _
        // Predicated region
        $region45: #{lr_loss.10} parent=35 // pred_check
          %p739 = pneg %p133
        $region46: #{lr_loss.10} parent=35 // pred_check_branch
          %741 = sbr.rel (%p739) target = $region48
        $region47: #{lr_loss.10} parent=35 // pred_region
          %743 = vsyncadd [#allocation3], 0
          %s745 = sshll.u32 %s4, 4
          %s746 = int_to_ptr.vmem [resolvable:$true] %s745
          %748 = dma.smem_to_vmem [#allocation2], 16, %s746, [#allocation3]
        $region48: #{lr_loss.10} parent=35 // pred_fallthru
          _
        // Predicated region
        $region49: #{lr_loss.10} parent=35 // pred_check
          %p749 = pneg %p133
        $region50: #{lr_loss.10} parent=35 // pred_check_branch
          %751 = sbr.rel (%p749) target = $region52
        $region51: #{lr_loss.10} parent=35 // pred_region
          %753 = dma.done [#allocation3], 16
        $region52: #{lr_loss.10} parent=35 // pred_fallthru
          _
        %754 = sfence
      $region36: #{lr_loss.10} parent=5 // pred_fallthru
        _
      %p755 = scmp.le.s32.totalorder 2, %s11
      // Predicated region
      $region53: #{lr_loss.10} parent=5 // pred_check
        %p756 = pneg %p755
      $region54: #{lr_loss.10} parent=5 // pred_check_branch
        %758 = sbr.rel (%p756) target = $region56
      $region55: #{lr_loss.10} parent=5 // pred_region
        %s759 = ssub.s32 %s11, 2
      $region56: #{lr_loss.10} parent=5 // pred_fallthru
        _
    $region6: #{lr_loss.10} parent=1 // loop_footer
      %s15 = sadd.s32 1, %s11
    $region7: #{lr_loss.10} parent=1 // loop_footer_branch
      %10 = sbr.rel target = $region3
    $region8: #{lr_loss.10} parent=1 // loop_exit
      _
    %760 = vsyncpa [#allocation3], 1
    %s761 = scalar_lea.sflag [#allocation3], 1
    %762 = vsyncpa %s761, 1

// kernel: lr_loss.9
$region0: #{lr_loss.9}
  #allocation0 [shape = 'u32[]', space=smem, size = 0x4, offset = 0x4, fixed_abs, tag = 'smem constant byte address 0x4 - core index']
  #allocation1 [shape = 'u32[72,128]{1,0:T(1,128)}', space=vmem, size = 0x9000, scoped, tag = 'internal scratch']
  %s0 = inlined_call_operand.vmem [shape: f32[1,2,18,18], index: 0, kind: input, shape index: {}]
  %s1 = inlined_call_operand.vmem [shape: f32[2,16,16], index: 1, kind: input, shape index: {}]
  %s2 = inlined_call_operand.vmem [shape: f32[2,1,16,16], index: 2, kind: output, shape index: {}]
  %s3 = sld [smem:[#allocation0]]
  $region41: #{lr_loss.9} parent=0
    _
  %s5 = ssub.s32 1, %s3
  %s6 = scalar_select 0, %s5, %s3
  loop: start=0, step=1, limit=4
  $region2: #{lr_loss.9} parent=0 // loop_pre_header
    _
  $region3: #{lr_loss.9} parent=0 // loop_header
    %s8 = sphi 0, %s12
    %p9 = scmp.ge.s32.totalorder %s8, 4
    %s15 = sphi 0, %s27
    %s16 = sphi 0, %s23
    %s17 = sphi 0, %s15
    %s18 = sphi 0, %s16
    %s19 = sphi 0, %s17
    %s20 = sphi 0, %s18
    %s30 = sphi 0, %s32
    %s33 = sphi 0, %s30
    %s34 = sphi 0, %s33
    %s50 = sphi 0, %s34
    %s58 = sphi 0, %s60
    %s61 = sphi 0, %s58
    %s62 = sphi 0, %s61
    %s78 = sphi 0, %s62
    %s86 = sphi 0, %s88
    %s89 = sphi 0, %s86
    %s90 = sphi 0, %s89
    %s106 = sphi 0, %s90
  $region4: #{lr_loss.9} parent=0 // loop_header_branch
    %11 = sbr.rel (%p9) target = $region8
  $region5: #{lr_loss.9} parent=0 // loop_body
    %s13 = ssub.s32 %s8, 1
    %s14 = ssub.s32 %s8, 2
    %s21 = sadd.s32 1, %s16
    %p22 = scmp.ge.s32.totalorder %s21, 1
    %s23 = scalar_select %p22, 0, %s21
    %s24 = sadd.s32 1, %s15
    %s25 = scalar_select %p22, %s24, %s15
    %p26 = scmp.ge.s32.totalorder %s25, 2
    %s27 = scalar_select %p26, 0, %s25
    %s28 = ssub.s32 %s15, %s27
    %p29 = scmp.eq.s32.totalorder %s28, 0
    %s31 = sadd.s32 %s30, 1
    %s32 = scalar_select %p29, %s30, %s31
    %p35 = pneg %p29
    %p36 = scmp.eq.s32.totalorder %s8, 1
    %p37 = por %p35, %p36
    %p38 = scmp.ne.s32.totalorder %s30, %s33
    %p39 = scmp.eq.s32.totalorder %s8, 0
    %p40 = por %p38, %p39
    %p41 = scmp.ne.s32.totalorder %s30, %s33
    %p42 = scmp.eq.s32.totalorder %s13, 1
    %p43 = por %p41, %p42
    %p44 = scmp.ne.s32.totalorder %s33, %s34
    %p45 = scmp.eq.s32.totalorder %s13, 0
    %p46 = por %p44, %p45
    %p47 = scmp.ne.s32.totalorder %s33, %s34
    %p48 = scmp.eq.s32.totalorder %s14, 1
    %p49 = por %p47, %p48
    %p51 = scmp.ne.s32.totalorder %s34, %s50
    %p52 = scmp.eq.s32.totalorder %s14, 0
    %p53 = por %p51, %p52
    %s54 = ssub.s32 %s15, %s27
    %s55 = ssub.s32 %s16, %s23
    %s56 = sor.u32 %s54, %s55
    %p57 = scmp.eq.s32.totalorder %s56, 0
    %s59 = sadd.s32 %s58, 1
    %s60 = scalar_select %p57, %s58, %s59
    %p63 = pneg %p57
    %p64 = scmp.eq.s32.totalorder %s8, 1
    %p65 = por %p63, %p64
    %p66 = scmp.ne.s32.totalorder %s58, %s61
    %p67 = scmp.eq.s32.totalorder %s8, 0
    %p68 = por %p66, %p67
    %p69 = scmp.ne.s32.totalorder %s58, %s61
    %p70 = scmp.eq.s32.totalorder %s13, 1
    %p71 = por %p69, %p70
    %p72 = scmp.ne.s32.totalorder %s61, %s62
    %p73 = scmp.eq.s32.totalorder %s13, 0
    %p74 = por %p72, %p73
    %p75 = scmp.ne.s32.totalorder %s61, %s62
    %p76 = scmp.eq.s32.totalorder %s14, 1
    %p77 = por %p75, %p76
    %p79 = scmp.ne.s32.totalorder %s62, %s78
    %p80 = scmp.eq.s32.totalorder %s14, 0
    %p81 = por %p79, %p80
    %s82 = ssub.s32 %s15, %s27
    %s83 = ssub.s32 %s16, %s23
    %s84 = sor.u32 %s82, %s83
    %p85 = scmp.eq.s32.totalorder %s84, 0
    %s87 = sadd.s32 %s86, 1
    %s88 = scalar_select %p85, %s86, %s87
    %p91 = pneg %p85
    %p92 = scmp.eq.s32.totalorder %s8, 1
    %p93 = por %p91, %p92
    %p94 = scmp.ne.s32.totalorder %s86, %s89
    %p95 = scmp.eq.s32.totalorder %s8, 0
    %p96 = por %p94, %p95
    %p97 = scmp.ne.s32.totalorder %s86, %s89
    %p98 = scmp.eq.s32.totalorder %s13, 1
    %p99 = por %p97, %p98
    %p100 = scmp.ne.s32.totalorder %s89, %s90
    %p101 = scmp.eq.s32.totalorder %s13, 0
    %p102 = por %p100, %p101
    %p103 = scmp.ne.s32.totalorder %s89, %s90
    %p104 = scmp.eq.s32.totalorder %s14, 1
    %p105 = por %p103, %p104
    %p107 = scmp.ne.s32.totalorder %s90, %s106
    %p108 = scmp.eq.s32.totalorder %s14, 0
    %p109 = por %p107, %p108
    %p110 = scmp.le.s32.totalorder 1, %s8
    %p111 = scmp.lt.s32.totalorder %s8, 3
    %p112 = pnand %p110, %p111
    %p113 = pneg %p112
    // Predicated region
    $region9: #{lr_loss.9} parent=5 // pred_check
      _
    $region10: #{lr_loss.9} parent=5 // pred_check_branch
      %115 = sbr.rel (%p112) target = $region12
    $region11: #{lr_loss.9} parent=5 // pred_region
      %s116 = ssub.s32 %s8, 1
    $region12: #{lr_loss.9} parent=5 // pred_fallthru
      _
    %p117 = scmp.lt.s32.totalorder %s8, 2
    // Predicated region
    $region13: #{lr_loss.9} parent=5 // pred_check
      %p118 = pneg %p117
    $region14: #{lr_loss.9} parent=5 // pred_check_branch
      %120 = sbr.rel (%p118) target = $region16
    $region15: #{lr_loss.9} parent=5 // pred_region
      // Predicated region
      $region17: #{lr_loss.9} parent=15 // pred_check
        %p121 = pneg %p40
      $region18: #{lr_loss.9} parent=15 // pred_check_branch
        %123 = sbr.rel (%p121) target = $region20
      $region19: #{lr_loss.9} parent=15 // pred_region
        %p124 = scmp.lt.s32.totalorder %s15, 1
        %s125 = scalar_select %p124, %s15, 1
        %s126 = smul.addr %s125, 3
        %s127 = smul.addr %s126, 8
        %s128 = scalar_lea.vmem %s0, %s127
      $region20: #{lr_loss.9} parent=15 // pred_fallthru
        _
      // Predicated region
      $region21: #{lr_loss.9} parent=15 // pred_check
        %p129 = pneg %p68
      $region22: #{lr_loss.9} parent=15 // pred_check_branch
        %131 = sbr.rel (%p129) target = $region24
      $region23: #{lr_loss.9} parent=15 // pred_region
        %s132 = smul.u32 2, %s16
        %p133 = scmp.lt.s32.totalorder %s15, 1
        %s134 = scalar_select %p133, %s15, 1
        %p135 = scmp.lt.s32.totalorder %s132, 1
        %s136 = scalar_select %p135, %s132, 1
        %s137 = smul.addr %s134, 2
        %s138 = sadd.s32 %s136, %s137
        %s139 = smul.addr %s138, 8
        %s140 = scalar_lea.vmem %s1, %s139
        %s141 = smul.u32 2, %s16
      $region24: #{lr_loss.9} parent=15 // pred_fallthru
        _
    $region16: #{lr_loss.9} parent=5 // pred_fallthru
      _
    %p142 = scmp.le.s32.totalorder 1, %s8
    %p143 = scmp.lt.s32.totalorder %s8, 3
    %p144 = pnand %p142, %p143
    %p145 = pneg %p144
    // Predicated region
    $region25: #{lr_loss.9} parent=5 // pred_check
      _
    $region26: #{lr_loss.9} parent=5 // pred_check_branch
      %147 = sbr.rel (%p144) target = $region28
    $region27: #{lr_loss.9} parent=5 // pred_region
      %s148 = ssub.s32 %s8, 1
      %p149 = scmp.lt.s32.totalorder %s17, 1
      %s150 = scalar_select %p149, %s17, 1
      %s151 = smul.addr %s150, 3
      %s152 = smul.addr %s151, 8
      %s153 = scalar_lea.vmem %s0, %s152
      %p154 = pneg %p46
      %p155 = pneg %p43
      %s156 = smul.u32 2, %s18
      %p157 = scmp.lt.s32.totalorder %s17, 1
      %s158 = scalar_select %p157, %s17, 1
      %p159 = scmp.lt.s32.totalorder %s156, 1
      %s160 = scalar_select %p159, %s156, 1
      %s161 = smul.addr %s158, 2
      %s162 = sadd.s32 %s160, %s161
      %s163 = smul.addr %s162, 8
      %s164 = scalar_lea.vmem %s1, %s163
      %p165 = pneg %p74
      %p166 = pneg %p71
      %p167 = pneg %p102
      %p168 = pneg %p99
      %s169 = smul.u32 2, %s18
      %p170 = scmp.lt.s32.totalorder %s17, 1
      %s171 = scalar_select %p170, %s17, 1
      %p172 = scmp.lt.s32.totalorder %s169, 1
      %s173 = scalar_select %p172, %s169, 1
      %s174 = smul.addr %s171, 2
      %s175 = sadd.s32 %s173, %s174
      %s176 = smul.addr %s175, 8
      %s177 = scalar_lea.vmem %s2, %s176
      %p178 = scmp.lt.s32.totalorder %s17, 1
      %s179 = scalar_select %p178, %s17, 1
      %s180 = smul.addr %s179, 3
      %s181 = smul.addr %s180, 8
      %s182 = scalar_lea.vmem %s0, %s181
      %s183 = smul.u32 2, %s18
      %p184 = scmp.lt.s32.totalorder %s17, 1
      %s185 = scalar_select %p184, %s17, 1
      %p186 = scmp.lt.s32.totalorder %s183, 1
      %s187 = scalar_select %p186, %s183, 1
      %s188 = smul.addr %s185, 2
      %s189 = sadd.s32 %s187, %s188
      %s190 = smul.addr %s189, 8
      %s191 = scalar_lea.vmem %s1, %s190
      %s192 = smul.u32 2, %s18
      %s193 = smul.u32 2, %s18
      %p194 = scmp.lt.s32.totalorder %s17, 1
      %s195 = scalar_select %p194, %s17, 1
      %p196 = scmp.lt.s32.totalorder %s193, 1
      %s197 = scalar_select %p196, %s193, 1
      %s198 = smul.addr %s195, 2
      %s199 = sadd.s32 %s197, %s198
      %s200 = smul.addr %s199, 8
      %s201 = scalar_lea.vmem %s2, %s200
      %s202 = smul.u32 2, %s18
      %v203 = vld [vmem:[%s191] sm:$0xff]
      %v204 = vld [vmem:[%s191 + $0x8] sm:$0xff]
      %v205 = vlaneseq
      %v206 = vand.u32 %v205, 127
      %v207 = vcvt.s32.f32 %v206
      %v208 = vadd.f32 %v207, 1.0
      %v209 = vadd.f32 %v208, %v203
      %v210 = vadd.f32 %v208, %v204
      %v211 = vmax.f32 %v209, 0.0
      %v212 = vmax.f32 %v210, 0.0
      %v213 = vmin.f32 %v211, 17.0
      %v214 = vmin.f32 %v212, 17.0
      %v215 = vfloor.f32 %v213
      %v216 = vfloor.f32 %v214
      %v217 = vadd.f32 %v215, 1.0
      %v218 = vadd.f32 %v216, 1.0
      %v219 = vmin.f32 %v217, 17.0
      %v220 = vmin.f32 %v218, 17.0
      %v221 = vsub.f32 %v219, %v213
      %v222 = vsub.f32 %v220, %v214
      %v223 = vperm.slane %v221, 0
      %v224 = vlaneseq
      %v225 = vshrl.u32 %v224, 7
      %227 = vset.pattern.permute.xlu0 %v225
      %228 = vperm.xlu0 %227, %v223
      %v229 = vpop.permute.xlu0 %228
      %v230 = vlaneseq
      %v231 = vshrl.u32 %v230, 7
      %v232 = vadd.s32 %v231, 8
      %233 = vset.pattern.permute.xlu0 %v232
      %234 = vperm.xlu0 %233, %v223
      %v235 = vpop.permute.xlu0 %234
      %v236 = vperm.slane %v221, 1
      %v237 = vlaneseq
      %v238 = vshrl.u32 %v237, 7
      %240 = vset.pattern.permute.xlu0 %v238
      %241 = vperm.xlu0 %240, %v236
      %v242 = vpop.permute.xlu0 %241
      %v243 = vlaneseq
      %v244 = vshrl.u32 %v243, 7
      %v245 = vadd.s32 %v244, 8
      %246 = vset.pattern.permute.xlu0 %v245
      %247 = vperm.xlu0 %246, %v236
      %v248 = vpop.permute.xlu0 %247
      %v249 = vperm.slane %v221, 2
      %v250 = vlaneseq
      %v251 = vshrl.u32 %v250, 7
      %253 = vset.pattern.permute.xlu0 %v251
      %254 = vperm.xlu0 %253, %v249
      %v255 = vpop.permute.xlu0 %254
      %v256 = vlaneseq
      %v257 = vshrl.u32 %v256, 7
      %v258 = vadd.s32 %v257, 8
      %259 = vset.pattern.permute.xlu0 %v258
      %260 = vperm.xlu0 %259, %v249
      %v261 = vpop.permute.xlu0 %260
      %v262 = vperm.slane %v221, 3
      %v263 = vlaneseq
      %v264 = vshrl.u32 %v263, 7
      %266 = vset.pattern.permute.xlu0 %v264
      %267 = vperm.xlu0 %266, %v262
      %v268 = vpop.permute.xlu0 %267
      %v269 = vlaneseq
      %v270 = vshrl.u32 %v269, 7
      %v271 = vadd.s32 %v270, 8
      %272 = vset.pattern.permute.xlu0 %v271
      %273 = vperm.xlu0 %272, %v262
      %v274 = vpop.permute.xlu0 %273
      %v275 = vperm.slane %v221, 4
      %v276 = vlaneseq
      %v277 = vshrl.u32 %v276, 7
      %279 = vset.pattern.permute.xlu0 %v277
      %280 = vperm.xlu0 %279, %v275
      %v281 = vpop.permute.xlu0 %280
      %v282 = vlaneseq
      %v283 = vshrl.u32 %v282, 7
      %v284 = vadd.s32 %v283, 8
      %285 = vset.pattern.permute.xlu0 %v284
      %286 = vperm.xlu0 %285, %v275
      %v287 = vpop.permute.xlu0 %286
      %v288 = vperm.slane %v221, 5
      %v289 = vlaneseq
      %v290 = vshrl.u32 %v289, 7
      %292 = vset.pattern.permute.xlu0 %v290
      %293 = vperm.xlu0 %292, %v288
      %v294 = vpop.permute.xlu0 %293
      %v295 = vlaneseq
      %v296 = vshrl.u32 %v295, 7
      %v297 = vadd.s32 %v296, 8
      %298 = vset.pattern.permute.xlu0 %v297
      %299 = vperm.xlu0 %298, %v288
      %v300 = vpop.permute.xlu0 %299
      %v301 = vperm.slane %v221, 6
      %v302 = vlaneseq
      %v303 = vshrl.u32 %v302, 7
      %305 = vset.pattern.permute.xlu0 %v303
      %306 = vperm.xlu0 %305, %v301
      %v307 = vpop.permute.xlu0 %306
      %v308 = vlaneseq
      %v309 = vshrl.u32 %v308, 7
      %v310 = vadd.s32 %v309, 8
      %311 = vset.pattern.permute.xlu0 %v310
      %312 = vperm.xlu0 %311, %v301
      %v313 = vpop.permute.xlu0 %312
      %v314 = vperm.slane %v221, 7
      %v315 = vlaneseq
      %v316 = vshrl.u32 %v315, 7
      %318 = vset.pattern.permute.xlu0 %v316
      %319 = vperm.xlu0 %318, %v314
      %v320 = vpop.permute.xlu0 %319
      %v321 = vlaneseq
      %v322 = vshrl.u32 %v321, 7
      %v323 = vadd.s32 %v322, 8
      %324 = vset.pattern.permute.xlu0 %v323
      %325 = vperm.xlu0 %324, %v314
      %v326 = vpop.permute.xlu0 %325
      %v327 = vperm.slane %v222, 0
      %v328 = vlaneseq
      %v329 = vshrl.u32 %v328, 7
      %331 = vset.pattern.permute.xlu0 %v329
      %332 = vperm.xlu0 %331, %v327
      %v333 = vpop.permute.xlu0 %332
      %v334 = vlaneseq
      %v335 = vshrl.u32 %v334, 7
      %v336 = vadd.s32 %v335, 8
      %337 = vset.pattern.permute.xlu0 %v336
      %338 = vperm.xlu0 %337, %v327
      %v339 = vpop.permute.xlu0 %338
      %v340 = vperm.slane %v222, 1
      %v341 = vlaneseq
      %v342 = vshrl.u32 %v341, 7
      %344 = vset.pattern.permute.xlu0 %v342
      %345 = vperm.xlu0 %344, %v340
      %v346 = vpop.permute.xlu0 %345
      %v347 = vlaneseq
      %v348 = vshrl.u32 %v347, 7
      %v349 = vadd.s32 %v348, 8
      %350 = vset.pattern.permute.xlu0 %v349
      %351 = vperm.xlu0 %350, %v340
      %v352 = vpop.permute.xlu0 %351
      %v353 = vperm.slane %v222, 2
      %v354 = vlaneseq
      %v355 = vshrl.u32 %v354, 7
      %357 = vset.pattern.permute.xlu0 %v355
      %358 = vperm.xlu0 %357, %v353
      %v359 = vpop.permute.xlu0 %358
      %v360 = vlaneseq
      %v361 = vshrl.u32 %v360, 7
      %v362 = vadd.s32 %v361, 8
      %363 = vset.pattern.permute.xlu0 %v362
      %364 = vperm.xlu0 %363, %v353
      %v365 = vpop.permute.xlu0 %364
      %v366 = vperm.slane %v222, 3
      %v367 = vlaneseq
      %v368 = vshrl.u32 %v367, 7
      %370 = vset.pattern.permute.xlu0 %v368
      %371 = vperm.xlu0 %370, %v366
      %v372 = vpop.permute.xlu0 %371
      %v373 = vlaneseq
      %v374 = vshrl.u32 %v373, 7
      %v375 = vadd.s32 %v374, 8
      %376 = vset.pattern.permute.xlu0 %v375
      %377 = vperm.xlu0 %376, %v366
      %v378 = vpop.permute.xlu0 %377
      %v379 = vperm.slane %v222, 4
      %v380 = vlaneseq
      %v381 = vshrl.u32 %v380, 7
      %383 = vset.pattern.permute.xlu0 %v381
      %384 = vperm.xlu0 %383, %v379
      %v385 = vpop.permute.xlu0 %384
      %v386 = vlaneseq
      %v387 = vshrl.u32 %v386, 7
      %v388 = vadd.s32 %v387, 8
      %389 = vset.pattern.permute.xlu0 %v388
      %390 = vperm.xlu0 %389, %v379
      %v391 = vpop.permute.xlu0 %390
      %v392 = vperm.slane %v222, 5
      %v393 = vlaneseq
      %v394 = vshrl.u32 %v393, 7
      %396 = vset.pattern.permute.xlu0 %v394
      %397 = vperm.xlu0 %396, %v392
      %v398 = vpop.permute.xlu0 %397
      %v399 = vlaneseq
      %v400 = vshrl.u32 %v399, 7
      %v401 = vadd.s32 %v400, 8
      %402 = vset.pattern.permute.xlu0 %v401
      %403 = vperm.xlu0 %402, %v392
      %v404 = vpop.permute.xlu0 %403
      %v405 = vperm.slane %v222, 6
      %v406 = vlaneseq
      %v407 = vshrl.u32 %v406, 7
      %409 = vset.pattern.permute.xlu0 %v407
      %410 = vperm.xlu0 %409, %v405
      %v411 = vpop.permute.xlu0 %410
      %v412 = vlaneseq
      %v413 = vshrl.u32 %v412, 7
      %v414 = vadd.s32 %v413, 8
      %415 = vset.pattern.permute.xlu0 %v414
      %416 = vperm.xlu0 %415, %v405
      %v417 = vpop.permute.xlu0 %416
      %v418 = vperm.slane %v222, 7
      %v419 = vlaneseq
      %v420 = vshrl.u32 %v419, 7
      %422 = vset.pattern.permute.xlu0 %v420
      %423 = vperm.xlu0 %422, %v418
      %v424 = vpop.permute.xlu0 %423
      %v425 = vlaneseq
      %v426 = vshrl.u32 %v425, 7
      %v427 = vadd.s32 %v426, 8
      %428 = vset.pattern.permute.xlu0 %v427
      %429 = vperm.xlu0 %428, %v418
      %v430 = vpop.permute.xlu0 %429
      %v431 = vsub.f32 %v213, %v215
      %v432 = vsub.f32 %v214, %v216
      %v433 = vperm.slane %v431, 0
      %v434 = vlaneseq
      %v435 = vshrl.u32 %v434, 7
      %437 = vset.pattern.permute.xlu0 %v435
      %438 = vperm.xlu0 %437, %v433
      %v439 = vpop.permute.xlu0 %438
      %v440 = vlaneseq
      %v441 = vshrl.u32 %v440, 7
      %v442 = vadd.s32 %v441, 8
      %443 = vset.pattern.permute.xlu0 %v442
      %444 = vperm.xlu0 %443, %v433
      %v445 = vpop.permute.xlu0 %444
      %v446 = vperm.slane %v431, 1
      %v447 = vlaneseq
      %v448 = vshrl.u32 %v447, 7
      %450 = vset.pattern.permute.xlu0 %v448
      %451 = vperm.xlu0 %450, %v446
      %v452 = vpop.permute.xlu0 %451
      %v453 = vlaneseq
      %v454 = vshrl.u32 %v453, 7
      %v455 = vadd.s32 %v454, 8
      %456 = vset.pattern.permute.xlu0 %v455
      %457 = vperm.xlu0 %456, %v446
      %v458 = vpop.permute.xlu0 %457
      %v459 = vperm.slane %v431, 2
      %v460 = vlaneseq
      %v461 = vshrl.u32 %v460, 7
      %463 = vset.pattern.permute.xlu0 %v461
      %464 = vperm.xlu0 %463, %v459
      %v465 = vpop.permute.xlu0 %464
      %v466 = vlaneseq
      %v467 = vshrl.u32 %v466, 7
      %v468 = vadd.s32 %v467, 8
      %469 = vset.pattern.permute.xlu0 %v468
      %470 = vperm.xlu0 %469, %v459
      %v471 = vpop.permute.xlu0 %470
      %v472 = vperm.slane %v431, 3
      %v473 = vlaneseq
      %v474 = vshrl.u32 %v473, 7
      %476 = vset.pattern.permute.xlu0 %v474
      %477 = vperm.xlu0 %476, %v472
      %v478 = vpop.permute.xlu0 %477
      %v479 = vlaneseq
      %v480 = vshrl.u32 %v479, 7
      %v481 = vadd.s32 %v480, 8
      %482 = vset.pattern.permute.xlu0 %v481
      %483 = vperm.xlu0 %482, %v472
      %v484 = vpop.permute.xlu0 %483
      %v485 = vperm.slane %v431, 4
      %v486 = vlaneseq
      %v487 = vshrl.u32 %v486, 7
      %489 = vset.pattern.permute.xlu0 %v487
      %490 = vperm.xlu0 %489, %v485
      %v491 = vpop.permute.xlu0 %490
      %v492 = vlaneseq
      %v493 = vshrl.u32 %v492, 7
      %v494 = vadd.s32 %v493, 8
      %495 = vset.pattern.permute.xlu0 %v494
      %496 = vperm.xlu0 %495, %v485
      %v497 = vpop.permute.xlu0 %496
      %v498 = vperm.slane %v431, 5
      %v499 = vlaneseq
      %v500 = vshrl.u32 %v499, 7
      %502 = vset.pattern.permute.xlu0 %v500
      %503 = vperm.xlu0 %502, %v498
      %v504 = vpop.permute.xlu0 %503
      %v505 = vlaneseq
      %v506 = vshrl.u32 %v505, 7
      %v507 = vadd.s32 %v506, 8
      %508 = vset.pattern.permute.xlu0 %v507
      %509 = vperm.xlu0 %508, %v498
      %v510 = vpop.permute.xlu0 %509
      %v511 = vperm.slane %v431, 6
      %v512 = vlaneseq
      %v513 = vshrl.u32 %v512, 7
      %515 = vset.pattern.permute.xlu0 %v513
      %516 = vperm.xlu0 %515, %v511
      %v517 = vpop.permute.xlu0 %516
      %v518 = vlaneseq
      %v519 = vshrl.u32 %v518, 7
      %v520 = vadd.s32 %v519, 8
      %521 = vset.pattern.permute.xlu0 %v520
      %522 = vperm.xlu0 %521, %v511
      %v523 = vpop.permute.xlu0 %522
      %v524 = vperm.slane %v431, 7
      %v525 = vlaneseq
      %v526 = vshrl.u32 %v525, 7
      %528 = vset.pattern.permute.xlu0 %v526
      %529 = vperm.xlu0 %528, %v524
      %v530 = vpop.permute.xlu0 %529
      %v531 = vlaneseq
      %v532 = vshrl.u32 %v531, 7
      %v533 = vadd.s32 %v532, 8
      %534 = vset.pattern.permute.xlu0 %v533
      %535 = vperm.xlu0 %534, %v524
      %v536 = vpop.permute.xlu0 %535
      %v537 = vperm.slane %v432, 0
      %v538 = vlaneseq
      %v539 = vshrl.u32 %v538, 7
      %541 = vset.pattern.permute.xlu0 %v539
      %542 = vperm.xlu0 %541, %v537
      %v543 = vpop.permute.xlu0 %542
      %v544 = vlaneseq
      %v545 = vshrl.u32 %v544, 7
      %v546 = vadd.s32 %v545, 8
      %547 = vset.pattern.permute.xlu0 %v546
      %548 = vperm.xlu0 %547, %v537
      %v549 = vpop.permute.xlu0 %548
      %v550 = vperm.slane %v432, 1
      %v551 = vlaneseq
      %v552 = vshrl.u32 %v551, 7
      %554 = vset.pattern.permute.xlu0 %v552
      %555 = vperm.xlu0 %554, %v550
      %v556 = vpop.permute.xlu0 %555
      %v557 = vlaneseq
      %v558 = vshrl.u32 %v557, 7
      %v559 = vadd.s32 %v558, 8
      %560 = vset.pattern.permute.xlu0 %v559
      %561 = vperm.xlu0 %560, %v550
      %v562 = vpop.permute.xlu0 %561
      %v563 = vperm.slane %v432, 2
      %v564 = vlaneseq
      %v565 = vshrl.u32 %v564, 7
      %567 = vset.pattern.permute.xlu0 %v565
      %568 = vperm.xlu0 %567, %v563
      %v569 = vpop.permute.xlu0 %568
      %v570 = vlaneseq
      %v571 = vshrl.u32 %v570, 7
      %v572 = vadd.s32 %v571, 8
      %573 = vset.pattern.permute.xlu0 %v572
      %574 = vperm.xlu0 %573, %v563
      %v575 = vpop.permute.xlu0 %574
      %v576 = vperm.slane %v432, 3
      %v577 = vlaneseq
      %v578 = vshrl.u32 %v577, 7
      %580 = vset.pattern.permute.xlu0 %v578
      %581 = vperm.xlu0 %580, %v576
      %v582 = vpop.permute.xlu0 %581
      %v583 = vlaneseq
      %v584 = vshrl.u32 %v583, 7
      %v585 = vadd.s32 %v584, 8
      %586 = vset.pattern.permute.xlu0 %v585
      %587 = vperm.xlu0 %586, %v576
      %v588 = vpop.permute.xlu0 %587
      %v589 = vperm.slane %v432, 4
      %v590 = vlaneseq
      %v591 = vshrl.u32 %v590, 7
      %593 = vset.pattern.permute.xlu0 %v591
      %594 = vperm.xlu0 %593, %v589
      %v595 = vpop.permute.xlu0 %594
      %v596 = vlaneseq
      %v597 = vshrl.u32 %v596, 7
      %v598 = vadd.s32 %v597, 8
      %599 = vset.pattern.permute.xlu0 %v598
      %600 = vperm.xlu0 %599, %v589
      %v601 = vpop.permute.xlu0 %600
      %v602 = vperm.slane %v432, 5
      %v603 = vlaneseq
      %v604 = vshrl.u32 %v603, 7
      %606 = vset.pattern.permute.xlu0 %v604
      %607 = vperm.xlu0 %606, %v602
      %v608 = vpop.permute.xlu0 %607
      %v609 = vlaneseq
      %v610 = vshrl.u32 %v609, 7
      %v611 = vadd.s32 %v610, 8
      %612 = vset.pattern.permute.xlu0 %v611
      %613 = vperm.xlu0 %612, %v602
      %v614 = vpop.permute.xlu0 %613
      %v615 = vperm.slane %v432, 6
      %v616 = vlaneseq
      %v617 = vshrl.u32 %v616, 7
      %619 = vset.pattern.permute.xlu0 %v617
      %620 = vperm.xlu0 %619, %v615
      %v621 = vpop.permute.xlu0 %620
      %v622 = vlaneseq
      %v623 = vshrl.u32 %v622, 7
      %v624 = vadd.s32 %v623, 8
      %625 = vset.pattern.permute.xlu0 %v624
      %626 = vperm.xlu0 %625, %v615
      %v627 = vpop.permute.xlu0 %626
      %v628 = vperm.slane %v432, 7
      %v629 = vlaneseq
      %v630 = vshrl.u32 %v629, 7
      %632 = vset.pattern.permute.xlu0 %v630
      %633 = vperm.xlu0 %632, %v628
      %v634 = vpop.permute.xlu0 %633
      %v635 = vlaneseq
      %v636 = vshrl.u32 %v635, 7
      %v637 = vadd.s32 %v636, 8
      %638 = vset.pattern.permute.xlu0 %v637
      %639 = vperm.xlu0 %638, %v628
      %v640 = vpop.permute.xlu0 %639
      %v641 = vperm.slane %v215, 0
      %v642 = vlaneseq
      %v643 = vshrl.u32 %v642, 7
      %645 = vset.pattern.permute.xlu0 %v643
      %646 = vperm.xlu0 %645, %v641
      %v647 = vpop.permute.xlu0 %646
      %v648 = vlaneseq
      %v649 = vshrl.u32 %v648, 7
      %v650 = vadd.s32 %v649, 8
      %651 = vset.pattern.permute.xlu0 %v650
      %652 = vperm.xlu0 %651, %v641
      %v653 = vpop.permute.xlu0 %652
      %v654 = vperm.slane %v215, 1
      %v655 = vlaneseq
      %v656 = vshrl.u32 %v655, 7
      %658 = vset.pattern.permute.xlu0 %v656
      %659 = vperm.xlu0 %658, %v654
      %v660 = vpop.permute.xlu0 %659
      %v661 = vlaneseq
      %v662 = vshrl.u32 %v661, 7
      %v663 = vadd.s32 %v662, 8
      %664 = vset.pattern.permute.xlu0 %v663
      %665 = vperm.xlu0 %664, %v654
      %v666 = vpop.permute.xlu0 %665
      %v667 = vperm.slane %v215, 2
      %v668 = vlaneseq
      %v669 = vshrl.u32 %v668, 7
      %671 = vset.pattern.permute.xlu0 %v669
      %672 = vperm.xlu0 %671, %v667
      %v673 = vpop.permute.xlu0 %672
      %v674 = vlaneseq
      %v675 = vshrl.u32 %v674, 7
      %v676 = vadd.s32 %v675, 8
      %677 = vset.pattern.permute.xlu0 %v676
      %678 = vperm.xlu0 %677, %v667
      %v679 = vpop.permute.xlu0 %678
      %v680 = vperm.slane %v215, 3
      %v681 = vlaneseq
      %v682 = vshrl.u32 %v681, 7
      %684 = vset.pattern.permute.xlu0 %v682
      %685 = vperm.xlu0 %684, %v680
      %v686 = vpop.permute.xlu0 %685
      %v687 = vlaneseq
      %v688 = vshrl.u32 %v687, 7
      %v689 = vadd.s32 %v688, 8
      %690 = vset.pattern.permute.xlu0 %v689
      %691 = vperm.xlu0 %690, %v680
      %v692 = vpop.permute.xlu0 %691
      %v693 = vperm.slane %v215, 4
      %v694 = vlaneseq
      %v695 = vshrl.u32 %v694, 7
      %697 = vset.pattern.permute.xlu0 %v695
      %698 = vperm.xlu0 %697, %v693
      %v699 = vpop.permute.xlu0 %698
      %v700 = vlaneseq
      %v701 = vshrl.u32 %v700, 7
      %v702 = vadd.s32 %v701, 8
      %703 = vset.pattern.permute.xlu0 %v702
      %704 = vperm.xlu0 %703, %v693
      %v705 = vpop.permute.xlu0 %704
      %v706 = vperm.slane %v215, 5
      %v707 = vlaneseq
      %v708 = vshrl.u32 %v707, 7
      %710 = vset.pattern.permute.xlu0 %v708
      %711 = vperm.xlu0 %710, %v706
      %v712 = vpop.permute.xlu0 %711
      %v713 = vlaneseq
      %v714 = vshrl.u32 %v713, 7
      %v715 = vadd.s32 %v714, 8
      %716 = vset.pattern.permute.xlu0 %v715
      %717 = vperm.xlu0 %716, %v706
      %v718 = vpop.permute.xlu0 %717
      %v719 = vperm.slane %v215, 6
      %v720 = vlaneseq
      %v721 = vshrl.u32 %v720, 7
      %723 = vset.pattern.permute.xlu0 %v721
      %724 = vperm.xlu0 %723, %v719
      %v725 = vpop.permute.xlu0 %724
      %v726 = vlaneseq
      %v727 = vshrl.u32 %v726, 7
      %v728 = vadd.s32 %v727, 8
      %729 = vset.pattern.permute.xlu0 %v728
      %730 = vperm.xlu0 %729, %v719
      %v731 = vpop.permute.xlu0 %730
      %v732 = vperm.slane %v215, 7
      %v733 = vlaneseq
      %v734 = vshrl.u32 %v733, 7
      %736 = vset.pattern.permute.xlu0 %v734
      %737 = vperm.xlu0 %736, %v732
      %v738 = vpop.permute.xlu0 %737
      %v739 = vlaneseq
      %v740 = vshrl.u32 %v739, 7
      %v741 = vadd.s32 %v740, 8
      %742 = vset.pattern.permute.xlu0 %v741
      %743 = vperm.xlu0 %742, %v732
      %v744 = vpop.permute.xlu0 %743
      %v745 = vperm.slane %v216, 0
      %v746 = vlaneseq
      %v747 = vshrl.u32 %v746, 7
      %749 = vset.pattern.permute.xlu0 %v747
      %750 = vperm.xlu0 %749, %v745
      %v751 = vpop.permute.xlu0 %750
      %v752 = vlaneseq
      %v753 = vshrl.u32 %v752, 7
      %v754 = vadd.s32 %v753, 8
      %755 = vset.pattern.permute.xlu0 %v754
      %756 = vperm.xlu0 %755, %v745
      %v757 = vpop.permute.xlu0 %756
      %v758 = vperm.slane %v216, 1
      %v759 = vlaneseq
      %v760 = vshrl.u32 %v759, 7
      %762 = vset.pattern.permute.xlu0 %v760
      %763 = vperm.xlu0 %762, %v758
      %v764 = vpop.permute.xlu0 %763
      %v765 = vlaneseq
      %v766 = vshrl.u32 %v765, 7
      %v767 = vadd.s32 %v766, 8
      %768 = vset.pattern.permute.xlu0 %v767
      %769 = vperm.xlu0 %768, %v758
      %v770 = vpop.permute.xlu0 %769
      %v771 = vperm.slane %v216, 2
      %v772 = vlaneseq
      %v773 = vshrl.u32 %v772, 7
      %775 = vset.pattern.permute.xlu0 %v773
      %776 = vperm.xlu0 %775, %v771
      %v777 = vpop.permute.xlu0 %776
      %v778 = vlaneseq
      %v779 = vshrl.u32 %v778, 7
      %v780 = vadd.s32 %v779, 8
      %781 = vset.pattern.permute.xlu0 %v780
      %782 = vperm.xlu0 %781, %v771
      %v783 = vpop.permute.xlu0 %782
      %v784 = vperm.slane %v216, 3
      %v785 = vlaneseq
      %v786 = vshrl.u32 %v785, 7
      %788 = vset.pattern.permute.xlu0 %v786
      %789 = vperm.xlu0 %788, %v784
      %v790 = vpop.permute.xlu0 %789
      %v791 = vlaneseq
      %v792 = vshrl.u32 %v791, 7
      %v793 = vadd.s32 %v792, 8
      %794 = vset.pattern.permute.xlu0 %v793
      %795 = vperm.xlu0 %794, %v784
      %v796 = vpop.permute.xlu0 %795
      %v797 = vperm.slane %v216, 4
      %v798 = vlaneseq
      %v799 = vshrl.u32 %v798, 7
      %801 = vset.pattern.permute.xlu0 %v799
      %802 = vperm.xlu0 %801, %v797
      %v803 = vpop.permute.xlu0 %802
      %v804 = vlaneseq
      %v805 = vshrl.u32 %v804, 7
      %v806 = vadd.s32 %v805, 8
      %807 = vset.pattern.permute.xlu0 %v806
      %808 = vperm.xlu0 %807, %v797
      %v809 = vpop.permute.xlu0 %808
      %v810 = vperm.slane %v216, 5
      %v811 = vlaneseq
      %v812 = vshrl.u32 %v811, 7
      %814 = vset.pattern.permute.xlu0 %v812
      %815 = vperm.xlu0 %814, %v810
      %v816 = vpop.permute.xlu0 %815
      %v817 = vlaneseq
      %v818 = vshrl.u32 %v817, 7
      %v819 = vadd.s32 %v818, 8
      %820 = vset.pattern.permute.xlu0 %v819
      %821 = vperm.xlu0 %820, %v810
      %v822 = vpop.permute.xlu0 %821
      %v823 = vperm.slane %v216, 6
      %v824 = vlaneseq
      %v825 = vshrl.u32 %v824, 7
      %827 = vset.pattern.permute.xlu0 %v825
      %828 = vperm.xlu0 %827, %v823
      %v829 = vpop.permute.xlu0 %828
      %v830 = vlaneseq
      %v831 = vshrl.u32 %v830, 7
      %v832 = vadd.s32 %v831, 8
      %833 = vset.pattern.permute.xlu0 %v832
      %834 = vperm.xlu0 %833, %v823
      %v835 = vpop.permute.xlu0 %834
      %v836 = vperm.slane %v216, 7
      %v837 = vlaneseq
      %v838 = vshrl.u32 %v837, 7
      %840 = vset.pattern.permute.xlu0 %v838
      %841 = vperm.xlu0 %840, %v836
      %v842 = vpop.permute.xlu0 %841
      %v843 = vlaneseq
      %v844 = vshrl.u32 %v843, 7
      %v845 = vadd.s32 %v844, 8
      %846 = vset.pattern.permute.xlu0 %v845
      %847 = vperm.xlu0 %846, %v836
      %v848 = vpop.permute.xlu0 %847
      %v849 = vperm.slane %v219, 0
      %v850 = vlaneseq
      %v851 = vshrl.u32 %v850, 7
      %853 = vset.pattern.permute.xlu0 %v851
      %854 = vperm.xlu0 %853, %v849
      %v855 = vpop.permute.xlu0 %854
      %v856 = vlaneseq
      %v857 = vshrl.u32 %v856, 7
      %v858 = vadd.s32 %v857, 8
      %859 = vset.pattern.permute.xlu0 %v858
      %860 = vperm.xlu0 %859, %v849
      %v861 = vpop.permute.xlu0 %860
      %v862 = vperm.slane %v219, 1
      %v863 = vlaneseq
      %v864 = vshrl.u32 %v863, 7
      %866 = vset.pattern.permute.xlu0 %v864
      %867 = vperm.xlu0 %866, %v862
      %v868 = vpop.permute.xlu0 %867
      %v869 = vlaneseq
      %v870 = vshrl.u32 %v869, 7
      %v871 = vadd.s32 %v870, 8
      %872 = vset.pattern.permute.xlu0 %v871
      %873 = vperm.xlu0 %872, %v862
      %v874 = vpop.permute.xlu0 %873
      %v875 = vperm.slane %v219, 2
      %v876 = vlaneseq
      %v877 = vshrl.u32 %v876, 7
      %879 = vset.pattern.permute.xlu0 %v877
      %880 = vperm.xlu0 %879, %v875
      %v881 = vpop.permute.xlu0 %880
      %v882 = vlaneseq
      %v883 = vshrl.u32 %v882, 7
      %v884 = vadd.s32 %v883, 8
      %885 = vset.pattern.permute.xlu0 %v884
      %886 = vperm.xlu0 %885, %v875
      %v887 = vpop.permute.xlu0 %886
      %v888 = vperm.slane %v219, 3
      %v889 = vlaneseq
      %v890 = vshrl.u32 %v889, 7
      %892 = vset.pattern.permute.xlu0 %v890
      %893 = vperm.xlu0 %892, %v888
      %v894 = vpop.permute.xlu0 %893
      %v895 = vlaneseq
      %v896 = vshrl.u32 %v895, 7
      %v897 = vadd.s32 %v896, 8
      %898 = vset.pattern.permute.xlu0 %v897
      %899 = vperm.xlu0 %898, %v888
      %v900 = vpop.permute.xlu0 %899
      %v901 = vperm.slane %v219, 4
      %v902 = vlaneseq
      %v903 = vshrl.u32 %v902, 7
      %905 = vset.pattern.permute.xlu0 %v903
      %906 = vperm.xlu0 %905, %v901
      %v907 = vpop.permute.xlu0 %906
      %v908 = vlaneseq
      %v909 = vshrl.u32 %v908, 7
      %v910 = vadd.s32 %v909, 8
      %911 = vset.pattern.permute.xlu0 %v910
      %912 = vperm.xlu0 %911, %v901
      %v913 = vpop.permute.xlu0 %912
      %v914 = vperm.slane %v219, 5
      %v915 = vlaneseq
      %v916 = vshrl.u32 %v915, 7
      %918 = vset.pattern.permute.xlu0 %v916
      %919 = vperm.xlu0 %918, %v914
      %v920 = vpop.permute.xlu0 %919
      %v921 = vlaneseq
      %v922 = vshrl.u32 %v921, 7
      %v923 = vadd.s32 %v922, 8
      %924 = vset.pattern.permute.xlu0 %v923
      %925 = vperm.xlu0 %924, %v914
      %v926 = vpop.permute.xlu0 %925
      %v927 = vperm.slane %v219, 6
      %v928 = vlaneseq
      %v929 = vshrl.u32 %v928, 7
      %931 = vset.pattern.permute.xlu0 %v929
      %932 = vperm.xlu0 %931, %v927
      %v933 = vpop.permute.xlu0 %932
      %v934 = vlaneseq
      %v935 = vshrl.u32 %v934, 7
      %v936 = vadd.s32 %v935, 8
      %937 = vset.pattern.permute.xlu0 %v936
      %938 = vperm.xlu0 %937, %v927
      %v939 = vpop.permute.xlu0 %938
      %v940 = vperm.slane %v219, 7
      %v941 = vlaneseq
      %v942 = vshrl.u32 %v941, 7
      %944 = vset.pattern.permute.xlu0 %v942
      %945 = vperm.xlu0 %944, %v940
      %v946 = vpop.permute.xlu0 %945
      %v947 = vlaneseq
      %v948 = vshrl.u32 %v947, 7
      %v949 = vadd.s32 %v948, 8
      %950 = vset.pattern.permute.xlu0 %v949
      %951 = vperm.xlu0 %950, %v940
      %v952 = vpop.permute.xlu0 %951
      %v953 = vperm.slane %v220, 0
      %v954 = vlaneseq
      %v955 = vshrl.u32 %v954, 7
      %957 = vset.pattern.permute.xlu0 %v955
      %958 = vperm.xlu0 %957, %v953
      %v959 = vpop.permute.xlu0 %958
      %v960 = vlaneseq
      %v961 = vshrl.u32 %v960, 7
      %v962 = vadd.s32 %v961, 8
      %963 = vset.pattern.permute.xlu0 %v962
      %964 = vperm.xlu0 %963, %v953
      %v965 = vpop.permute.xlu0 %964
      %v966 = vperm.slane %v220, 1
      %v967 = vlaneseq
      %v968 = vshrl.u32 %v967, 7
      %970 = vset.pattern.permute.xlu0 %v968
      %971 = vperm.xlu0 %970, %v966
      %v972 = vpop.permute.xlu0 %971
      %v973 = vlaneseq
      %v974 = vshrl.u32 %v973, 7
      %v975 = vadd.s32 %v974, 8
      %976 = vset.pattern.permute.xlu0 %v975
      %977 = vperm.xlu0 %976, %v966
      %v978 = vpop.permute.xlu0 %977
      %v979 = vperm.slane %v220, 2
      %v980 = vlaneseq
      %v981 = vshrl.u32 %v980, 7
      %983 = vset.pattern.permute.xlu0 %v981
      %984 = vperm.xlu0 %983, %v979
      %v985 = vpop.permute.xlu0 %984
      %v986 = vlaneseq
      %v987 = vshrl.u32 %v986, 7
      %v988 = vadd.s32 %v987, 8
      %989 = vset.pattern.permute.xlu0 %v988
      %990 = vperm.xlu0 %989, %v979
      %v991 = vpop.permute.xlu0 %990
      %v992 = vperm.slane %v220, 3
      %v993 = vlaneseq
      %v994 = vshrl.u32 %v993, 7
      %996 = vset.pattern.permute.xlu0 %v994
      %997 = vperm.xlu0 %996, %v992
      %v998 = vpop.permute.xlu0 %997
      %v999 = vlaneseq
      %v1000 = vshrl.u32 %v999, 7
      %v1001 = vadd.s32 %v1000, 8
      %1002 = vset.pattern.permute.xlu0 %v1001
      %1003 = vperm.xlu0 %1002, %v992
      %v1004 = vpop.permute.xlu0 %1003
      %v1005 = vperm.slane %v220, 4
      %v1006 = vlaneseq
      %v1007 = vshrl.u32 %v1006, 7
      %1009 = vset.pattern.permute.xlu0 %v1007
      %1010 = vperm.xlu0 %1009, %v1005
      %v1011 = vpop.permute.xlu0 %1010
      %v1012 = vlaneseq
      %v1013 = vshrl.u32 %v1012, 7
      %v1014 = vadd.s32 %v1013, 8
      %1015 = vset.pattern.permute.xlu0 %v1014
      %1016 = vperm.xlu0 %1015, %v1005
      %v1017 = vpop.permute.xlu0 %1016
      %v1018 = vperm.slane %v220, 5
      %v1019 = vlaneseq
      %v1020 = vshrl.u32 %v1019, 7
      %1022 = vset.pattern.permute.xlu0 %v1020
      %1023 = vperm.xlu0 %1022, %v1018
      %v1024 = vpop.permute.xlu0 %1023
      %v1025 = vlaneseq
      %v1026 = vshrl.u32 %v1025, 7
      %v1027 = vadd.s32 %v1026, 8
      %1028 = vset.pattern.permute.xlu0 %v1027
      %1029 = vperm.xlu0 %1028, %v1018
      %v1030 = vpop.permute.xlu0 %1029
      %v1031 = vperm.slane %v220, 6
      %v1032 = vlaneseq
      %v1033 = vshrl.u32 %v1032, 7
      %1035 = vset.pattern.permute.xlu0 %v1033
      %1036 = vperm.xlu0 %1035, %v1031
      %v1037 = vpop.permute.xlu0 %1036
      %v1038 = vlaneseq
      %v1039 = vshrl.u32 %v1038, 7
      %v1040 = vadd.s32 %v1039, 8
      %1041 = vset.pattern.permute.xlu0 %v1040
      %1042 = vperm.xlu0 %1041, %v1031
      %v1043 = vpop.permute.xlu0 %1042
      %v1044 = vperm.slane %v220, 7
      %v1045 = vlaneseq
      %v1046 = vshrl.u32 %v1045, 7
      %1048 = vset.pattern.permute.xlu0 %v1046
      %1049 = vperm.xlu0 %1048, %v1044
      %v1050 = vpop.permute.xlu0 %1049
      %v1051 = vlaneseq
      %v1052 = vshrl.u32 %v1051, 7
      %v1053 = vadd.s32 %v1052, 8
      %1054 = vset.pattern.permute.xlu0 %v1053
      %1055 = vperm.xlu0 %1054, %v1044
      %v1056 = vpop.permute.xlu0 %1055
      %s1057 = smul.u32 %s18, 16
      %s1058 = sadd.s32 %s1057, 1
      %s1059 = scalar_lea.vmem %s182, %s1058
      %v1060 = vld [vmem:[%s1059] sm:$0xff]
      %v1061 = vld [vmem:[%s1059 + $0x8] sm:$0xff]
      %vm1062 = vcmp.eq.f32.partialorder %v207, %v647
      %vm1063 = vcmp.eq.f32.partialorder %v207, %v653
      %vm1064 = vcmp.eq.f32.partialorder %v207, %v660
      %vm1065 = vcmp.eq.f32.partialorder %v207, %v666
      %vm1066 = vcmp.eq.f32.partialorder %v207, %v673
      %vm1067 = vcmp.eq.f32.partialorder %v207, %v679
      %vm1068 = vcmp.eq.f32.partialorder %v207, %v686
      %vm1069 = vcmp.eq.f32.partialorder %v207, %v692
      %vm1070 = vcmp.eq.f32.partialorder %v207, %v699
      %vm1071 = vcmp.eq.f32.partialorder %v207, %v705
      %vm1072 = vcmp.eq.f32.partialorder %v207, %v712
      %vm1073 = vcmp.eq.f32.partialorder %v207, %v718
      %vm1074 = vcmp.eq.f32.partialorder %v207, %v725
      %vm1075 = vcmp.eq.f32.partialorder %v207, %v731
      %vm1076 = vcmp.eq.f32.partialorder %v207, %v738
      %vm1077 = vcmp.eq.f32.partialorder %v207, %v744
      %vm1078 = vcmp.eq.f32.partialorder %v207, %v751
      %vm1079 = vcmp.eq.f32.partialorder %v207, %v757
      %vm1080 = vcmp.eq.f32.partialorder %v207, %v764
      %vm1081 = vcmp.eq.f32.partialorder %v207, %v770
      %vm1082 = vcmp.eq.f32.partialorder %v207, %v777
      %vm1083 = vcmp.eq.f32.partialorder %v207, %v783
      %vm1084 = vcmp.eq.f32.partialorder %v207, %v790
      %vm1085 = vcmp.eq.f32.partialorder %v207, %v796
      %vm1086 = vcmp.eq.f32.partialorder %v207, %v803
      %vm1087 = vcmp.eq.f32.partialorder %v207, %v809
      %vm1088 = vcmp.eq.f32.partialorder %v207, %v816
      %vm1089 = vcmp.eq.f32.partialorder %v207, %v822
      %vm1090 = vcmp.eq.f32.partialorder %v207, %v829
      %vm1091 = vcmp.eq.f32.partialorder %v207, %v835
      %vm1092 = vcmp.eq.f32.partialorder %v207, %v842
      %vm1093 = vcmp.eq.f32.partialorder %v207, %v848
      %v1094 = vsel %vm1062, 1, 0
      %v1095 = vsel %vm1063, 1, 0
      %v1096 = vsel %vm1064, 1, 0
      %v1097 = vsel %vm1065, 1, 0
      %v1098 = vsel %vm1066, 1, 0
      %v1099 = vsel %vm1067, 1, 0
      %v1100 = vsel %vm1068, 1, 0
      %v1101 = vsel %vm1069, 1, 0
      %v1102 = vsel %vm1070, 1, 0
      %v1103 = vsel %vm1071, 1, 0
      %v1104 = vsel %vm1072, 1, 0
      %v1105 = vsel %vm1073, 1, 0
      %v1106 = vsel %vm1074, 1, 0
      %v1107 = vsel %vm1075, 1, 0
      %v1108 = vsel %vm1076, 1, 0
      %v1109 = vsel %vm1077, 1, 0
      %v1110 = vsel %vm1078, 1, 0
      %v1111 = vsel %vm1079, 1, 0
      %v1112 = vsel %vm1080, 1, 0
      %v1113 = vsel %vm1081, 1, 0
      %v1114 = vsel %vm1082, 1, 0
      %v1115 = vsel %vm1083, 1, 0
      %v1116 = vsel %vm1084, 1, 0
      %v1117 = vsel %vm1085, 1, 0
      %v1118 = vsel %vm1086, 1, 0
      %v1119 = vsel %vm1087, 1, 0
      %v1120 = vsel %vm1088, 1, 0
      %v1121 = vsel %vm1089, 1, 0
      %v1122 = vsel %vm1090, 1, 0
      %v1123 = vsel %vm1091, 1, 0
      %v1124 = vsel %vm1092, 1, 0
      %v1125 = vsel %vm1093, 1, 0
      %v1126 = vcvt.s32.f32 %v1094
      %v1127 = vcvt.s32.f32 %v1095
      %v1128 = vcvt.s32.f32 %v1096
      %v1129 = vcvt.s32.f32 %v1097
      %v1130 = vcvt.s32.f32 %v1098
      %v1131 = vcvt.s32.f32 %v1099
      %v1132 = vcvt.s32.f32 %v1100
      %v1133 = vcvt.s32.f32 %v1101
      %v1134 = vcvt.s32.f32 %v1102
      %v1135 = vcvt.s32.f32 %v1103
      %v1136 = vcvt.s32.f32 %v1104
      %v1137 = vcvt.s32.f32 %v1105
      %v1138 = vcvt.s32.f32 %v1106
      %v1139 = vcvt.s32.f32 %v1107
      %v1140 = vcvt.s32.f32 %v1108
      %v1141 = vcvt.s32.f32 %v1109
      %v1142 = vcvt.s32.f32 %v1110
      %v1143 = vcvt.s32.f32 %v1111
      %v1144 = vcvt.s32.f32 %v1112
      %v1145 = vcvt.s32.f32 %v1113
      %v1146 = vcvt.s32.f32 %v1114
      %v1147 = vcvt.s32.f32 %v1115
      %v1148 = vcvt.s32.f32 %v1116
      %v1149 = vcvt.s32.f32 %v1117
      %v1150 = vcvt.s32.f32 %v1118
      %v1151 = vcvt.s32.f32 %v1119
      %v1152 = vcvt.s32.f32 %v1120
      %v1153 = vcvt.s32.f32 %v1121
      %v1154 = vcvt.s32.f32 %v1122
      %v1155 = vcvt.s32.f32 %v1123
      %v1156 = vcvt.s32.f32 %v1124
      %v1157 = vcvt.s32.f32 %v1125
      %v1158 = vmul.f32 %v229, %v1126
      %v1159 = vmul.f32 %v235, %v1127
      %v1160 = vmul.f32 %v242, %v1128
      %v1161 = vmul.f32 %v248, %v1129
      %v1162 = vmul.f32 %v255, %v1130
      %v1163 = vmul.f32 %v261, %v1131
      %v1164 = vmul.f32 %v268, %v1132
      %v1165 = vmul.f32 %v274, %v1133
      %v1166 = vmul.f32 %v281, %v1134
      %v1167 = vmul.f32 %v287, %v1135
      %v1168 = vmul.f32 %v294, %v1136
      %v1169 = vmul.f32 %v300, %v1137
      %v1170 = vmul.f32 %v307, %v1138
      %v1171 = vmul.f32 %v313, %v1139
      %v1172 = vmul.f32 %v320, %v1140
      %v1173 = vmul.f32 %v326, %v1141
      %v1174 = vmul.f32 %v333, %v1142
      %v1175 = vmul.f32 %v339, %v1143
      %v1176 = vmul.f32 %v346, %v1144
      %v1177 = vmul.f32 %v352, %v1145
      %v1178 = vmul.f32 %v359, %v1146
      %v1179 = vmul.f32 %v365, %v1147
      %v1180 = vmul.f32 %v372, %v1148
      %v1181 = vmul.f32 %v378, %v1149
      %v1182 = vmul.f32 %v385, %v1150
      %v1183 = vmul.f32 %v391, %v1151
      %v1184 = vmul.f32 %v398, %v1152
      %v1185 = vmul.f32 %v404, %v1153
      %v1186 = vmul.f32 %v411, %v1154
      %v1187 = vmul.f32 %v417, %v1155
      %v1188 = vmul.f32 %v424, %v1156
      %v1189 = vmul.f32 %v430, %v1157
      %vm1190 = vcmp.eq.f32.partialorder %v207, %v855
      %vm1191 = vcmp.eq.f32.partialorder %v207, %v861
      %vm1192 = vcmp.eq.f32.partialorder %v207, %v868
      %vm1193 = vcmp.eq.f32.partialorder %v207, %v874
      %vm1194 = vcmp.eq.f32.partialorder %v207, %v881
      %vm1195 = vcmp.eq.f32.partialorder %v207, %v887
      %vm1196 = vcmp.eq.f32.partialorder %v207, %v894
      %vm1197 = vcmp.eq.f32.partialorder %v207, %v900
      %vm1198 = vcmp.eq.f32.partialorder %v207, %v907
      %vm1199 = vcmp.eq.f32.partialorder %v207, %v913
      %vm1200 = vcmp.eq.f32.partialorder %v207, %v920
      %vm1201 = vcmp.eq.f32.partialorder %v207, %v926
      %vm1202 = vcmp.eq.f32.partialorder %v207, %v933
      %vm1203 = vcmp.eq.f32.partialorder %v207, %v939
      %vm1204 = vcmp.eq.f32.partialorder %v207, %v946
      %vm1205 = vcmp.eq.f32.partialorder %v207, %v952
      %vm1206 = vcmp.eq.f32.partialorder %v207, %v959
      %vm1207 = vcmp.eq.f32.partialorder %v207, %v965
      %vm1208 = vcmp.eq.f32.partialorder %v207, %v972
      %vm1209 = vcmp.eq.f32.partialorder %v207, %v978
      %vm1210 = vcmp.eq.f32.partialorder %v207, %v985
      %vm1211 = vcmp.eq.f32.partialorder %v207, %v991
      %vm1212 = vcmp.eq.f32.partialorder %v207, %v998
      %vm1213 = vcmp.eq.f32.partialorder %v207, %v1004
      %vm1214 = vcmp.eq.f32.partialorder %v207, %v1011
      %vm1215 = vcmp.eq.f32.partialorder %v207, %v1017
      %vm1216 = vcmp.eq.f32.partialorder %v207, %v1024
      %vm1217 = vcmp.eq.f32.partialorder %v207, %v1030
      %vm1218 = vcmp.eq.f32.partialorder %v207, %v1037
      %vm1219 = vcmp.eq.f32.partialorder %v207, %v1043
      %vm1220 = vcmp.eq.f32.partialorder %v207, %v1050
      %vm1221 = vcmp.eq.f32.partialorder %v207, %v1056
      %v1222 = vsel %vm1190, 1, 0
      %v1223 = vsel %vm1191, 1, 0
      %v1224 = vsel %vm1192, 1, 0
      %v1225 = vsel %vm1193, 1, 0
      %v1226 = vsel %vm1194, 1, 0
      %v1227 = vsel %vm1195, 1, 0
      %v1228 = vsel %vm1196, 1, 0
      %v1229 = vsel %vm1197, 1, 0
      %v1230 = vsel %vm1198, 1, 0
      %v1231 = vsel %vm1199, 1, 0
      %v1232 = vsel %vm1200, 1, 0
      %v1233 = vsel %vm1201, 1, 0
      %v1234 = vsel %vm1202, 1, 0
      %v1235 = vsel %vm1203, 1, 0
      %v1236 = vsel %vm1204, 1, 0
      %v1237 = vsel %vm1205, 1, 0
      %v1238 = vsel %vm1206, 1, 0
      %v1239 = vsel %vm1207, 1, 0
      %v1240 = vsel %vm1208, 1, 0
      %v1241 = vsel %vm1209, 1, 0
      %v1242 = vsel %vm1210, 1, 0
      %v1243 = vsel %vm1211, 1, 0
      %v1244 = vsel %vm1212, 1, 0
      %v1245 = vsel %vm1213, 1, 0
      %v1246 = vsel %vm1214, 1, 0
      %v1247 = vsel %vm1215, 1, 0
      %v1248 = vsel %vm1216, 1, 0
      %v1249 = vsel %vm1217, 1, 0
      %v1250 = vsel %vm1218, 1, 0
      %v1251 = vsel %vm1219, 1, 0
      %v1252 = vsel %vm1220, 1, 0
      %v1253 = vsel %vm1221, 1, 0
      %v1254 = vcvt.s32.f32 %v1222
      %v1255 = vcvt.s32.f32 %v1223
      %v1256 = vcvt.s32.f32 %v1224
      %v1257 = vcvt.s32.f32 %v1225
      %v1258 = vcvt.s32.f32 %v1226
      %v1259 = vcvt.s32.f32 %v1227
      %v1260 = vcvt.s32.f32 %v1228
      %v1261 = vcvt.s32.f32 %v1229
      %v1262 = vcvt.s32.f32 %v1230
      %v1263 = vcvt.s32.f32 %v1231
      %v1264 = vcvt.s32.f32 %v1232
      %v1265 = vcvt.s32.f32 %v1233
      %v1266 = vcvt.s32.f32 %v1234
      %v1267 = vcvt.s32.f32 %v1235
      %v1268 = vcvt.s32.f32 %v1236
      %v1269 = vcvt.s32.f32 %v1237
      %v1270 = vcvt.s32.f32 %v1238
      %v1271 = vcvt.s32.f32 %v1239
      %v1272 = vcvt.s32.f32 %v1240
      %v1273 = vcvt.s32.f32 %v1241
      %v1274 = vcvt.s32.f32 %v1242
      %v1275 = vcvt.s32.f32 %v1243
      %v1276 = vcvt.s32.f32 %v1244
      %v1277 = vcvt.s32.f32 %v1245
      %v1278 = vcvt.s32.f32 %v1246
      %v1279 = vcvt.s32.f32 %v1247
      %v1280 = vcvt.s32.f32 %v1248
      %v1281 = vcvt.s32.f32 %v1249
      %v1282 = vcvt.s32.f32 %v1250
      %v1283 = vcvt.s32.f32 %v1251
      %v1284 = vcvt.s32.f32 %v1252
      %v1285 = vcvt.s32.f32 %v1253
      %v1286 = vmul.f32 %v439, %v1254
      %v1287 = vmul.f32 %v445, %v1255
      %v1288 = vmul.f32 %v452, %v1256
      %v1289 = vmul.f32 %v458, %v1257
      %v1290 = vmul.f32 %v465, %v1258
      %v1291 = vmul.f32 %v471, %v1259
      %v1292 = vmul.f32 %v478, %v1260
      %v1293 = vmul.f32 %v484, %v1261
      %v1294 = vmul.f32 %v491, %v1262
      %v1295 = vmul.f32 %v497, %v1263
      %v1296 = vmul.f32 %v504, %v1264
      %v1297 = vmul.f32 %v510, %v1265
      %v1298 = vmul.f32 %v517, %v1266
      %v1299 = vmul.f32 %v523, %v1267
      %v1300 = vmul.f32 %v530, %v1268
      %v1301 = vmul.f32 %v536, %v1269
      %v1302 = vmul.f32 %v543, %v1270
      %v1303 = vmul.f32 %v549, %v1271
      %v1304 = vmul.f32 %v556, %v1272
      %v1305 = vmul.f32 %v562, %v1273
      %v1306 = vmul.f32 %v569, %v1274
      %v1307 = vmul.f32 %v575, %v1275
      %v1308 = vmul.f32 %v582, %v1276
      %v1309 = vmul.f32 %v588, %v1277
      %v1310 = vmul.f32 %v595, %v1278
      %v1311 = vmul.f32 %v601, %v1279
      %v1312 = vmul.f32 %v608, %v1280
      %v1313 = vmul.f32 %v614, %v1281
      %v1314 = vmul.f32 %v621, %v1282
      %v1315 = vmul.f32 %v627, %v1283
      %v1316 = vmul.f32 %v634, %v1284
      %v1317 = vmul.f32 %v640, %v1285
      %v1318 = vadd.f32 %v1158, %v1286
      %v1319 = vadd.f32 %v1159, %v1287
      %v1320 = vadd.f32 %v1160, %v1288
      %v1321 = vadd.f32 %v1161, %v1289
      %v1322 = vadd.f32 %v1162, %v1290
      %v1323 = vadd.f32 %v1163, %v1291
      %v1324 = vadd.f32 %v1164, %v1292
      %v1325 = vadd.f32 %v1165, %v1293
      %v1326 = vadd.f32 %v1166, %v1294
      %v1327 = vadd.f32 %v1167, %v1295
      %v1328 = vadd.f32 %v1168, %v1296
      %v1329 = vadd.f32 %v1169, %v1297
      %v1330 = vadd.f32 %v1170, %v1298
      %v1331 = vadd.f32 %v1171, %v1299
      %v1332 = vadd.f32 %v1172, %v1300
      %v1333 = vadd.f32 %v1173, %v1301
      %v1334 = vadd.f32 %v1174, %v1302
      %v1335 = vadd.f32 %v1175, %v1303
      %v1336 = vadd.f32 %v1176, %v1304
      %v1337 = vadd.f32 %v1177, %v1305
      %v1338 = vadd.f32 %v1178, %v1306
      %v1339 = vadd.f32 %v1179, %v1307
      %v1340 = vadd.f32 %v1180, %v1308
      %v1341 = vadd.f32 %v1181, %v1309
      %v1342 = vadd.f32 %v1182, %v1310
      %v1343 = vadd.f32 %v1183, %v1311
      %v1344 = vadd.f32 %v1184, %v1312
      %v1345 = vadd.f32 %v1185, %v1313
      %v1346 = vadd.f32 %v1186, %v1314
      %v1347 = vadd.f32 %v1187, %v1315
      %v1348 = vadd.f32 %v1188, %v1316
      %v1349 = vadd.f32 %v1189, %v1317
      %v1352 = vrot.slane %v1060, 1
      %v1353 = vrot.slane %v1060, 2
      %v1354 = vrot.slane %v1060, 3
      %v1355 = vrot.slane %v1060, 4
      %v1356 = vrot.slane %v1060, 5
      %v1357 = vrot.slane %v1060, 6
      %v1358 = vrot.slane %v1060, 7
      %v1359 = vrot.slane %v1061, 1
      %v1360 = vrot.slane %v1061, 2
      %v1361 = vrot.slane %v1061, 3
      %v1362 = vrot.slane %v1061, 4
      %v1363 = vrot.slane %v1061, 5
      %v1364 = vrot.slane %v1061, 6
      %v1365 = vrot.slane %v1061, 7
      %v1366 = vperm.slane %v1060, 0
      %v1367 = vperm.slane %v1352, 0
      %v1368 = vperm.slane %v1353, 0
      %v1369 = vperm.slane %v1354, 0
      %v1370 = vperm.slane %v1355, 0
      %v1371 = vperm.slane %v1356, 0
      %v1372 = vperm.slane %v1357, 0
      %v1373 = vperm.slane %v1358, 0
      %v1374 = vperm.slane %v1061, 0
      %v1375 = vperm.slane %v1359, 0
      %v1376 = vperm.slane %v1360, 0
      %v1377 = vperm.slane %v1361, 0
      %v1378 = vperm.slane %v1362, 0
      %v1379 = vperm.slane %v1363, 0
      %v1380 = vperm.slane %v1364, 0
      %v1381 = vperm.slane %v1365, 0
      %v1398 = vmul.f32 %v1318, %v1366
      %v1399 = vmul.f32 %v1319, %v1366
      %v1400 = vmul.f32 %v1320, %v1367
      %v1401 = vmul.f32 %v1321, %v1367
      %v1402 = vmul.f32 %v1322, %v1368
      %v1403 = vmul.f32 %v1323, %v1368
      %v1404 = vmul.f32 %v1324, %v1369
      %v1405 = vmul.f32 %v1325, %v1369
      %v1406 = vmul.f32 %v1326, %v1370
      %v1407 = vmul.f32 %v1327, %v1370
      %v1408 = vmul.f32 %v1328, %v1371
      %v1409 = vmul.f32 %v1329, %v1371
      %v1410 = vmul.f32 %v1330, %v1372
      %v1411 = vmul.f32 %v1331, %v1372
      %v1412 = vmul.f32 %v1332, %v1373
      %v1413 = vmul.f32 %v1333, %v1373
      %v1414 = vmul.f32 %v1334, %v1374
      %v1415 = vmul.f32 %v1335, %v1374
      %v1416 = vmul.f32 %v1336, %v1375
      %v1417 = vmul.f32 %v1337, %v1375
      %v1418 = vmul.f32 %v1338, %v1376
      %v1419 = vmul.f32 %v1339, %v1376
      %v1420 = vmul.f32 %v1340, %v1377
      %v1421 = vmul.f32 %v1341, %v1377
      %v1422 = vmul.f32 %v1342, %v1378
      %v1423 = vmul.f32 %v1343, %v1378
      %v1424 = vmul.f32 %v1344, %v1379
      %v1425 = vmul.f32 %v1345, %v1379
      %v1426 = vmul.f32 %v1346, %v1380
      %v1427 = vmul.f32 %v1347, %v1380
      %v1428 = vmul.f32 %v1348, %v1381
      %v1429 = vmul.f32 %v1349, %v1381
      %vm1430 = vcmask 146432
      %v1431 = vsel %vm1430, %v1398, 0.0
      %1432 = vadd.xlane.f32.xlu0 %v1431
      %v1433 = vpop.xlane.xlu0 %1432
      %v1434 = vsel %vm1430, %v1399, 0.0
      %1435 = vadd.xlane.f32.xlu0 %v1434
      %v1436 = vpop.xlane.xlu0 %1435
      %v1437 = vsel %vm1430, %v1400, 0.0
      %1438 = vadd.xlane.f32.xlu0 %v1437
      %v1439 = vpop.xlane.xlu0 %1438
      %v1440 = vsel %vm1430, %v1401, 0.0
      %1441 = vadd.xlane.f32.xlu0 %v1440
      %v1442 = vpop.xlane.xlu0 %1441
      %v1443 = vsel %vm1430, %v1402, 0.0
      %1444 = vadd.xlane.f32.xlu0 %v1443
      %v1445 = vpop.xlane.xlu0 %1444
      %v1446 = vsel %vm1430, %v1403, 0.0
      %1447 = vadd.xlane.f32.xlu0 %v1446
      %v1448 = vpop.xlane.xlu0 %1447
      %v1449 = vsel %vm1430, %v1404, 0.0
      %1450 = vadd.xlane.f32.xlu0 %v1449
      %v1451 = vpop.xlane.xlu0 %1450
      %v1452 = vsel %vm1430, %v1405, 0.0
      %1453 = vadd.xlane.f32.xlu0 %v1452
      %v1454 = vpop.xlane.xlu0 %1453
      %v1455 = vsel %vm1430, %v1406, 0.0
      %1456 = vadd.xlane.f32.xlu0 %v1455
      %v1457 = vpop.xlane.xlu0 %1456
      %v1458 = vsel %vm1430, %v1407, 0.0
      %1459 = vadd.xlane.f32.xlu0 %v1458
      %v1460 = vpop.xlane.xlu0 %1459
      %v1461 = vsel %vm1430, %v1408, 0.0
      %1462 = vadd.xlane.f32.xlu0 %v1461
      %v1463 = vpop.xlane.xlu0 %1462
      %v1464 = vsel %vm1430, %v1409, 0.0
      %1465 = vadd.xlane.f32.xlu0 %v1464
      %v1466 = vpop.xlane.xlu0 %1465
      %v1467 = vsel %vm1430, %v1410, 0.0
      %1468 = vadd.xlane.f32.xlu0 %v1467
      %v1469 = vpop.xlane.xlu0 %1468
      %v1470 = vsel %vm1430, %v1411, 0.0
      %1471 = vadd.xlane.f32.xlu0 %v1470
      %v1472 = vpop.xlane.xlu0 %1471
      %v1473 = vsel %vm1430, %v1412, 0.0
      %1474 = vadd.xlane.f32.xlu0 %v1473
      %v1475 = vpop.xlane.xlu0 %1474
      %v1476 = vsel %vm1430, %v1413, 0.0
      %1477 = vadd.xlane.f32.xlu0 %v1476
      %v1478 = vpop.xlane.xlu0 %1477
      %v1479 = vsel %vm1430, %v1414, 0.0
      %1480 = vadd.xlane.f32.xlu0 %v1479
      %v1481 = vpop.xlane.xlu0 %1480
      %v1482 = vsel %vm1430, %v1415, 0.0
      %1483 = vadd.xlane.f32.xlu0 %v1482
      %v1484 = vpop.xlane.xlu0 %1483
      %v1485 = vsel %vm1430, %v1416, 0.0
      %1486 = vadd.xlane.f32.xlu0 %v1485
      %v1487 = vpop.xlane.xlu0 %1486
      %v1488 = vsel %vm1430, %v1417, 0.0
      %1489 = vadd.xlane.f32.xlu0 %v1488
      %v1490 = vpop.xlane.xlu0 %1489
      %v1491 = vsel %vm1430, %v1418, 0.0
      %1492 = vadd.xlane.f32.xlu0 %v1491
      %v1493 = vpop.xlane.xlu0 %1492
      %v1494 = vsel %vm1430, %v1419, 0.0
      %1495 = vadd.xlane.f32.xlu0 %v1494
      %v1496 = vpop.xlane.xlu0 %1495
      %v1497 = vsel %vm1430, %v1420, 0.0
      %1498 = vadd.xlane.f32.xlu0 %v1497
      %v1499 = vpop.xlane.xlu0 %1498
      %v1500 = vsel %vm1430, %v1421, 0.0
      %1501 = vadd.xlane.f32.xlu0 %v1500
      %v1502 = vpop.xlane.xlu0 %1501
      %v1503 = vsel %vm1430, %v1422, 0.0
      %1504 = vadd.xlane.f32.xlu0 %v1503
      %v1505 = vpop.xlane.xlu0 %1504
      %v1506 = vsel %vm1430, %v1423, 0.0
      %1507 = vadd.xlane.f32.xlu0 %v1506
      %v1508 = vpop.xlane.xlu0 %1507
      %v1509 = vsel %vm1430, %v1424, 0.0
      %1510 = vadd.xlane.f32.xlu0 %v1509
      %v1511 = vpop.xlane.xlu0 %1510
      %v1512 = vsel %vm1430, %v1425, 0.0
      %1513 = vadd.xlane.f32.xlu0 %v1512
      %v1514 = vpop.xlane.xlu0 %1513
      %v1515 = vsel %vm1430, %v1426, 0.0
      %1516 = vadd.xlane.f32.xlu0 %v1515
      %v1517 = vpop.xlane.xlu0 %1516
      %v1518 = vsel %vm1430, %v1427, 0.0
      %1519 = vadd.xlane.f32.xlu0 %v1518
      %v1520 = vpop.xlane.xlu0 %1519
      %v1521 = vsel %vm1430, %v1428, 0.0
      %1522 = vadd.xlane.f32.xlu0 %v1521
      %v1523 = vpop.xlane.xlu0 %1522
      %v1524 = vsel %vm1430, %v1429, 0.0
      %1525 = vadd.xlane.f32.xlu0 %v1524
      %v1526 = vpop.xlane.xlu0 %1525
      %v1527 = vadd.f32 %v1433, 0.0
      %v1528 = vadd.f32 %v1436, 0.0
      %v1529 = vadd.f32 %v1439, 0.0
      %v1530 = vadd.f32 %v1442, 0.0
      %v1531 = vadd.f32 %v1445, 0.0
      %v1532 = vadd.f32 %v1448, 0.0
      %v1533 = vadd.f32 %v1451, 0.0
      %v1534 = vadd.f32 %v1454, 0.0
      %v1535 = vadd.f32 %v1457, 0.0
      %v1536 = vadd.f32 %v1460, 0.0
      %v1537 = vadd.f32 %v1463, 0.0
      %v1538 = vadd.f32 %v1466, 0.0
      %v1539 = vadd.f32 %v1469, 0.0
      %v1540 = vadd.f32 %v1472, 0.0
      %v1541 = vadd.f32 %v1475, 0.0
      %v1542 = vadd.f32 %v1478, 0.0
      %v1543 = vadd.f32 %v1481, 0.0
      %v1544 = vadd.f32 %v1484, 0.0
      %v1545 = vadd.f32 %v1487, 0.0
      %v1546 = vadd.f32 %v1490, 0.0
      %v1547 = vadd.f32 %v1493, 0.0
      %v1548 = vadd.f32 %v1496, 0.0
      %v1549 = vadd.f32 %v1499, 0.0
      %v1550 = vadd.f32 %v1502, 0.0
      %v1551 = vadd.f32 %v1505, 0.0
      %v1552 = vadd.f32 %v1508, 0.0
      %v1553 = vadd.f32 %v1511, 0.0
      %v1554 = vadd.f32 %v1514, 0.0
      %v1555 = vadd.f32 %v1517, 0.0
      %v1556 = vadd.f32 %v1520, 0.0
      %v1557 = vadd.f32 %v1523, 0.0
      %v1558 = vadd.f32 %v1526, 0.0
      %v1591 = vperm.slane %v1527, %v206
      %v1592 = vadd.s32 %v206, 4294967288
      %v1593 = vperm.slane %v1528, %v1592
      %vm1594 = vcmask 130112
      %v1595 = vsel %vm1594, %v1593, %v1591
      %v1596 = vperm.slane %v1529, %v206
      %v1597 = vperm.slane %v1530, %v1592
      %v1598 = vsel %vm1594, %v1597, %v1596
      %v1599 = vperm.slane %v1531, %v206
      %v1600 = vperm.slane %v1532, %v1592
      %v1601 = vsel %vm1594, %v1600, %v1599
      %v1602 = vperm.slane %v1533, %v206
      %v1603 = vperm.slane %v1534, %v1592
      %v1604 = vsel %vm1594, %v1603, %v1602
      %v1605 = vperm.slane %v1535, %v206
      %v1606 = vperm.slane %v1536, %v1592
      %v1607 = vsel %vm1594, %v1606, %v1605
      %v1608 = vperm.slane %v1537, %v206
      %v1609 = vperm.slane %v1538, %v1592
      %v1610 = vsel %vm1594, %v1609, %v1608
      %v1611 = vperm.slane %v1539, %v206
      %v1612 = vperm.slane %v1540, %v1592
      %v1613 = vsel %vm1594, %v1612, %v1611
      %v1614 = vperm.slane %v1541, %v206
      %v1615 = vperm.slane %v1542, %v1592
      %v1616 = vsel %vm1594, %v1615, %v1614
      %v1617 = vperm.slane %v1543, %v206
      %v1618 = vperm.slane %v1544, %v1592
      %v1619 = vsel %vm1594, %v1618, %v1617
      %v1620 = vperm.slane %v1545, %v206
      %v1621 = vperm.slane %v1546, %v1592
      %v1622 = vsel %vm1594, %v1621, %v1620
      %v1623 = vperm.slane %v1547, %v206
      %v1624 = vperm.slane %v1548, %v1592
      %v1625 = vsel %vm1594, %v1624, %v1623
      %v1626 = vperm.slane %v1549, %v206
      %v1627 = vperm.slane %v1550, %v1592
      %v1628 = vsel %vm1594, %v1627, %v1626
      %v1629 = vperm.slane %v1551, %v206
      %v1630 = vperm.slane %v1552, %v1592
      %v1631 = vsel %vm1594, %v1630, %v1629
      %v1632 = vperm.slane %v1553, %v206
      %v1633 = vperm.slane %v1554, %v1592
      %v1634 = vsel %vm1594, %v1633, %v1632
      %v1635 = vperm.slane %v1555, %v206
      %v1636 = vperm.slane %v1556, %v1592
      %v1637 = vsel %vm1594, %v1636, %v1635
      %v1638 = vperm.slane %v1557, %v206
      %v1639 = vperm.slane %v1558, %v1592
      %v1640 = vsel %vm1594, %v1639, %v1638
      %vm1641 = vcmask 1041409
      %v1642 = vsel %vm1641, %v1598, %v1595
      %vm1643 = vcmask 1042434
      %v1644 = vsel %vm1643, %v1601, %v1642
      %vm1645 = vcmask 1043459
      %v1646 = vsel %vm1645, %v1604, %v1644
      %vm1647 = vcmask 1044484
      %v1648 = vsel %vm1647, %v1607, %v1646
      %vm1649 = vcmask 1045509
      %v1650 = vsel %vm1649, %v1610, %v1648
      %vm1651 = vcmask 1046534
      %v1652 = vsel %vm1651, %v1613, %v1650
      %vm1653 = vcmask 1047559
      %v1654 = vsel %vm1653, %v1616, %v1652
      %v1655 = vsel %vm1641, %v1622, %v1619
      %v1656 = vsel %vm1643, %v1625, %v1655
      %v1657 = vsel %vm1645, %v1628, %v1656
      %v1658 = vsel %vm1647, %v1631, %v1657
      %v1659 = vsel %vm1649, %v1634, %v1658
      %v1660 = vsel %vm1651, %v1637, %v1659
      %v1661 = vsel %vm1653, %v1640, %v1660
      %vm1664 = vcmask 130048
      %1665 = vst.msk [vmem:[%s201] sm:$0xff] %vm1664, %v1654
      %1666 = vst.msk [vmem:[%s201 + $0x8] sm:$0xff] %vm1664, %v1661
      %s1667 = smul.u32 2, %s18
      %p1668 = scmp.lt.s32.totalorder %s17, 1
      %s1669 = scalar_select %p1668, %s17, 1
      %p1670 = scmp.lt.s32.totalorder %s1667, 1
      %s1671 = scalar_select %p1670, %s1667, 1
      %s1672 = smul.addr %s1669, 2
      %s1673 = sadd.s32 %s1671, %s1672
      %s1674 = smul.addr %s1673, 8
      %s1675 = scalar_lea.vmem %s2, %s1674
      // Predicated region
      $region29: #{lr_loss.9} parent=27 // pred_check
        %p1676 = pneg %p99
      $region30: #{lr_loss.9} parent=27 // pred_check_branch
        %1678 = sbr.rel (%p1676) target = $region32
      $region31: #{lr_loss.9} parent=27 // pred_region
        %s1679 = smul.u32 2, %s18
      $region32: #{lr_loss.9} parent=27 // pred_fallthru
        _
    $region28: #{lr_loss.9} parent=5 // pred_fallthru
      _
    %p1680 = scmp.le.s32.totalorder 2, %s8
    // Predicated region
    $region33: #{lr_loss.9} parent=5 // pred_check
      %p1681 = pneg %p1680
    $region34: #{lr_loss.9} parent=5 // pred_check_branch
      %1683 = sbr.rel (%p1681) target = $region36
    $region35: #{lr_loss.9} parent=5 // pred_region
      %s1684 = ssub.s32 %s8, 2
      // Predicated region
      $region37: #{lr_loss.9} parent=35 // pred_check
        %p1685 = pneg %p105
      $region38: #{lr_loss.9} parent=35 // pred_check_branch
        %1687 = sbr.rel (%p1685) target = $region40
      $region39: #{lr_loss.9} parent=35 // pred_region
        %s1688 = smul.u32 2, %s20
        %p1689 = scmp.lt.s32.totalorder %s19, 1
        %s1690 = scalar_select %p1689, %s19, 1
        %p1691 = scmp.lt.s32.totalorder %s1688, 1
        %s1692 = scalar_select %p1691, %s1688, 1
        %s1693 = smul.addr %s1690, 2
        %s1694 = sadd.s32 %s1692, %s1693
        %s1695 = smul.addr %s1694, 8
        %s1696 = scalar_lea.vmem %s2, %s1695
      $region40: #{lr_loss.9} parent=35 // pred_fallthru
        _
    $region36: #{lr_loss.9} parent=5 // pred_fallthru
      _
  $region6: #{lr_loss.9} parent=0 // loop_footer
    %s12 = sadd.s32 1, %s8
  $region7: #{lr_loss.9} parent=0 // loop_footer_branch
    %7 = sbr.rel target = $region3
  $region8: #{lr_loss.9} parent=0 // loop_exit
    _

// kernel: lr_loss.7
$region0: #{lr_loss.7}
  #allocation0 [shape = 'u32[]', space=smem, size = 0x4, offset = 0x4, fixed_abs, tag = 'smem constant byte address 0x4 - core index']
  #allocation1 [shape = 'u32[72,128]{1,0:T(1,128)}', space=vmem, size = 0x9000, scoped, tag = 'internal scratch']
  %s0 = inlined_call_operand.vmem [shape: f32[3,2,18,18], index: 0, kind: input, shape index: {}]
  %s1 = inlined_call_operand.vmem [shape: f32[2,16,16], index: 1, kind: input, shape index: {}]
  %s2 = inlined_call_operand.vmem [shape: f32[2,3,16,16], index: 2, kind: output, shape index: {}]
  %s3 = sld [smem:[#allocation0]]
  $region79: #{lr_loss.7} parent=0
    _
  %s5 = ssub.s32 1, %s3
  %s6 = scalar_select 0, %s5, %s3
  $region1: #{lr_loss.7} parent=0
    #allocation2 [shape = 'u8[73728]{0}', space=vmem, size = 0x12000, scoped, tag = 'input window, operand 0']
    loop: start=0, step=1, limit=4
    $region2: #{lr_loss.7} parent=1 // loop_pre_header
      _
    $region3: #{lr_loss.7} parent=1 // loop_header
      %s8 = sphi 0, %s12
      %p9 = scmp.ge.s32.totalorder %s8, 4
      %s15 = sphi 0, %s27
      %s16 = sphi 0, %s23
      %s17 = sphi 0, %s15
      %s18 = sphi 0, %s16
      %s19 = sphi 0, %s17
      %s20 = sphi 0, %s18
      %s30 = sphi 0, %s32
      %s33 = sphi 0, %s30
      %s34 = sphi 0, %s33
      %s50 = sphi 0, %s34
      %s58 = sphi 0, %s60
      %s61 = sphi 0, %s58
      %s62 = sphi 0, %s61
      %s78 = sphi 0, %s62
      %s86 = sphi 0, %s88
      %s89 = sphi 0, %s86
      %s90 = sphi 0, %s89
      %s106 = sphi 0, %s90
    $region4: #{lr_loss.7} parent=1 // loop_header_branch
      %11 = sbr.rel (%p9) target = $region8
    $region5: #{lr_loss.7} parent=1 // loop_body
      %s13 = ssub.s32 %s8, 1
      %s14 = ssub.s32 %s8, 2
      %s21 = sadd.s32 1, %s16
      %p22 = scmp.ge.s32.totalorder %s21, 1
      %s23 = scalar_select %p22, 0, %s21
      %s24 = sadd.s32 1, %s15
      %s25 = scalar_select %p22, %s24, %s15
      %p26 = scmp.ge.s32.totalorder %s25, 2
      %s27 = scalar_select %p26, 0, %s25
      %s28 = ssub.s32 %s15, %s27
      %p29 = scmp.eq.s32.totalorder %s28, 0
      %s31 = sadd.s32 %s30, 1
      %s32 = scalar_select %p29, %s30, %s31
      %p35 = pneg %p29
      %p36 = scmp.eq.s32.totalorder %s8, 1
      %p37 = por %p35, %p36
      %p38 = scmp.ne.s32.totalorder %s30, %s33
      %p39 = scmp.eq.s32.totalorder %s8, 0
      %p40 = por %p38, %p39
      %p41 = scmp.ne.s32.totalorder %s30, %s33
      %p42 = scmp.eq.s32.totalorder %s13, 1
      %p43 = por %p41, %p42
      %p44 = scmp.ne.s32.totalorder %s33, %s34
      %p45 = scmp.eq.s32.totalorder %s13, 0
      %p46 = por %p44, %p45
      %p47 = scmp.ne.s32.totalorder %s33, %s34
      %p48 = scmp.eq.s32.totalorder %s14, 1
      %p49 = por %p47, %p48
      %p51 = scmp.ne.s32.totalorder %s34, %s50
      %p52 = scmp.eq.s32.totalorder %s14, 0
      %p53 = por %p51, %p52
      %s54 = ssub.s32 %s15, %s27
      %s55 = ssub.s32 %s16, %s23
      %s56 = sor.u32 %s54, %s55
      %p57 = scmp.eq.s32.totalorder %s56, 0
      %s59 = sadd.s32 %s58, 1
      %s60 = scalar_select %p57, %s58, %s59
      %p63 = pneg %p57
      %p64 = scmp.eq.s32.totalorder %s8, 1
      %p65 = por %p63, %p64
      %p66 = scmp.ne.s32.totalorder %s58, %s61
      %p67 = scmp.eq.s32.totalorder %s8, 0
      %p68 = por %p66, %p67
      %p69 = scmp.ne.s32.totalorder %s58, %s61
      %p70 = scmp.eq.s32.totalorder %s13, 1
      %p71 = por %p69, %p70
      %p72 = scmp.ne.s32.totalorder %s61, %s62
      %p73 = scmp.eq.s32.totalorder %s13, 0
      %p74 = por %p72, %p73
      %p75 = scmp.ne.s32.totalorder %s61, %s62
      %p76 = scmp.eq.s32.totalorder %s14, 1
      %p77 = por %p75, %p76
      %p79 = scmp.ne.s32.totalorder %s62, %s78
      %p80 = scmp.eq.s32.totalorder %s14, 0
      %p81 = por %p79, %p80
      %s82 = ssub.s32 %s15, %s27
      %s83 = ssub.s32 %s16, %s23
      %s84 = sor.u32 %s82, %s83
      %p85 = scmp.eq.s32.totalorder %s84, 0
      %s87 = sadd.s32 %s86, 1
      %s88 = scalar_select %p85, %s86, %s87
      %p91 = pneg %p85
      %p92 = scmp.eq.s32.totalorder %s8, 1
      %p93 = por %p91, %p92
      %p94 = scmp.ne.s32.totalorder %s86, %s89
      %p95 = scmp.eq.s32.totalorder %s8, 0
      %p96 = por %p94, %p95
      %p97 = scmp.ne.s32.totalorder %s86, %s89
      %p98 = scmp.eq.s32.totalorder %s13, 1
      %p99 = por %p97, %p98
      %p100 = scmp.ne.s32.totalorder %s89, %s90
      %p101 = scmp.eq.s32.totalorder %s13, 0
      %p102 = por %p100, %p101
      %p103 = scmp.ne.s32.totalorder %s89, %s90
      %p104 = scmp.eq.s32.totalorder %s14, 1
      %p105 = por %p103, %p104
      %p107 = scmp.ne.s32.totalorder %s90, %s106
      %p108 = scmp.eq.s32.totalorder %s14, 0
      %p109 = por %p107, %p108
      %p110 = scmp.le.s32.totalorder 1, %s8
      %p111 = scmp.lt.s32.totalorder %s8, 3
      %p112 = pnand %p110, %p111
      %p113 = pneg %p112
      // Predicated region
      $region9: #{lr_loss.7} parent=5 // pred_check
        _
      $region10: #{lr_loss.7} parent=5 // pred_check_branch
        %115 = sbr.rel (%p112) target = $region12
      $region11: #{lr_loss.7} parent=5 // pred_region
        %s116 = ssub.s32 %s8, 1
      $region12: #{lr_loss.7} parent=5 // pred_fallthru
        _
      %p117 = scmp.lt.s32.totalorder %s8, 2
      // Predicated region
      $region13: #{lr_loss.7} parent=5 // pred_check
        %p118 = pneg %p117
      $region14: #{lr_loss.7} parent=5 // pred_check_branch
        %120 = sbr.rel (%p118) target = $region16
      $region15: #{lr_loss.7} parent=5 // pred_region
        // Predicated region
        $region17: #{lr_loss.7} parent=15 // pred_check
          %p121 = pneg %p40
        $region18: #{lr_loss.7} parent=15 // pred_check_branch
          %123 = sbr.rel (%p121) target = $region20
        $region19: #{lr_loss.7} parent=15 // pred_region
          %s124 = sand.u32 %s30, 1
          %s125 = sand.u32 %s30, 1
          %s126 = smul.addr %s125, 72
          %s127 = scalar_lea.vmem [#allocation2], %s126
          %s128 = smul.addr %s15, 3
          %s129 = smul.addr %s128, 8
          %s130 = scalar_lea.vmem %s0, %s129
          // Predicated region
          $region21: #{lr_loss.7} parent=19 // pred_check
            _
          $region22: #{lr_loss.7} parent=19 // pred_check_branch
            %132 = sbr.rel (0) target = $region24
          $region23: #{lr_loss.7} parent=19 // pred_region
            // Predicated region
            $region25: #{lr_loss.7} parent=23 // pred_check
              _
            $region26: #{lr_loss.7} parent=23 // pred_check_branch
              %134 = sbr.rel (0) target = $region28
            $region27: #{lr_loss.7} parent=23 // pred_region
              // Predicated region
              $region40: #{lr_loss.7} parent=27 // pred_check
                _
              $region41: #{lr_loss.7} parent=27 // pred_check_branch
                %166 = sbr.rel (0) target = $region43
              $region42: #{lr_loss.7} parent=27 // pred_region
                loop: start=0, step=1, limit=1
                $region44: #{lr_loss.7} parent=42 // loop_pre_header
                  _
                $region45: #{lr_loss.7} parent=42 // loop_header
                  %s168 = sphi 0, %s172
                  %p169 = scmp.ge.s32.totalorder %s168, 1
                  %s173 = sphi %s130, %s130
                  %s174 = sphi %s127, %s127
                $region46: #{lr_loss.7} parent=42 // loop_header_branch
                  %171 = sbr.rel (%p169) target = $region50
                $region47: #{lr_loss.7} parent=42 // loop_body
                  %v175 = vld [vmem:[%s173] sm:$0xff]
                  %176 = vst [vmem:[%s174] sm:$0xff] %v175
                  %v177 = vld [vmem:[%s173 + $0x8] sm:$0xff]
                  %178 = vst [vmem:[%s174 + $0x8] sm:$0xff] %v177
                  %v179 = vld [vmem:[%s173 + $0x10] sm:$0xff]
                  %180 = vst [vmem:[%s174 + $0x10] sm:$0xff] %v179
                  %v181 = vld [vmem:[%s173 + $0x30] sm:$0xff]
                  %182 = vst [vmem:[%s174 + $0x18] sm:$0xff] %v181
                  %v183 = vld [vmem:[%s173 + $0x38] sm:$0xff]
                  %184 = vst [vmem:[%s174 + $0x20] sm:$0xff] %v183
                  %v185 = vld [vmem:[%s173 + $0x40] sm:$0xff]
                  %186 = vst [vmem:[%s174 + $0x28] sm:$0xff] %v185
                  %v187 = vld [vmem:[%s173 + $0x60] sm:$0xff]
                  %188 = vst [vmem:[%s174 + $0x30] sm:$0xff] %v187
                  %v189 = vld [vmem:[%s173 + $0x68] sm:$0xff]
                  %190 = vst [vmem:[%s174 + $0x38] sm:$0xff] %v189
                  %v191 = vld [vmem:[%s173 + $0x70] sm:$0xff]
                  %192 = vst [vmem:[%s174 + $0x40] sm:$0xff] %v191
                $region48: #{lr_loss.7} parent=42 // loop_footer
                  %s172 = sadd.s32 1, %s168
                $region49: #{lr_loss.7} parent=42 // loop_footer_branch
                  %167 = sbr.rel target = $region45
                $region50: #{lr_loss.7} parent=42 // loop_exit
                  _
              $region43: #{lr_loss.7} parent=27 // pred_fallthru
                _
              // Predicated region
              $region51: #{lr_loss.7} parent=27 // pred_check
                _
              $region52: #{lr_loss.7} parent=27 // pred_check_branch
                %194 = sbr.rel target = $region54
              $region53: #{lr_loss.7} parent=27 // pred_region
                _
              $region54: #{lr_loss.7} parent=27 // pred_fallthru
                _
            $region28: #{lr_loss.7} parent=23 // pred_fallthru
              _
            // Predicated region
            $region29: #{lr_loss.7} parent=23 // pred_check
              _
            $region30: #{lr_loss.7} parent=23 // pred_check_branch
              %136 = sbr.rel target = $region32
            $region31: #{lr_loss.7} parent=23 // pred_region
              %s138 = ssub.s32 256, 1
              loop: start=0, step=1, limit=1
              $region33: #{lr_loss.7} parent=31 // loop_pre_header
                _
              $region34: #{lr_loss.7} parent=31 // loop_header
                %s140 = sphi 0, %s144
                %p141 = scmp.ge.s32.totalorder %s140, 1
                %s145 = sphi %s130, %s130
                %s146 = sphi %s127, %s127
              $region35: #{lr_loss.7} parent=31 // loop_header_branch
                %143 = sbr.rel (%p141) target = $region39
              $region36: #{lr_loss.7} parent=31 // loop_body
                %v147 = vld [vmem:[%s145] sm:%s138]
                %148 = vst [vmem:[%s146] sm:%s138] %v147
                %v149 = vld [vmem:[%s145 + $0x8] sm:%s138]
                %150 = vst [vmem:[%s146 + $0x8] sm:%s138] %v149
                %v151 = vld [vmem:[%s145 + $0x10] sm:%s138]
                %152 = vst [vmem:[%s146 + $0x10] sm:%s138] %v151
                %v153 = vld [vmem:[%s145 + $0x30] sm:%s138]
                %154 = vst [vmem:[%s146 + $0x18] sm:%s138] %v153
                %v155 = vld [vmem:[%s145 + $0x38] sm:%s138]
                %156 = vst [vmem:[%s146 + $0x20] sm:%s138] %v155
                %v157 = vld [vmem:[%s145 + $0x40] sm:%s138]
                %158 = vst [vmem:[%s146 + $0x28] sm:%s138] %v157
                %v159 = vld [vmem:[%s145 + $0x60] sm:%s138]
                %160 = vst [vmem:[%s146 + $0x30] sm:%s138] %v159
                %v161 = vld [vmem:[%s145 + $0x68] sm:%s138]
                %162 = vst [vmem:[%s146 + $0x38] sm:%s138] %v161
                %v163 = vld [vmem:[%s145 + $0x70] sm:%s138]
                %164 = vst [vmem:[%s146 + $0x40] sm:%s138] %v163
              $region37: #{lr_loss.7} parent=31 // loop_footer
                %s144 = sadd.s32 1, %s140
              $region38: #{lr_loss.7} parent=31 // loop_footer_branch
                %139 = sbr.rel target = $region34
              $region39: #{lr_loss.7} parent=31 // loop_exit
                _
            $region32: #{lr_loss.7} parent=23 // pred_fallthru
              _
          $region24: #{lr_loss.7} parent=19 // pred_fallthru
            _
          %195 = vnop
        $region20: #{lr_loss.7} parent=15 // pred_fallthru
          _
        // Predicated region
        $region55: #{lr_loss.7} parent=15 // pred_check
          %p196 = pneg %p68
        $region56: #{lr_loss.7} parent=15 // pred_check_branch
          %198 = sbr.rel (%p196) target = $region58
        $region57: #{lr_loss.7} parent=15 // pred_region
          %s199 = smul.u32 2, %s16
          %p200 = scmp.lt.s32.totalorder %s15, 1
          %s201 = scalar_select %p200, %s15, 1
          %p202 = scmp.lt.s32.totalorder %s199, 1
          %s203 = scalar_select %p202, %s199, 1
          %s204 = smul.addr %s201, 2
          %s205 = sadd.s32 %s203, %s204
          %s206 = smul.addr %s205, 8
          %s207 = scalar_lea.vmem %s1, %s206
          %s208 = smul.u32 2, %s16
        $region58: #{lr_loss.7} parent=15 // pred_fallthru
          _
      $region16: #{lr_loss.7} parent=5 // pred_fallthru
        _
      %p209 = scmp.le.s32.totalorder 1, %s8
      %p210 = scmp.lt.s32.totalorder %s8, 3
      %p211 = pnand %p209, %p210
      %p212 = pneg %p211
      // Predicated region
      $region59: #{lr_loss.7} parent=5 // pred_check
        _
      $region60: #{lr_loss.7} parent=5 // pred_check_branch
        %214 = sbr.rel (%p211) target = $region62
      $region61: #{lr_loss.7} parent=5 // pred_region
        %s215 = ssub.s32 %s8, 1
        %s216 = sand.u32 %s33, 1
        %s217 = sand.u32 %s33, 1
        %s218 = smul.addr %s217, 72
        %s219 = scalar_lea.vmem [#allocation2], %s218
        // Predicated region
        $region63: #{lr_loss.7} parent=61 // pred_check
          %p220 = pneg %p46
        $region64: #{lr_loss.7} parent=61 // pred_check_branch
          %222 = sbr.rel (%p220) target = $region66
        $region65: #{lr_loss.7} parent=61 // pred_region
          _
        $region66: #{lr_loss.7} parent=61 // pred_fallthru
          _
        %s223 = sand.u32 %s33, 1
        %s224 = sand.u32 %s33, 1
        %s225 = smul.addr %s224, 72
        %s226 = scalar_lea.vmem [#allocation2], %s225
        %p227 = pneg %p46
        %p228 = pneg %p43
        %s229 = smul.u32 2, %s18
        %p230 = scmp.lt.s32.totalorder %s17, 1
        %s231 = scalar_select %p230, %s17, 1
        %p232 = scmp.lt.s32.totalorder %s229, 1
        %s233 = scalar_select %p232, %s229, 1
        %s234 = smul.addr %s231, 2
        %s235 = sadd.s32 %s233, %s234
        %s236 = smul.addr %s235, 8
        %s237 = scalar_lea.vmem %s1, %s236
        %p238 = pneg %p74
        %p239 = pneg %p71
        %p240 = pneg %p102
        %p241 = pneg %p99
        %s242 = smul.u32 2, %s18
        %p243 = scmp.lt.s32.totalorder %s17, 1
        %s244 = scalar_select %p243, %s17, 1
        %p245 = scmp.lt.s32.totalorder %s242, 1
        %s246 = scalar_select %p245, %s242, 1
        %s247 = smul.addr %s244, 6
        %s248 = sadd.s32 %s246, %s247
        %s249 = smul.addr %s248, 8
        %s250 = scalar_lea.vmem %s2, %s249
        %s251 = smul.u32 2, %s18
        %p252 = scmp.lt.s32.totalorder %s17, 1
        %s253 = scalar_select %p252, %s17, 1
        %p254 = scmp.lt.s32.totalorder %s251, 1
        %s255 = scalar_select %p254, %s251, 1
        %s256 = smul.addr %s253, 2
        %s257 = sadd.s32 %s255, %s256
        %s258 = smul.addr %s257, 8
        %s259 = scalar_lea.vmem %s1, %s258
        %s260 = smul.u32 2, %s18
        %s261 = smul.u32 2, %s18
        %p262 = scmp.lt.s32.totalorder %s17, 1
        %s263 = scalar_select %p262, %s17, 1
        %p264 = scmp.lt.s32.totalorder %s261, 1
        %s265 = scalar_select %p264, %s261, 1
        %s266 = smul.addr %s263, 6
        %s267 = sadd.s32 %s265, %s266
        %s268 = smul.addr %s267, 8
        %s269 = scalar_lea.vmem %s2, %s268
        %s270 = smul.u32 2, %s18
        %v271 = vld [vmem:[%s259] sm:$0xff]
        %v272 = vld [vmem:[%s259 + $0x8] sm:$0xff]
        %v273 = vlaneseq
        %v274 = vand.u32 %v273, 127
        %v275 = vcvt.s32.f32 %v274
        %v276 = vadd.f32 %v275, 1.0
        %v277 = vadd.f32 %v276, %v271
        %v278 = vadd.f32 %v276, %v272
        %v279 = vmax.f32 %v277, 0.0
        %v280 = vmax.f32 %v278, 0.0
        %v281 = vmin.f32 %v279, 17.0
        %v282 = vmin.f32 %v280, 17.0
        %v283 = vfloor.f32 %v281
        %v284 = vfloor.f32 %v282
        %v285 = vadd.f32 %v283, 1.0
        %v286 = vadd.f32 %v284, 1.0
        %v287 = vmin.f32 %v285, 17.0
        %v288 = vmin.f32 %v286, 17.0
        %v289 = vsub.f32 %v287, %v281
        %v290 = vsub.f32 %v288, %v282
        %v291 = vperm.slane %v289, 0
        %v292 = vlaneseq
        %v293 = vshrl.u32 %v292, 7
        %295 = vset.pattern.permute.xlu0 %v293
        %296 = vperm.xlu0 %295, %v291
        %v297 = vpop.permute.xlu0 %296
        %v298 = vlaneseq
        %v299 = vshrl.u32 %v298, 7
        %v300 = vadd.s32 %v299, 8
        %301 = vset.pattern.permute.xlu0 %v300
        %302 = vperm.xlu0 %301, %v291
        %v303 = vpop.permute.xlu0 %302
        %v304 = vperm.slane %v289, 1
        %v305 = vlaneseq
        %v306 = vshrl.u32 %v305, 7
        %308 = vset.pattern.permute.xlu0 %v306
        %309 = vperm.xlu0 %308, %v304
        %v310 = vpop.permute.xlu0 %309
        %v311 = vlaneseq
        %v312 = vshrl.u32 %v311, 7
        %v313 = vadd.s32 %v312, 8
        %314 = vset.pattern.permute.xlu0 %v313
        %315 = vperm.xlu0 %314, %v304
        %v316 = vpop.permute.xlu0 %315
        %v317 = vperm.slane %v289, 2
        %v318 = vlaneseq
        %v319 = vshrl.u32 %v318, 7
        %321 = vset.pattern.permute.xlu0 %v319
        %322 = vperm.xlu0 %321, %v317
        %v323 = vpop.permute.xlu0 %322
        %v324 = vlaneseq
        %v325 = vshrl.u32 %v324, 7
        %v326 = vadd.s32 %v325, 8
        %327 = vset.pattern.permute.xlu0 %v326
        %328 = vperm.xlu0 %327, %v317
        %v329 = vpop.permute.xlu0 %328
        %v330 = vperm.slane %v289, 3
        %v331 = vlaneseq
        %v332 = vshrl.u32 %v331, 7
        %334 = vset.pattern.permute.xlu0 %v332
        %335 = vperm.xlu0 %334, %v330
        %v336 = vpop.permute.xlu0 %335
        %v337 = vlaneseq
        %v338 = vshrl.u32 %v337, 7
        %v339 = vadd.s32 %v338, 8
        %340 = vset.pattern.permute.xlu0 %v339
        %341 = vperm.xlu0 %340, %v330
        %v342 = vpop.permute.xlu0 %341
        %v343 = vperm.slane %v289, 4
        %v344 = vlaneseq
        %v345 = vshrl.u32 %v344, 7
        %347 = vset.pattern.permute.xlu0 %v345
        %348 = vperm.xlu0 %347, %v343
        %v349 = vpop.permute.xlu0 %348
        %v350 = vlaneseq
        %v351 = vshrl.u32 %v350, 7
        %v352 = vadd.s32 %v351, 8
        %353 = vset.pattern.permute.xlu0 %v352
        %354 = vperm.xlu0 %353, %v343
        %v355 = vpop.permute.xlu0 %354
        %v356 = vperm.slane %v289, 5
        %v357 = vlaneseq
        %v358 = vshrl.u32 %v357, 7
        %360 = vset.pattern.permute.xlu0 %v358
        %361 = vperm.xlu0 %360, %v356
        %v362 = vpop.permute.xlu0 %361
        %v363 = vlaneseq
        %v364 = vshrl.u32 %v363, 7
        %v365 = vadd.s32 %v364, 8
        %366 = vset.pattern.permute.xlu0 %v365
        %367 = vperm.xlu0 %366, %v356
        %v368 = vpop.permute.xlu0 %367
        %v369 = vperm.slane %v289, 6
        %v370 = vlaneseq
        %v371 = vshrl.u32 %v370, 7
        %373 = vset.pattern.permute.xlu0 %v371
        %374 = vperm.xlu0 %373, %v369
        %v375 = vpop.permute.xlu0 %374
        %v376 = vlaneseq
        %v377 = vshrl.u32 %v376, 7
        %v378 = vadd.s32 %v377, 8
        %379 = vset.pattern.permute.xlu0 %v378
        %380 = vperm.xlu0 %379, %v369
        %v381 = vpop.permute.xlu0 %380
        %v382 = vperm.slane %v289, 7
        %v383 = vlaneseq
        %v384 = vshrl.u32 %v383, 7
        %386 = vset.pattern.permute.xlu0 %v384
        %387 = vperm.xlu0 %386, %v382
        %v388 = vpop.permute.xlu0 %387
        %v389 = vlaneseq
        %v390 = vshrl.u32 %v389, 7
        %v391 = vadd.s32 %v390, 8
        %392 = vset.pattern.permute.xlu0 %v391
        %393 = vperm.xlu0 %392, %v382
        %v394 = vpop.permute.xlu0 %393
        %v395 = vperm.slane %v290, 0
        %v396 = vlaneseq
        %v397 = vshrl.u32 %v396, 7
        %399 = vset.pattern.permute.xlu0 %v397
        %400 = vperm.xlu0 %399, %v395
        %v401 = vpop.permute.xlu0 %400
        %v402 = vlaneseq
        %v403 = vshrl.u32 %v402, 7
        %v404 = vadd.s32 %v403, 8
        %405 = vset.pattern.permute.xlu0 %v404
        %406 = vperm.xlu0 %405, %v395
        %v407 = vpop.permute.xlu0 %406
        %v408 = vperm.slane %v290, 1
        %v409 = vlaneseq
        %v410 = vshrl.u32 %v409, 7
        %412 = vset.pattern.permute.xlu0 %v410
        %413 = vperm.xlu0 %412, %v408
        %v414 = vpop.permute.xlu0 %413
        %v415 = vlaneseq
        %v416 = vshrl.u32 %v415, 7
        %v417 = vadd.s32 %v416, 8
        %418 = vset.pattern.permute.xlu0 %v417
        %419 = vperm.xlu0 %418, %v408
        %v420 = vpop.permute.xlu0 %419
        %v421 = vperm.slane %v290, 2
        %v422 = vlaneseq
        %v423 = vshrl.u32 %v422, 7
        %425 = vset.pattern.permute.xlu0 %v423
        %426 = vperm.xlu0 %425, %v421
        %v427 = vpop.permute.xlu0 %426
        %v428 = vlaneseq
        %v429 = vshrl.u32 %v428, 7
        %v430 = vadd.s32 %v429, 8
        %431 = vset.pattern.permute.xlu0 %v430
        %432 = vperm.xlu0 %431, %v421
        %v433 = vpop.permute.xlu0 %432
        %v434 = vperm.slane %v290, 3
        %v435 = vlaneseq
        %v436 = vshrl.u32 %v435, 7
        %438 = vset.pattern.permute.xlu0 %v436
        %439 = vperm.xlu0 %438, %v434
        %v440 = vpop.permute.xlu0 %439
        %v441 = vlaneseq
        %v442 = vshrl.u32 %v441, 7
        %v443 = vadd.s32 %v442, 8
        %444 = vset.pattern.permute.xlu0 %v443
        %445 = vperm.xlu0 %444, %v434
        %v446 = vpop.permute.xlu0 %445
        %v447 = vperm.slane %v290, 4
        %v448 = vlaneseq
        %v449 = vshrl.u32 %v448, 7
        %451 = vset.pattern.permute.xlu0 %v449
        %452 = vperm.xlu0 %451, %v447
        %v453 = vpop.permute.xlu0 %452
        %v454 = vlaneseq
        %v455 = vshrl.u32 %v454, 7
        %v456 = vadd.s32 %v455, 8
        %457 = vset.pattern.permute.xlu0 %v456
        %458 = vperm.xlu0 %457, %v447
        %v459 = vpop.permute.xlu0 %458
        %v460 = vperm.slane %v290, 5
        %v461 = vlaneseq
        %v462 = vshrl.u32 %v461, 7
        %464 = vset.pattern.permute.xlu0 %v462
        %465 = vperm.xlu0 %464, %v460
        %v466 = vpop.permute.xlu0 %465
        %v467 = vlaneseq
        %v468 = vshrl.u32 %v467, 7
        %v469 = vadd.s32 %v468, 8
        %470 = vset.pattern.permute.xlu0 %v469
        %471 = vperm.xlu0 %470, %v460
        %v472 = vpop.permute.xlu0 %471
        %v473 = vperm.slane %v290, 6
        %v474 = vlaneseq
        %v475 = vshrl.u32 %v474, 7
        %477 = vset.pattern.permute.xlu0 %v475
        %478 = vperm.xlu0 %477, %v473
        %v479 = vpop.permute.xlu0 %478
        %v480 = vlaneseq
        %v481 = vshrl.u32 %v480, 7
        %v482 = vadd.s32 %v481, 8
        %483 = vset.pattern.permute.xlu0 %v482
        %484 = vperm.xlu0 %483, %v473
        %v485 = vpop.permute.xlu0 %484
        %v486 = vperm.slane %v290, 7
        %v487 = vlaneseq
        %v488 = vshrl.u32 %v487, 7
        %490 = vset.pattern.permute.xlu0 %v488
        %491 = vperm.xlu0 %490, %v486
        %v492 = vpop.permute.xlu0 %491
        %v493 = vlaneseq
        %v494 = vshrl.u32 %v493, 7
        %v495 = vadd.s32 %v494, 8
        %496 = vset.pattern.permute.xlu0 %v495
        %497 = vperm.xlu0 %496, %v486
        %v498 = vpop.permute.xlu0 %497
        %v499 = vsub.f32 %v281, %v283
        %v500 = vsub.f32 %v282, %v284
        %v501 = vperm.slane %v499, 0
        %v502 = vlaneseq
        %v503 = vshrl.u32 %v502, 7
        %505 = vset.pattern.permute.xlu0 %v503
        %506 = vperm.xlu0 %505, %v501
        %v507 = vpop.permute.xlu0 %506
        %v508 = vlaneseq
        %v509 = vshrl.u32 %v508, 7
        %v510 = vadd.s32 %v509, 8
        %511 = vset.pattern.permute.xlu0 %v510
        %512 = vperm.xlu0 %511, %v501
        %v513 = vpop.permute.xlu0 %512
        %v514 = vperm.slane %v499, 1
        %v515 = vlaneseq
        %v516 = vshrl.u32 %v515, 7
        %518 = vset.pattern.permute.xlu0 %v516
        %519 = vperm.xlu0 %518, %v514
        %v520 = vpop.permute.xlu0 %519
        %v521 = vlaneseq
        %v522 = vshrl.u32 %v521, 7
        %v523 = vadd.s32 %v522, 8
        %524 = vset.pattern.permute.xlu0 %v523
        %525 = vperm.xlu0 %524, %v514
        %v526 = vpop.permute.xlu0 %525
        %v527 = vperm.slane %v499, 2
        %v528 = vlaneseq
        %v529 = vshrl.u32 %v528, 7
        %531 = vset.pattern.permute.xlu0 %v529
        %532 = vperm.xlu0 %531, %v527
        %v533 = vpop.permute.xlu0 %532
        %v534 = vlaneseq
        %v535 = vshrl.u32 %v534, 7
        %v536 = vadd.s32 %v535, 8
        %537 = vset.pattern.permute.xlu0 %v536
        %538 = vperm.xlu0 %537, %v527
        %v539 = vpop.permute.xlu0 %538
        %v540 = vperm.slane %v499, 3
        %v541 = vlaneseq
        %v542 = vshrl.u32 %v541, 7
        %544 = vset.pattern.permute.xlu0 %v542
        %545 = vperm.xlu0 %544, %v540
        %v546 = vpop.permute.xlu0 %545
        %v547 = vlaneseq
        %v548 = vshrl.u32 %v547, 7
        %v549 = vadd.s32 %v548, 8
        %550 = vset.pattern.permute.xlu0 %v549
        %551 = vperm.xlu0 %550, %v540
        %v552 = vpop.permute.xlu0 %551
        %v553 = vperm.slane %v499, 4
        %v554 = vlaneseq
        %v555 = vshrl.u32 %v554, 7
        %557 = vset.pattern.permute.xlu0 %v555
        %558 = vperm.xlu0 %557, %v553
        %v559 = vpop.permute.xlu0 %558
        %v560 = vlaneseq
        %v561 = vshrl.u32 %v560, 7
        %v562 = vadd.s32 %v561, 8
        %563 = vset.pattern.permute.xlu0 %v562
        %564 = vperm.xlu0 %563, %v553
        %v565 = vpop.permute.xlu0 %564
        %v566 = vperm.slane %v499, 5
        %v567 = vlaneseq
        %v568 = vshrl.u32 %v567, 7
        %570 = vset.pattern.permute.xlu0 %v568
        %571 = vperm.xlu0 %570, %v566
        %v572 = vpop.permute.xlu0 %571
        %v573 = vlaneseq
        %v574 = vshrl.u32 %v573, 7
        %v575 = vadd.s32 %v574, 8
        %576 = vset.pattern.permute.xlu0 %v575
        %577 = vperm.xlu0 %576, %v566
        %v578 = vpop.permute.xlu0 %577
        %v579 = vperm.slane %v499, 6
        %v580 = vlaneseq
        %v581 = vshrl.u32 %v580, 7
        %583 = vset.pattern.permute.xlu0 %v581
        %584 = vperm.xlu0 %583, %v579
        %v585 = vpop.permute.xlu0 %584
        %v586 = vlaneseq
        %v587 = vshrl.u32 %v586, 7
        %v588 = vadd.s32 %v587, 8
        %589 = vset.pattern.permute.xlu0 %v588
        %590 = vperm.xlu0 %589, %v579
        %v591 = vpop.permute.xlu0 %590
        %v592 = vperm.slane %v499, 7
        %v593 = vlaneseq
        %v594 = vshrl.u32 %v593, 7
        %596 = vset.pattern.permute.xlu0 %v594
        %597 = vperm.xlu0 %596, %v592
        %v598 = vpop.permute.xlu0 %597
        %v599 = vlaneseq
        %v600 = vshrl.u32 %v599, 7
        %v601 = vadd.s32 %v600, 8
        %602 = vset.pattern.permute.xlu0 %v601
        %603 = vperm.xlu0 %602, %v592
        %v604 = vpop.permute.xlu0 %603
        %v605 = vperm.slane %v500, 0
        %v606 = vlaneseq
        %v607 = vshrl.u32 %v606, 7
        %609 = vset.pattern.permute.xlu0 %v607
        %610 = vperm.xlu0 %609, %v605
        %v611 = vpop.permute.xlu0 %610
        %v612 = vlaneseq
        %v613 = vshrl.u32 %v612, 7
        %v614 = vadd.s32 %v613, 8
        %615 = vset.pattern.permute.xlu0 %v614
        %616 = vperm.xlu0 %615, %v605
        %v617 = vpop.permute.xlu0 %616
        %v618 = vperm.slane %v500, 1
        %v619 = vlaneseq
        %v620 = vshrl.u32 %v619, 7
        %622 = vset.pattern.permute.xlu0 %v620
        %623 = vperm.xlu0 %622, %v618
        %v624 = vpop.permute.xlu0 %623
        %v625 = vlaneseq
        %v626 = vshrl.u32 %v625, 7
        %v627 = vadd.s32 %v626, 8
        %628 = vset.pattern.permute.xlu0 %v627
        %629 = vperm.xlu0 %628, %v618
        %v630 = vpop.permute.xlu0 %629
        %v631 = vperm.slane %v500, 2
        %v632 = vlaneseq
        %v633 = vshrl.u32 %v632, 7
        %635 = vset.pattern.permute.xlu0 %v633
        %636 = vperm.xlu0 %635, %v631
        %v637 = vpop.permute.xlu0 %636
        %v638 = vlaneseq
        %v639 = vshrl.u32 %v638, 7
        %v640 = vadd.s32 %v639, 8
        %641 = vset.pattern.permute.xlu0 %v640
        %642 = vperm.xlu0 %641, %v631
        %v643 = vpop.permute.xlu0 %642
        %v644 = vperm.slane %v500, 3
        %v645 = vlaneseq
        %v646 = vshrl.u32 %v645, 7
        %648 = vset.pattern.permute.xlu0 %v646
        %649 = vperm.xlu0 %648, %v644
        %v650 = vpop.permute.xlu0 %649
        %v651 = vlaneseq
        %v652 = vshrl.u32 %v651, 7
        %v653 = vadd.s32 %v652, 8
        %654 = vset.pattern.permute.xlu0 %v653
        %655 = vperm.xlu0 %654, %v644
        %v656 = vpop.permute.xlu0 %655
        %v657 = vperm.slane %v500, 4
        %v658 = vlaneseq
        %v659 = vshrl.u32 %v658, 7
        %661 = vset.pattern.permute.xlu0 %v659
        %662 = vperm.xlu0 %661, %v657
        %v663 = vpop.permute.xlu0 %662
        %v664 = vlaneseq
        %v665 = vshrl.u32 %v664, 7
        %v666 = vadd.s32 %v665, 8
        %667 = vset.pattern.permute.xlu0 %v666
        %668 = vperm.xlu0 %667, %v657
        %v669 = vpop.permute.xlu0 %668
        %v670 = vperm.slane %v500, 5
        %v671 = vlaneseq
        %v672 = vshrl.u32 %v671, 7
        %674 = vset.pattern.permute.xlu0 %v672
        %675 = vperm.xlu0 %674, %v670
        %v676 = vpop.permute.xlu0 %675
        %v677 = vlaneseq
        %v678 = vshrl.u32 %v677, 7
        %v679 = vadd.s32 %v678, 8
        %680 = vset.pattern.permute.xlu0 %v679
        %681 = vperm.xlu0 %680, %v670
        %v682 = vpop.permute.xlu0 %681
        %v683 = vperm.slane %v500, 6
        %v684 = vlaneseq
        %v685 = vshrl.u32 %v684, 7
        %687 = vset.pattern.permute.xlu0 %v685
        %688 = vperm.xlu0 %687, %v683
        %v689 = vpop.permute.xlu0 %688
        %v690 = vlaneseq
        %v691 = vshrl.u32 %v690, 7
        %v692 = vadd.s32 %v691, 8
        %693 = vset.pattern.permute.xlu0 %v692
        %694 = vperm.xlu0 %693, %v683
        %v695 = vpop.permute.xlu0 %694
        %v696 = vperm.slane %v500, 7
        %v697 = vlaneseq
        %v698 = vshrl.u32 %v697, 7
        %700 = vset.pattern.permute.xlu0 %v698
        %701 = vperm.xlu0 %700, %v696
        %v702 = vpop.permute.xlu0 %701
        %v703 = vlaneseq
        %v704 = vshrl.u32 %v703, 7
        %v705 = vadd.s32 %v704, 8
        %706 = vset.pattern.permute.xlu0 %v705
        %707 = vperm.xlu0 %706, %v696
        %v708 = vpop.permute.xlu0 %707
        %v709 = vperm.slane %v283, 0
        %v710 = vlaneseq
        %v711 = vshrl.u32 %v710, 7
        %713 = vset.pattern.permute.xlu0 %v711
        %714 = vperm.xlu0 %713, %v709
        %v715 = vpop.permute.xlu0 %714
        %v716 = vlaneseq
        %v717 = vshrl.u32 %v716, 7
        %v718 = vadd.s32 %v717, 8
        %719 = vset.pattern.permute.xlu0 %v718
        %720 = vperm.xlu0 %719, %v709
        %v721 = vpop.permute.xlu0 %720
        %v722 = vperm.slane %v283, 1
        %v723 = vlaneseq
        %v724 = vshrl.u32 %v723, 7
        %726 = vset.pattern.permute.xlu0 %v724
        %727 = vperm.xlu0 %726, %v722
        %v728 = vpop.permute.xlu0 %727
        %v729 = vlaneseq
        %v730 = vshrl.u32 %v729, 7
        %v731 = vadd.s32 %v730, 8
        %732 = vset.pattern.permute.xlu0 %v731
        %733 = vperm.xlu0 %732, %v722
        %v734 = vpop.permute.xlu0 %733
        %v735 = vperm.slane %v283, 2
        %v736 = vlaneseq
        %v737 = vshrl.u32 %v736, 7
        %739 = vset.pattern.permute.xlu0 %v737
        %740 = vperm.xlu0 %739, %v735
        %v741 = vpop.permute.xlu0 %740
        %v742 = vlaneseq
        %v743 = vshrl.u32 %v742, 7
        %v744 = vadd.s32 %v743, 8
        %745 = vset.pattern.permute.xlu0 %v744
        %746 = vperm.xlu0 %745, %v735
        %v747 = vpop.permute.xlu0 %746
        %v748 = vperm.slane %v283, 3
        %v749 = vlaneseq
        %v750 = vshrl.u32 %v749, 7
        %752 = vset.pattern.permute.xlu0 %v750
        %753 = vperm.xlu0 %752, %v748
        %v754 = vpop.permute.xlu0 %753
        %v755 = vlaneseq
        %v756 = vshrl.u32 %v755, 7
        %v757 = vadd.s32 %v756, 8
        %758 = vset.pattern.permute.xlu0 %v757
        %759 = vperm.xlu0 %758, %v748
        %v760 = vpop.permute.xlu0 %759
        %v761 = vperm.slane %v283, 4
        %v762 = vlaneseq
        %v763 = vshrl.u32 %v762, 7
        %765 = vset.pattern.permute.xlu0 %v763
        %766 = vperm.xlu0 %765, %v761
        %v767 = vpop.permute.xlu0 %766
        %v768 = vlaneseq
        %v769 = vshrl.u32 %v768, 7
        %v770 = vadd.s32 %v769, 8
        %771 = vset.pattern.permute.xlu0 %v770
        %772 = vperm.xlu0 %771, %v761
        %v773 = vpop.permute.xlu0 %772
        %v774 = vperm.slane %v283, 5
        %v775 = vlaneseq
        %v776 = vshrl.u32 %v775, 7
        %778 = vset.pattern.permute.xlu0 %v776
        %779 = vperm.xlu0 %778, %v774
        %v780 = vpop.permute.xlu0 %779
        %v781 = vlaneseq
        %v782 = vshrl.u32 %v781, 7
        %v783 = vadd.s32 %v782, 8
        %784 = vset.pattern.permute.xlu0 %v783
        %785 = vperm.xlu0 %784, %v774
        %v786 = vpop.permute.xlu0 %785
        %v787 = vperm.slane %v283, 6
        %v788 = vlaneseq
        %v789 = vshrl.u32 %v788, 7
        %791 = vset.pattern.permute.xlu0 %v789
        %792 = vperm.xlu0 %791, %v787
        %v793 = vpop.permute.xlu0 %792
        %v794 = vlaneseq
        %v795 = vshrl.u32 %v794, 7
        %v796 = vadd.s32 %v795, 8
        %797 = vset.pattern.permute.xlu0 %v796
        %798 = vperm.xlu0 %797, %v787
        %v799 = vpop.permute.xlu0 %798
        %v800 = vperm.slane %v283, 7
        %v801 = vlaneseq
        %v802 = vshrl.u32 %v801, 7
        %804 = vset.pattern.permute.xlu0 %v802
        %805 = vperm.xlu0 %804, %v800
        %v806 = vpop.permute.xlu0 %805
        %v807 = vlaneseq
        %v808 = vshrl.u32 %v807, 7
        %v809 = vadd.s32 %v808, 8
        %810 = vset.pattern.permute.xlu0 %v809
        %811 = vperm.xlu0 %810, %v800
        %v812 = vpop.permute.xlu0 %811
        %v813 = vperm.slane %v284, 0
        %v814 = vlaneseq
        %v815 = vshrl.u32 %v814, 7
        %817 = vset.pattern.permute.xlu0 %v815
        %818 = vperm.xlu0 %817, %v813
        %v819 = vpop.permute.xlu0 %818
        %v820 = vlaneseq
        %v821 = vshrl.u32 %v820, 7
        %v822 = vadd.s32 %v821, 8
        %823 = vset.pattern.permute.xlu0 %v822
        %824 = vperm.xlu0 %823, %v813
        %v825 = vpop.permute.xlu0 %824
        %v826 = vperm.slane %v284, 1
        %v827 = vlaneseq
        %v828 = vshrl.u32 %v827, 7
        %830 = vset.pattern.permute.xlu0 %v828
        %831 = vperm.xlu0 %830, %v826
        %v832 = vpop.permute.xlu0 %831
        %v833 = vlaneseq
        %v834 = vshrl.u32 %v833, 7
        %v835 = vadd.s32 %v834, 8
        %836 = vset.pattern.permute.xlu0 %v835
        %837 = vperm.xlu0 %836, %v826
        %v838 = vpop.permute.xlu0 %837
        %v839 = vperm.slane %v284, 2
        %v840 = vlaneseq
        %v841 = vshrl.u32 %v840, 7
        %843 = vset.pattern.permute.xlu0 %v841
        %844 = vperm.xlu0 %843, %v839
        %v845 = vpop.permute.xlu0 %844
        %v846 = vlaneseq
        %v847 = vshrl.u32 %v846, 7
        %v848 = vadd.s32 %v847, 8
        %849 = vset.pattern.permute.xlu0 %v848
        %850 = vperm.xlu0 %849, %v839
        %v851 = vpop.permute.xlu0 %850
        %v852 = vperm.slane %v284, 3
        %v853 = vlaneseq
        %v854 = vshrl.u32 %v853, 7
        %856 = vset.pattern.permute.xlu0 %v854
        %857 = vperm.xlu0 %856, %v852
        %v858 = vpop.permute.xlu0 %857
        %v859 = vlaneseq
        %v860 = vshrl.u32 %v859, 7
        %v861 = vadd.s32 %v860, 8
        %862 = vset.pattern.permute.xlu0 %v861
        %863 = vperm.xlu0 %862, %v852
        %v864 = vpop.permute.xlu0 %863
        %v865 = vperm.slane %v284, 4
        %v866 = vlaneseq
        %v867 = vshrl.u32 %v866, 7
        %869 = vset.pattern.permute.xlu0 %v867
        %870 = vperm.xlu0 %869, %v865
        %v871 = vpop.permute.xlu0 %870
        %v872 = vlaneseq
        %v873 = vshrl.u32 %v872, 7
        %v874 = vadd.s32 %v873, 8
        %875 = vset.pattern.permute.xlu0 %v874
        %876 = vperm.xlu0 %875, %v865
        %v877 = vpop.permute.xlu0 %876
        %v878 = vperm.slane %v284, 5
        %v879 = vlaneseq
        %v880 = vshrl.u32 %v879, 7
        %882 = vset.pattern.permute.xlu0 %v880
        %883 = vperm.xlu0 %882, %v878
        %v884 = vpop.permute.xlu0 %883
        %v885 = vlaneseq
        %v886 = vshrl.u32 %v885, 7
        %v887 = vadd.s32 %v886, 8
        %888 = vset.pattern.permute.xlu0 %v887
        %889 = vperm.xlu0 %888, %v878
        %v890 = vpop.permute.xlu0 %889
        %v891 = vperm.slane %v284, 6
        %v892 = vlaneseq
        %v893 = vshrl.u32 %v892, 7
        %895 = vset.pattern.permute.xlu0 %v893
        %896 = vperm.xlu0 %895, %v891
        %v897 = vpop.permute.xlu0 %896
        %v898 = vlaneseq
        %v899 = vshrl.u32 %v898, 7
        %v900 = vadd.s32 %v899, 8
        %901 = vset.pattern.permute.xlu0 %v900
        %902 = vperm.xlu0 %901, %v891
        %v903 = vpop.permute.xlu0 %902
        %v904 = vperm.slane %v284, 7
        %v905 = vlaneseq
        %v906 = vshrl.u32 %v905, 7
        %908 = vset.pattern.permute.xlu0 %v906
        %909 = vperm.xlu0 %908, %v904
        %v910 = vpop.permute.xlu0 %909
        %v911 = vlaneseq
        %v912 = vshrl.u32 %v911, 7
        %v913 = vadd.s32 %v912, 8
        %914 = vset.pattern.permute.xlu0 %v913
        %915 = vperm.xlu0 %914, %v904
        %v916 = vpop.permute.xlu0 %915
        %v917 = vperm.slane %v287, 0
        %v918 = vlaneseq
        %v919 = vshrl.u32 %v918, 7
        %921 = vset.pattern.permute.xlu0 %v919
        %922 = vperm.xlu0 %921, %v917
        %v923 = vpop.permute.xlu0 %922
        %v924 = vlaneseq
        %v925 = vshrl.u32 %v924, 7
        %v926 = vadd.s32 %v925, 8
        %927 = vset.pattern.permute.xlu0 %v926
        %928 = vperm.xlu0 %927, %v917
        %v929 = vpop.permute.xlu0 %928
        %v930 = vperm.slane %v287, 1
        %v931 = vlaneseq
        %v932 = vshrl.u32 %v931, 7
        %934 = vset.pattern.permute.xlu0 %v932
        %935 = vperm.xlu0 %934, %v930
        %v936 = vpop.permute.xlu0 %935
        %v937 = vlaneseq
        %v938 = vshrl.u32 %v937, 7
        %v939 = vadd.s32 %v938, 8
        %940 = vset.pattern.permute.xlu0 %v939
        %941 = vperm.xlu0 %940, %v930
        %v942 = vpop.permute.xlu0 %941
        %v943 = vperm.slane %v287, 2
        %v944 = vlaneseq
        %v945 = vshrl.u32 %v944, 7
        %947 = vset.pattern.permute.xlu0 %v945
        %948 = vperm.xlu0 %947, %v943
        %v949 = vpop.permute.xlu0 %948
        %v950 = vlaneseq
        %v951 = vshrl.u32 %v950, 7
        %v952 = vadd.s32 %v951, 8
        %953 = vset.pattern.permute.xlu0 %v952
        %954 = vperm.xlu0 %953, %v943
        %v955 = vpop.permute.xlu0 %954
        %v956 = vperm.slane %v287, 3
        %v957 = vlaneseq
        %v958 = vshrl.u32 %v957, 7
        %960 = vset.pattern.permute.xlu0 %v958
        %961 = vperm.xlu0 %960, %v956
        %v962 = vpop.permute.xlu0 %961
        %v963 = vlaneseq
        %v964 = vshrl.u32 %v963, 7
        %v965 = vadd.s32 %v964, 8
        %966 = vset.pattern.permute.xlu0 %v965
        %967 = vperm.xlu0 %966, %v956
        %v968 = vpop.permute.xlu0 %967
        %v969 = vperm.slane %v287, 4
        %v970 = vlaneseq
        %v971 = vshrl.u32 %v970, 7
        %973 = vset.pattern.permute.xlu0 %v971
        %974 = vperm.xlu0 %973, %v969
        %v975 = vpop.permute.xlu0 %974
        %v976 = vlaneseq
        %v977 = vshrl.u32 %v976, 7
        %v978 = vadd.s32 %v977, 8
        %979 = vset.pattern.permute.xlu0 %v978
        %980 = vperm.xlu0 %979, %v969
        %v981 = vpop.permute.xlu0 %980
        %v982 = vperm.slane %v287, 5
        %v983 = vlaneseq
        %v984 = vshrl.u32 %v983, 7
        %986 = vset.pattern.permute.xlu0 %v984
        %987 = vperm.xlu0 %986, %v982
        %v988 = vpop.permute.xlu0 %987
        %v989 = vlaneseq
        %v990 = vshrl.u32 %v989, 7
        %v991 = vadd.s32 %v990, 8
        %992 = vset.pattern.permute.xlu0 %v991
        %993 = vperm.xlu0 %992, %v982
        %v994 = vpop.permute.xlu0 %993
        %v995 = vperm.slane %v287, 6
        %v996 = vlaneseq
        %v997 = vshrl.u32 %v996, 7
        %999 = vset.pattern.permute.xlu0 %v997
        %1000 = vperm.xlu0 %999, %v995
        %v1001 = vpop.permute.xlu0 %1000
        %v1002 = vlaneseq
        %v1003 = vshrl.u32 %v1002, 7
        %v1004 = vadd.s32 %v1003, 8
        %1005 = vset.pattern.permute.xlu0 %v1004
        %1006 = vperm.xlu0 %1005, %v995
        %v1007 = vpop.permute.xlu0 %1006
        %v1008 = vperm.slane %v287, 7
        %v1009 = vlaneseq
        %v1010 = vshrl.u32 %v1009, 7
        %1012 = vset.pattern.permute.xlu0 %v1010
        %1013 = vperm.xlu0 %1012, %v1008
        %v1014 = vpop.permute.xlu0 %1013
        %v1015 = vlaneseq
        %v1016 = vshrl.u32 %v1015, 7
        %v1017 = vadd.s32 %v1016, 8
        %1018 = vset.pattern.permute.xlu0 %v1017
        %1019 = vperm.xlu0 %1018, %v1008
        %v1020 = vpop.permute.xlu0 %1019
        %v1021 = vperm.slane %v288, 0
        %v1022 = vlaneseq
        %v1023 = vshrl.u32 %v1022, 7
        %1025 = vset.pattern.permute.xlu0 %v1023
        %1026 = vperm.xlu0 %1025, %v1021
        %v1027 = vpop.permute.xlu0 %1026
        %v1028 = vlaneseq
        %v1029 = vshrl.u32 %v1028, 7
        %v1030 = vadd.s32 %v1029, 8
        %1031 = vset.pattern.permute.xlu0 %v1030
        %1032 = vperm.xlu0 %1031, %v1021
        %v1033 = vpop.permute.xlu0 %1032
        %v1034 = vperm.slane %v288, 1
        %v1035 = vlaneseq
        %v1036 = vshrl.u32 %v1035, 7
        %1038 = vset.pattern.permute.xlu0 %v1036
        %1039 = vperm.xlu0 %1038, %v1034
        %v1040 = vpop.permute.xlu0 %1039
        %v1041 = vlaneseq
        %v1042 = vshrl.u32 %v1041, 7
        %v1043 = vadd.s32 %v1042, 8
        %1044 = vset.pattern.permute.xlu0 %v1043
        %1045 = vperm.xlu0 %1044, %v1034
        %v1046 = vpop.permute.xlu0 %1045
        %v1047 = vperm.slane %v288, 2
        %v1048 = vlaneseq
        %v1049 = vshrl.u32 %v1048, 7
        %1051 = vset.pattern.permute.xlu0 %v1049
        %1052 = vperm.xlu0 %1051, %v1047
        %v1053 = vpop.permute.xlu0 %1052
        %v1054 = vlaneseq
        %v1055 = vshrl.u32 %v1054, 7
        %v1056 = vadd.s32 %v1055, 8
        %1057 = vset.pattern.permute.xlu0 %v1056
        %1058 = vperm.xlu0 %1057, %v1047
        %v1059 = vpop.permute.xlu0 %1058
        %v1060 = vperm.slane %v288, 3
        %v1061 = vlaneseq
        %v1062 = vshrl.u32 %v1061, 7
        %1064 = vset.pattern.permute.xlu0 %v1062
        %1065 = vperm.xlu0 %1064, %v1060
        %v1066 = vpop.permute.xlu0 %1065
        %v1067 = vlaneseq
        %v1068 = vshrl.u32 %v1067, 7
        %v1069 = vadd.s32 %v1068, 8
        %1070 = vset.pattern.permute.xlu0 %v1069
        %1071 = vperm.xlu0 %1070, %v1060
        %v1072 = vpop.permute.xlu0 %1071
        %v1073 = vperm.slane %v288, 4
        %v1074 = vlaneseq
        %v1075 = vshrl.u32 %v1074, 7
        %1077 = vset.pattern.permute.xlu0 %v1075
        %1078 = vperm.xlu0 %1077, %v1073
        %v1079 = vpop.permute.xlu0 %1078
        %v1080 = vlaneseq
        %v1081 = vshrl.u32 %v1080, 7
        %v1082 = vadd.s32 %v1081, 8
        %1083 = vset.pattern.permute.xlu0 %v1082
        %1084 = vperm.xlu0 %1083, %v1073
        %v1085 = vpop.permute.xlu0 %1084
        %v1086 = vperm.slane %v288, 5
        %v1087 = vlaneseq
        %v1088 = vshrl.u32 %v1087, 7
        %1090 = vset.pattern.permute.xlu0 %v1088
        %1091 = vperm.xlu0 %1090, %v1086
        %v1092 = vpop.permute.xlu0 %1091
        %v1093 = vlaneseq
        %v1094 = vshrl.u32 %v1093, 7
        %v1095 = vadd.s32 %v1094, 8
        %1096 = vset.pattern.permute.xlu0 %v1095
        %1097 = vperm.xlu0 %1096, %v1086
        %v1098 = vpop.permute.xlu0 %1097
        %v1099 = vperm.slane %v288, 6
        %v1100 = vlaneseq
        %v1101 = vshrl.u32 %v1100, 7
        %1103 = vset.pattern.permute.xlu0 %v1101
        %1104 = vperm.xlu0 %1103, %v1099
        %v1105 = vpop.permute.xlu0 %1104
        %v1106 = vlaneseq
        %v1107 = vshrl.u32 %v1106, 7
        %v1108 = vadd.s32 %v1107, 8
        %1109 = vset.pattern.permute.xlu0 %v1108
        %1110 = vperm.xlu0 %1109, %v1099
        %v1111 = vpop.permute.xlu0 %1110
        %v1112 = vperm.slane %v288, 7
        %v1113 = vlaneseq
        %v1114 = vshrl.u32 %v1113, 7
        %1116 = vset.pattern.permute.xlu0 %v1114
        %1117 = vperm.xlu0 %1116, %v1112
        %v1118 = vpop.permute.xlu0 %1117
        %v1119 = vlaneseq
        %v1120 = vshrl.u32 %v1119, 7
        %v1121 = vadd.s32 %v1120, 8
        %1122 = vset.pattern.permute.xlu0 %v1121
        %1123 = vperm.xlu0 %1122, %v1112
        %v1124 = vpop.permute.xlu0 %1123
        %s1125 = smul.u32 %s18, 16
        %s1126 = sadd.s32 %s1125, 1
        %s1127 = scalar_lea.vmem %s219, %s1126 [#allocation2]
        %v1128 = vld [vmem:[%s1127] sm:$0xff]
        %v1129 = vld [vmem:[%s1127 + $0x8] sm:$0xff]
        %v1130 = vld [vmem:[%s1127 + $0x18] sm:$0xff]
        %v1131 = vld [vmem:[%s1127 + $0x20] sm:$0xff]
        %v1132 = vld [vmem:[%s1127 + $0x30] sm:$0xff]
        %v1133 = vld [vmem:[%s1127 + $0x38] sm:$0xff]
        %vm1134 = vcmp.eq.f32.partialorder %v275, %v715
        %vm1135 = vcmp.eq.f32.partialorder %v275, %v721
        %vm1136 = vcmp.eq.f32.partialorder %v275, %v728
        %vm1137 = vcmp.eq.f32.partialorder %v275, %v734
        %vm1138 = vcmp.eq.f32.partialorder %v275, %v741
        %vm1139 = vcmp.eq.f32.partialorder %v275, %v747
        %vm1140 = vcmp.eq.f32.partialorder %v275, %v754
        %vm1141 = vcmp.eq.f32.partialorder %v275, %v760
        %vm1142 = vcmp.eq.f32.partialorder %v275, %v767
        %vm1143 = vcmp.eq.f32.partialorder %v275, %v773
        %vm1144 = vcmp.eq.f32.partialorder %v275, %v780
        %vm1145 = vcmp.eq.f32.partialorder %v275, %v786
        %vm1146 = vcmp.eq.f32.partialorder %v275, %v793
        %vm1147 = vcmp.eq.f32.partialorder %v275, %v799
        %vm1148 = vcmp.eq.f32.partialorder %v275, %v806
        %vm1149 = vcmp.eq.f32.partialorder %v275, %v812
        %vm1150 = vcmp.eq.f32.partialorder %v275, %v819
        %vm1151 = vcmp.eq.f32.partialorder %v275, %v825
        %vm1152 = vcmp.eq.f32.partialorder %v275, %v832
        %vm1153 = vcmp.eq.f32.partialorder %v275, %v838
        %vm1154 = vcmp.eq.f32.partialorder %v275, %v845
        %vm1155 = vcmp.eq.f32.partialorder %v275, %v851
        %vm1156 = vcmp.eq.f32.partialorder %v275, %v858
        %vm1157 = vcmp.eq.f32.partialorder %v275, %v864
        %vm1158 = vcmp.eq.f32.partialorder %v275, %v871
        %vm1159 = vcmp.eq.f32.partialorder %v275, %v877
        %vm1160 = vcmp.eq.f32.partialorder %v275, %v884
        %vm1161 = vcmp.eq.f32.partialorder %v275, %v890
        %vm1162 = vcmp.eq.f32.partialorder %v275, %v897
        %vm1163 = vcmp.eq.f32.partialorder %v275, %v903
        %vm1164 = vcmp.eq.f32.partialorder %v275, %v910
        %vm1165 = vcmp.eq.f32.partialorder %v275, %v916
        %v1166 = vsel %vm1134, 1, 0
        %v1167 = vsel %vm1135, 1, 0
        %v1168 = vsel %vm1136, 1, 0
        %v1169 = vsel %vm1137, 1, 0
        %v1170 = vsel %vm1138, 1, 0
        %v1171 = vsel %vm1139, 1, 0
        %v1172 = vsel %vm1140, 1, 0
        %v1173 = vsel %vm1141, 1, 0
        %v1174 = vsel %vm1142, 1, 0
        %v1175 = vsel %vm1143, 1, 0
        %v1176 = vsel %vm1144, 1, 0
        %v1177 = vsel %vm1145, 1, 0
        %v1178 = vsel %vm1146, 1, 0
        %v1179 = vsel %vm1147, 1, 0
        %v1180 = vsel %vm1148, 1, 0
        %v1181 = vsel %vm1149, 1, 0
        %v1182 = vsel %vm1150, 1, 0
        %v1183 = vsel %vm1151, 1, 0
        %v1184 = vsel %vm1152, 1, 0
        %v1185 = vsel %vm1153, 1, 0
        %v1186 = vsel %vm1154, 1, 0
        %v1187 = vsel %vm1155, 1, 0
        %v1188 = vsel %vm1156, 1, 0
        %v1189 = vsel %vm1157, 1, 0
        %v1190 = vsel %vm1158, 1, 0
        %v1191 = vsel %vm1159, 1, 0
        %v1192 = vsel %vm1160, 1, 0
        %v1193 = vsel %vm1161, 1, 0
        %v1194 = vsel %vm1162, 1, 0
        %v1195 = vsel %vm1163, 1, 0
        %v1196 = vsel %vm1164, 1, 0
        %v1197 = vsel %vm1165, 1, 0
        %v1198 = vcvt.s32.f32 %v1166
        %v1199 = vcvt.s32.f32 %v1167
        %v1200 = vcvt.s32.f32 %v1168
        %v1201 = vcvt.s32.f32 %v1169
        %v1202 = vcvt.s32.f32 %v1170
        %v1203 = vcvt.s32.f32 %v1171
        %v1204 = vcvt.s32.f32 %v1172
        %v1205 = vcvt.s32.f32 %v1173
        %v1206 = vcvt.s32.f32 %v1174
        %v1207 = vcvt.s32.f32 %v1175
        %v1208 = vcvt.s32.f32 %v1176
        %v1209 = vcvt.s32.f32 %v1177
        %v1210 = vcvt.s32.f32 %v1178
        %v1211 = vcvt.s32.f32 %v1179
        %v1212 = vcvt.s32.f32 %v1180
        %v1213 = vcvt.s32.f32 %v1181
        %v1214 = vcvt.s32.f32 %v1182
        %v1215 = vcvt.s32.f32 %v1183
        %v1216 = vcvt.s32.f32 %v1184
        %v1217 = vcvt.s32.f32 %v1185
        %v1218 = vcvt.s32.f32 %v1186
        %v1219 = vcvt.s32.f32 %v1187
        %v1220 = vcvt.s32.f32 %v1188
        %v1221 = vcvt.s32.f32 %v1189
        %v1222 = vcvt.s32.f32 %v1190
        %v1223 = vcvt.s32.f32 %v1191
        %v1224 = vcvt.s32.f32 %v1192
        %v1225 = vcvt.s32.f32 %v1193
        %v1226 = vcvt.s32.f32 %v1194
        %v1227 = vcvt.s32.f32 %v1195
        %v1228 = vcvt.s32.f32 %v1196
        %v1229 = vcvt.s32.f32 %v1197
        %v1230 = vmul.f32 %v297, %v1198
        %v1231 = vmul.f32 %v303, %v1199
        %v1232 = vmul.f32 %v310, %v1200
        %v1233 = vmul.f32 %v316, %v1201
        %v1234 = vmul.f32 %v323, %v1202
        %v1235 = vmul.f32 %v329, %v1203
        %v1236 = vmul.f32 %v336, %v1204
        %v1237 = vmul.f32 %v342, %v1205
        %v1238 = vmul.f32 %v349, %v1206
        %v1239 = vmul.f32 %v355, %v1207
        %v1240 = vmul.f32 %v362, %v1208
        %v1241 = vmul.f32 %v368, %v1209
        %v1242 = vmul.f32 %v375, %v1210
        %v1243 = vmul.f32 %v381, %v1211
        %v1244 = vmul.f32 %v388, %v1212
        %v1245 = vmul.f32 %v394, %v1213
        %v1246 = vmul.f32 %v401, %v1214
        %v1247 = vmul.f32 %v407, %v1215
        %v1248 = vmul.f32 %v414, %v1216
        %v1249 = vmul.f32 %v420, %v1217
        %v1250 = vmul.f32 %v427, %v1218
        %v1251 = vmul.f32 %v433, %v1219
        %v1252 = vmul.f32 %v440, %v1220
        %v1253 = vmul.f32 %v446, %v1221
        %v1254 = vmul.f32 %v453, %v1222
        %v1255 = vmul.f32 %v459, %v1223
        %v1256 = vmul.f32 %v466, %v1224
        %v1257 = vmul.f32 %v472, %v1225
        %v1258 = vmul.f32 %v479, %v1226
        %v1259 = vmul.f32 %v485, %v1227
        %v1260 = vmul.f32 %v492, %v1228
        %v1261 = vmul.f32 %v498, %v1229
        %vm1262 = vcmp.eq.f32.partialorder %v275, %v923
        %vm1263 = vcmp.eq.f32.partialorder %v275, %v929
        %vm1264 = vcmp.eq.f32.partialorder %v275, %v936
        %vm1265 = vcmp.eq.f32.partialorder %v275, %v942
        %vm1266 = vcmp.eq.f32.partialorder %v275, %v949
        %vm1267 = vcmp.eq.f32.partialorder %v275, %v955
        %vm1268 = vcmp.eq.f32.partialorder %v275, %v962
        %vm1269 = vcmp.eq.f32.partialorder %v275, %v968
        %vm1270 = vcmp.eq.f32.partialorder %v275, %v975
        %vm1271 = vcmp.eq.f32.partialorder %v275, %v981
        %vm1272 = vcmp.eq.f32.partialorder %v275, %v988
        %vm1273 = vcmp.eq.f32.partialorder %v275, %v994
        %vm1274 = vcmp.eq.f32.partialorder %v275, %v1001
        %vm1275 = vcmp.eq.f32.partialorder %v275, %v1007
        %vm1276 = vcmp.eq.f32.partialorder %v275, %v1014
        %vm1277 = vcmp.eq.f32.partialorder %v275, %v1020
        %vm1278 = vcmp.eq.f32.partialorder %v275, %v1027
        %vm1279 = vcmp.eq.f32.partialorder %v275, %v1033
        %vm1280 = vcmp.eq.f32.partialorder %v275, %v1040
        %vm1281 = vcmp.eq.f32.partialorder %v275, %v1046
        %vm1282 = vcmp.eq.f32.partialorder %v275, %v1053
        %vm1283 = vcmp.eq.f32.partialorder %v275, %v1059
        %vm1284 = vcmp.eq.f32.partialorder %v275, %v1066
        %vm1285 = vcmp.eq.f32.partialorder %v275, %v1072
        %vm1286 = vcmp.eq.f32.partialorder %v275, %v1079
        %vm1287 = vcmp.eq.f32.partialorder %v275, %v1085
        %vm1288 = vcmp.eq.f32.partialorder %v275, %v1092
        %vm1289 = vcmp.eq.f32.partialorder %v275, %v1098
        %vm1290 = vcmp.eq.f32.partialorder %v275, %v1105
        %vm1291 = vcmp.eq.f32.partialorder %v275, %v1111
        %vm1292 = vcmp.eq.f32.partialorder %v275, %v1118
        %vm1293 = vcmp.eq.f32.partialorder %v275, %v1124
        %v1294 = vsel %vm1262, 1, 0
        %v1295 = vsel %vm1263, 1, 0
        %v1296 = vsel %vm1264, 1, 0
        %v1297 = vsel %vm1265, 1, 0
        %v1298 = vsel %vm1266, 1, 0
        %v1299 = vsel %vm1267, 1, 0
        %v1300 = vsel %vm1268, 1, 0
        %v1301 = vsel %vm1269, 1, 0
        %v1302 = vsel %vm1270, 1, 0
        %v1303 = vsel %vm1271, 1, 0
        %v1304 = vsel %vm1272, 1, 0
        %v1305 = vsel %vm1273, 1, 0
        %v1306 = vsel %vm1274, 1, 0
        %v1307 = vsel %vm1275, 1, 0
        %v1308 = vsel %vm1276, 1, 0
        %v1309 = vsel %vm1277, 1, 0
        %v1310 = vsel %vm1278, 1, 0
        %v1311 = vsel %vm1279, 1, 0
        %v1312 = vsel %vm1280, 1, 0
        %v1313 = vsel %vm1281, 1, 0
        %v1314 = vsel %vm1282, 1, 0
        %v1315 = vsel %vm1283, 1, 0
        %v1316 = vsel %vm1284, 1, 0
        %v1317 = vsel %vm1285, 1, 0
        %v1318 = vsel %vm1286, 1, 0
        %v1319 = vsel %vm1287, 1, 0
        %v1320 = vsel %vm1288, 1, 0
        %v1321 = vsel %vm1289, 1, 0
        %v1322 = vsel %vm1290, 1, 0
        %v1323 = vsel %vm1291, 1, 0
        %v1324 = vsel %vm1292, 1, 0
        %v1325 = vsel %vm1293, 1, 0
        %v1326 = vcvt.s32.f32 %v1294
        %v1327 = vcvt.s32.f32 %v1295
        %v1328 = vcvt.s32.f32 %v1296
        %v1329 = vcvt.s32.f32 %v1297
        %v1330 = vcvt.s32.f32 %v1298
        %v1331 = vcvt.s32.f32 %v1299
        %v1332 = vcvt.s32.f32 %v1300
        %v1333 = vcvt.s32.f32 %v1301
        %v1334 = vcvt.s32.f32 %v1302
        %v1335 = vcvt.s32.f32 %v1303
        %v1336 = vcvt.s32.f32 %v1304
        %v1337 = vcvt.s32.f32 %v1305
        %v1338 = vcvt.s32.f32 %v1306
        %v1339 = vcvt.s32.f32 %v1307
        %v1340 = vcvt.s32.f32 %v1308
        %v1341 = vcvt.s32.f32 %v1309
        %v1342 = vcvt.s32.f32 %v1310
        %v1343 = vcvt.s32.f32 %v1311
        %v1344 = vcvt.s32.f32 %v1312
        %v1345 = vcvt.s32.f32 %v1313
        %v1346 = vcvt.s32.f32 %v1314
        %v1347 = vcvt.s32.f32 %v1315
        %v1348 = vcvt.s32.f32 %v1316
        %v1349 = vcvt.s32.f32 %v1317
        %v1350 = vcvt.s32.f32 %v1318
        %v1351 = vcvt.s32.f32 %v1319
        %v1352 = vcvt.s32.f32 %v1320
        %v1353 = vcvt.s32.f32 %v1321
        %v1354 = vcvt.s32.f32 %v1322
        %v1355 = vcvt.s32.f32 %v1323
        %v1356 = vcvt.s32.f32 %v1324
        %v1357 = vcvt.s32.f32 %v1325
        %v1358 = vmul.f32 %v507, %v1326
        %v1359 = vmul.f32 %v513, %v1327
        %v1360 = vmul.f32 %v520, %v1328
        %v1361 = vmul.f32 %v526, %v1329
        %v1362 = vmul.f32 %v533, %v1330
        %v1363 = vmul.f32 %v539, %v1331
        %v1364 = vmul.f32 %v546, %v1332
        %v1365 = vmul.f32 %v552, %v1333
        %v1366 = vmul.f32 %v559, %v1334
        %v1367 = vmul.f32 %v565, %v1335
        %v1368 = vmul.f32 %v572, %v1336
        %v1369 = vmul.f32 %v578, %v1337
        %v1370 = vmul.f32 %v585, %v1338
        %v1371 = vmul.f32 %v591, %v1339
        %v1372 = vmul.f32 %v598, %v1340
        %v1373 = vmul.f32 %v604, %v1341
        %v1374 = vmul.f32 %v611, %v1342
        %v1375 = vmul.f32 %v617, %v1343
        %v1376 = vmul.f32 %v624, %v1344
        %v1377 = vmul.f32 %v630, %v1345
        %v1378 = vmul.f32 %v637, %v1346
        %v1379 = vmul.f32 %v643, %v1347
        %v1380 = vmul.f32 %v650, %v1348
        %v1381 = vmul.f32 %v656, %v1349
        %v1382 = vmul.f32 %v663, %v1350
        %v1383 = vmul.f32 %v669, %v1351
        %v1384 = vmul.f32 %v676, %v1352
        %v1385 = vmul.f32 %v682, %v1353
        %v1386 = vmul.f32 %v689, %v1354
        %v1387 = vmul.f32 %v695, %v1355
        %v1388 = vmul.f32 %v702, %v1356
        %v1389 = vmul.f32 %v708, %v1357
        %v1390 = vadd.f32 %v1230, %v1358
        %v1391 = vadd.f32 %v1231, %v1359
        %v1392 = vadd.f32 %v1232, %v1360
        %v1393 = vadd.f32 %v1233, %v1361
        %v1394 = vadd.f32 %v1234, %v1362
        %v1395 = vadd.f32 %v1235, %v1363
        %v1396 = vadd.f32 %v1236, %v1364
        %v1397 = vadd.f32 %v1237, %v1365
        %v1398 = vadd.f32 %v1238, %v1366
        %v1399 = vadd.f32 %v1239, %v1367
        %v1400 = vadd.f32 %v1240, %v1368
        %v1401 = vadd.f32 %v1241, %v1369
        %v1402 = vadd.f32 %v1242, %v1370
        %v1403 = vadd.f32 %v1243, %v1371
        %v1404 = vadd.f32 %v1244, %v1372
        %v1405 = vadd.f32 %v1245, %v1373
        %v1406 = vadd.f32 %v1246, %v1374
        %v1407 = vadd.f32 %v1247, %v1375
        %v1408 = vadd.f32 %v1248, %v1376
        %v1409 = vadd.f32 %v1249, %v1377
        %v1410 = vadd.f32 %v1250, %v1378
        %v1411 = vadd.f32 %v1251, %v1379
        %v1412 = vadd.f32 %v1252, %v1380
        %v1413 = vadd.f32 %v1253, %v1381
        %v1414 = vadd.f32 %v1254, %v1382
        %v1415 = vadd.f32 %v1255, %v1383
        %v1416 = vadd.f32 %v1256, %v1384
        %v1417 = vadd.f32 %v1257, %v1385
        %v1418 = vadd.f32 %v1258, %v1386
        %v1419 = vadd.f32 %v1259, %v1387
        %v1420 = vadd.f32 %v1260, %v1388
        %v1421 = vadd.f32 %v1261, %v1389
        %v1424 = vrot.slane %v1128, 1
        %v1425 = vrot.slane %v1128, 2
        %v1426 = vrot.slane %v1128, 3
        %v1427 = vrot.slane %v1128, 4
        %v1428 = vrot.slane %v1128, 5
        %v1429 = vrot.slane %v1128, 6
        %v1430 = vrot.slane %v1128, 7
        %v1431 = vrot.slane %v1129, 1
        %v1432 = vrot.slane %v1129, 2
        %v1433 = vrot.slane %v1129, 3
        %v1434 = vrot.slane %v1129, 4
        %v1435 = vrot.slane %v1129, 5
        %v1436 = vrot.slane %v1129, 6
        %v1437 = vrot.slane %v1129, 7
        %v1438 = vperm.slane %v1128, 0
        %v1439 = vperm.slane %v1424, 0
        %v1440 = vperm.slane %v1425, 0
        %v1441 = vperm.slane %v1426, 0
        %v1442 = vperm.slane %v1427, 0
        %v1443 = vperm.slane %v1428, 0
        %v1444 = vperm.slane %v1429, 0
        %v1445 = vperm.slane %v1430, 0
        %v1446 = vperm.slane %v1129, 0
        %v1447 = vperm.slane %v1431, 0
        %v1448 = vperm.slane %v1432, 0
        %v1449 = vperm.slane %v1433, 0
        %v1450 = vperm.slane %v1434, 0
        %v1451 = vperm.slane %v1435, 0
        %v1452 = vperm.slane %v1436, 0
        %v1453 = vperm.slane %v1437, 0
        %v1470 = vmul.f32 %v1390, %v1438
        %v1471 = vmul.f32 %v1391, %v1438
        %v1472 = vmul.f32 %v1392, %v1439
        %v1473 = vmul.f32 %v1393, %v1439
        %v1474 = vmul.f32 %v1394, %v1440
        %v1475 = vmul.f32 %v1395, %v1440
        %v1476 = vmul.f32 %v1396, %v1441
        %v1477 = vmul.f32 %v1397, %v1441
        %v1478 = vmul.f32 %v1398, %v1442
        %v1479 = vmul.f32 %v1399, %v1442
        %v1480 = vmul.f32 %v1400, %v1443
        %v1481 = vmul.f32 %v1401, %v1443
        %v1482 = vmul.f32 %v1402, %v1444
        %v1483 = vmul.f32 %v1403, %v1444
        %v1484 = vmul.f32 %v1404, %v1445
        %v1485 = vmul.f32 %v1405, %v1445
        %v1486 = vmul.f32 %v1406, %v1446
        %v1487 = vmul.f32 %v1407, %v1446
        %v1488 = vmul.f32 %v1408, %v1447
        %v1489 = vmul.f32 %v1409, %v1447
        %v1490 = vmul.f32 %v1410, %v1448
        %v1491 = vmul.f32 %v1411, %v1448
        %v1492 = vmul.f32 %v1412, %v1449
        %v1493 = vmul.f32 %v1413, %v1449
        %v1494 = vmul.f32 %v1414, %v1450
        %v1495 = vmul.f32 %v1415, %v1450
        %v1496 = vmul.f32 %v1416, %v1451
        %v1497 = vmul.f32 %v1417, %v1451
        %v1498 = vmul.f32 %v1418, %v1452
        %v1499 = vmul.f32 %v1419, %v1452
        %v1500 = vmul.f32 %v1420, %v1453
        %v1501 = vmul.f32 %v1421, %v1453
        %vm1502 = vcmask 146432
        %v1503 = vsel %vm1502, %v1470, 0.0
        %1504 = vadd.xlane.f32.xlu0 %v1503
        %v1505 = vpop.xlane.xlu0 %1504
        %v1506 = vsel %vm1502, %v1471, 0.0
        %1507 = vadd.xlane.f32.xlu0 %v1506
        %v1508 = vpop.xlane.xlu0 %1507
        %v1509 = vsel %vm1502, %v1472, 0.0
        %1510 = vadd.xlane.f32.xlu0 %v1509
        %v1511 = vpop.xlane.xlu0 %1510
        %v1512 = vsel %vm1502, %v1473, 0.0
        %1513 = vadd.xlane.f32.xlu0 %v1512
        %v1514 = vpop.xlane.xlu0 %1513
        %v1515 = vsel %vm1502, %v1474, 0.0
        %1516 = vadd.xlane.f32.xlu0 %v1515
        %v1517 = vpop.xlane.xlu0 %1516
        %v1518 = vsel %vm1502, %v1475, 0.0
        %1519 = vadd.xlane.f32.xlu0 %v1518
        %v1520 = vpop.xlane.xlu0 %1519
        %v1521 = vsel %vm1502, %v1476, 0.0
        %1522 = vadd.xlane.f32.xlu0 %v1521
        %v1523 = vpop.xlane.xlu0 %1522
        %v1524 = vsel %vm1502, %v1477, 0.0
        %1525 = vadd.xlane.f32.xlu0 %v1524
        %v1526 = vpop.xlane.xlu0 %1525
        %v1527 = vsel %vm1502, %v1478, 0.0
        %1528 = vadd.xlane.f32.xlu0 %v1527
        %v1529 = vpop.xlane.xlu0 %1528
        %v1530 = vsel %vm1502, %v1479, 0.0
        %1531 = vadd.xlane.f32.xlu0 %v1530
        %v1532 = vpop.xlane.xlu0 %1531
        %v1533 = vsel %vm1502, %v1480, 0.0
        %1534 = vadd.xlane.f32.xlu0 %v1533
        %v1535 = vpop.xlane.xlu0 %1534
        %v1536 = vsel %vm1502, %v1481, 0.0
        %1537 = vadd.xlane.f32.xlu0 %v1536
        %v1538 = vpop.xlane.xlu0 %1537
        %v1539 = vsel %vm1502, %v1482, 0.0
        %1540 = vadd.xlane.f32.xlu0 %v1539
        %v1541 = vpop.xlane.xlu0 %1540
        %v1542 = vsel %vm1502, %v1483, 0.0
        %1543 = vadd.xlane.f32.xlu0 %v1542
        %v1544 = vpop.xlane.xlu0 %1543
        %v1545 = vsel %vm1502, %v1484, 0.0
        %1546 = vadd.xlane.f32.xlu0 %v1545
        %v1547 = vpop.xlane.xlu0 %1546
        %v1548 = vsel %vm1502, %v1485, 0.0
        %1549 = vadd.xlane.f32.xlu0 %v1548
        %v1550 = vpop.xlane.xlu0 %1549
        %v1551 = vsel %vm1502, %v1486, 0.0
        %1552 = vadd.xlane.f32.xlu0 %v1551
        %v1553 = vpop.xlane.xlu0 %1552
        %v1554 = vsel %vm1502, %v1487, 0.0
        %1555 = vadd.xlane.f32.xlu0 %v1554
        %v1556 = vpop.xlane.xlu0 %1555
        %v1557 = vsel %vm1502, %v1488, 0.0
        %1558 = vadd.xlane.f32.xlu0 %v1557
        %v1559 = vpop.xlane.xlu0 %1558
        %v1560 = vsel %vm1502, %v1489, 0.0
        %1561 = vadd.xlane.f32.xlu0 %v1560
        %v1562 = vpop.xlane.xlu0 %1561
        %v1563 = vsel %vm1502, %v1490, 0.0
        %1564 = vadd.xlane.f32.xlu0 %v1563
        %v1565 = vpop.xlane.xlu0 %1564
        %v1566 = vsel %vm1502, %v1491, 0.0
        %1567 = vadd.xlane.f32.xlu0 %v1566
        %v1568 = vpop.xlane.xlu0 %1567
        %v1569 = vsel %vm1502, %v1492, 0.0
        %1570 = vadd.xlane.f32.xlu0 %v1569
        %v1571 = vpop.xlane.xlu0 %1570
        %v1572 = vsel %vm1502, %v1493, 0.0
        %1573 = vadd.xlane.f32.xlu0 %v1572
        %v1574 = vpop.xlane.xlu0 %1573
        %v1575 = vsel %vm1502, %v1494, 0.0
        %1576 = vadd.xlane.f32.xlu0 %v1575
        %v1577 = vpop.xlane.xlu0 %1576
        %v1578 = vsel %vm1502, %v1495, 0.0
        %1579 = vadd.xlane.f32.xlu0 %v1578
        %v1580 = vpop.xlane.xlu0 %1579
        %v1581 = vsel %vm1502, %v1496, 0.0
        %1582 = vadd.xlane.f32.xlu0 %v1581
        %v1583 = vpop.xlane.xlu0 %1582
        %v1584 = vsel %vm1502, %v1497, 0.0
        %1585 = vadd.xlane.f32.xlu0 %v1584
        %v1586 = vpop.xlane.xlu0 %1585
        %v1587 = vsel %vm1502, %v1498, 0.0
        %1588 = vadd.xlane.f32.xlu0 %v1587
        %v1589 = vpop.xlane.xlu0 %1588
        %v1590 = vsel %vm1502, %v1499, 0.0
        %1591 = vadd.xlane.f32.xlu0 %v1590
        %v1592 = vpop.xlane.xlu0 %1591
        %v1593 = vsel %vm1502, %v1500, 0.0
        %1594 = vadd.xlane.f32.xlu0 %v1593
        %v1595 = vpop.xlane.xlu0 %1594
        %v1596 = vsel %vm1502, %v1501, 0.0
        %1597 = vadd.xlane.f32.xlu0 %v1596
        %v1598 = vpop.xlane.xlu0 %1597
        %v1599 = vadd.f32 %v1505, 0.0
        %v1600 = vadd.f32 %v1508, 0.0
        %v1601 = vadd.f32 %v1511, 0.0
        %v1602 = vadd.f32 %v1514, 0.0
        %v1603 = vadd.f32 %v1517, 0.0
        %v1604 = vadd.f32 %v1520, 0.0
        %v1605 = vadd.f32 %v1523, 0.0
        %v1606 = vadd.f32 %v1526, 0.0
        %v1607 = vadd.f32 %v1529, 0.0
        %v1608 = vadd.f32 %v1532, 0.0
        %v1609 = vadd.f32 %v1535, 0.0
        %v1610 = vadd.f32 %v1538, 0.0
        %v1611 = vadd.f32 %v1541, 0.0
        %v1612 = vadd.f32 %v1544, 0.0
        %v1613 = vadd.f32 %v1547, 0.0
        %v1614 = vadd.f32 %v1550, 0.0
        %v1615 = vadd.f32 %v1553, 0.0
        %v1616 = vadd.f32 %v1556, 0.0
        %v1617 = vadd.f32 %v1559, 0.0
        %v1618 = vadd.f32 %v1562, 0.0
        %v1619 = vadd.f32 %v1565, 0.0
        %v1620 = vadd.f32 %v1568, 0.0
        %v1621 = vadd.f32 %v1571, 0.0
        %v1622 = vadd.f32 %v1574, 0.0
        %v1623 = vadd.f32 %v1577, 0.0
        %v1624 = vadd.f32 %v1580, 0.0
        %v1625 = vadd.f32 %v1583, 0.0
        %v1626 = vadd.f32 %v1586, 0.0
        %v1627 = vadd.f32 %v1589, 0.0
        %v1628 = vadd.f32 %v1592, 0.0
        %v1629 = vadd.f32 %v1595, 0.0
        %v1630 = vadd.f32 %v1598, 0.0
        %v1633 = vrot.slane %v1130, 1
        %v1634 = vrot.slane %v1130, 2
        %v1635 = vrot.slane %v1130, 3
        %v1636 = vrot.slane %v1130, 4
        %v1637 = vrot.slane %v1130, 5
        %v1638 = vrot.slane %v1130, 6
        %v1639 = vrot.slane %v1130, 7
        %v1640 = vrot.slane %v1131, 1
        %v1641 = vrot.slane %v1131, 2
        %v1642 = vrot.slane %v1131, 3
        %v1643 = vrot.slane %v1131, 4
        %v1644 = vrot.slane %v1131, 5
        %v1645 = vrot.slane %v1131, 6
        %v1646 = vrot.slane %v1131, 7
        %v1647 = vperm.slane %v1130, 0
        %v1648 = vperm.slane %v1633, 0
        %v1649 = vperm.slane %v1634, 0
        %v1650 = vperm.slane %v1635, 0
        %v1651 = vperm.slane %v1636, 0
        %v1652 = vperm.slane %v1637, 0
        %v1653 = vperm.slane %v1638, 0
        %v1654 = vperm.slane %v1639, 0
        %v1655 = vperm.slane %v1131, 0
        %v1656 = vperm.slane %v1640, 0
        %v1657 = vperm.slane %v1641, 0
        %v1658 = vperm.slane %v1642, 0
        %v1659 = vperm.slane %v1643, 0
        %v1660 = vperm.slane %v1644, 0
        %v1661 = vperm.slane %v1645, 0
        %v1662 = vperm.slane %v1646, 0
        %v1679 = vmul.f32 %v1390, %v1647
        %v1680 = vmul.f32 %v1391, %v1647
        %v1681 = vmul.f32 %v1392, %v1648
        %v1682 = vmul.f32 %v1393, %v1648
        %v1683 = vmul.f32 %v1394, %v1649
        %v1684 = vmul.f32 %v1395, %v1649
        %v1685 = vmul.f32 %v1396, %v1650
        %v1686 = vmul.f32 %v1397, %v1650
        %v1687 = vmul.f32 %v1398, %v1651
        %v1688 = vmul.f32 %v1399, %v1651
        %v1689 = vmul.f32 %v1400, %v1652
        %v1690 = vmul.f32 %v1401, %v1652
        %v1691 = vmul.f32 %v1402, %v1653
        %v1692 = vmul.f32 %v1403, %v1653
        %v1693 = vmul.f32 %v1404, %v1654
        %v1694 = vmul.f32 %v1405, %v1654
        %v1695 = vmul.f32 %v1406, %v1655
        %v1696 = vmul.f32 %v1407, %v1655
        %v1697 = vmul.f32 %v1408, %v1656
        %v1698 = vmul.f32 %v1409, %v1656
        %v1699 = vmul.f32 %v1410, %v1657
        %v1700 = vmul.f32 %v1411, %v1657
        %v1701 = vmul.f32 %v1412, %v1658
        %v1702 = vmul.f32 %v1413, %v1658
        %v1703 = vmul.f32 %v1414, %v1659
        %v1704 = vmul.f32 %v1415, %v1659
        %v1705 = vmul.f32 %v1416, %v1660
        %v1706 = vmul.f32 %v1417, %v1660
        %v1707 = vmul.f32 %v1418, %v1661
        %v1708 = vmul.f32 %v1419, %v1661
        %v1709 = vmul.f32 %v1420, %v1662
        %v1710 = vmul.f32 %v1421, %v1662
        %v1711 = vsel %vm1502, %v1679, 0.0
        %1712 = vadd.xlane.f32.xlu0 %v1711
        %v1713 = vpop.xlane.xlu0 %1712
        %v1714 = vsel %vm1502, %v1680, 0.0
        %1715 = vadd.xlane.f32.xlu0 %v1714
        %v1716 = vpop.xlane.xlu0 %1715
        %v1717 = vsel %vm1502, %v1681, 0.0
        %1718 = vadd.xlane.f32.xlu0 %v1717
        %v1719 = vpop.xlane.xlu0 %1718
        %v1720 = vsel %vm1502, %v1682, 0.0
        %1721 = vadd.xlane.f32.xlu0 %v1720
        %v1722 = vpop.xlane.xlu0 %1721
        %v1723 = vsel %vm1502, %v1683, 0.0
        %1724 = vadd.xlane.f32.xlu0 %v1723
        %v1725 = vpop.xlane.xlu0 %1724
        %v1726 = vsel %vm1502, %v1684, 0.0
        %1727 = vadd.xlane.f32.xlu0 %v1726
        %v1728 = vpop.xlane.xlu0 %1727
        %v1729 = vsel %vm1502, %v1685, 0.0
        %1730 = vadd.xlane.f32.xlu0 %v1729
        %v1731 = vpop.xlane.xlu0 %1730
        %v1732 = vsel %vm1502, %v1686, 0.0
        %1733 = vadd.xlane.f32.xlu0 %v1732
        %v1734 = vpop.xlane.xlu0 %1733
        %v1735 = vsel %vm1502, %v1687, 0.0
        %1736 = vadd.xlane.f32.xlu0 %v1735
        %v1737 = vpop.xlane.xlu0 %1736
        %v1738 = vsel %vm1502, %v1688, 0.0
        %1739 = vadd.xlane.f32.xlu0 %v1738
        %v1740 = vpop.xlane.xlu0 %1739
        %v1741 = vsel %vm1502, %v1689, 0.0
        %1742 = vadd.xlane.f32.xlu0 %v1741
        %v1743 = vpop.xlane.xlu0 %1742
        %v1744 = vsel %vm1502, %v1690, 0.0
        %1745 = vadd.xlane.f32.xlu0 %v1744
        %v1746 = vpop.xlane.xlu0 %1745
        %v1747 = vsel %vm1502, %v1691, 0.0
        %1748 = vadd.xlane.f32.xlu0 %v1747
        %v1749 = vpop.xlane.xlu0 %1748
        %v1750 = vsel %vm1502, %v1692, 0.0
        %1751 = vadd.xlane.f32.xlu0 %v1750
        %v1752 = vpop.xlane.xlu0 %1751
        %v1753 = vsel %vm1502, %v1693, 0.0
        %1754 = vadd.xlane.f32.xlu0 %v1753
        %v1755 = vpop.xlane.xlu0 %1754
        %v1756 = vsel %vm1502, %v1694, 0.0
        %1757 = vadd.xlane.f32.xlu0 %v1756
        %v1758 = vpop.xlane.xlu0 %1757
        %v1759 = vsel %vm1502, %v1695, 0.0
        %1760 = vadd.xlane.f32.xlu0 %v1759
        %v1761 = vpop.xlane.xlu0 %1760
        %v1762 = vsel %vm1502, %v1696, 0.0
        %1763 = vadd.xlane.f32.xlu0 %v1762
        %v1764 = vpop.xlane.xlu0 %1763
        %v1765 = vsel %vm1502, %v1697, 0.0
        %1766 = vadd.xlane.f32.xlu0 %v1765
        %v1767 = vpop.xlane.xlu0 %1766
        %v1768 = vsel %vm1502, %v1698, 0.0
        %1769 = vadd.xlane.f32.xlu0 %v1768
        %v1770 = vpop.xlane.xlu0 %1769
        %v1771 = vsel %vm1502, %v1699, 0.0
        %1772 = vadd.xlane.f32.xlu0 %v1771
        %v1773 = vpop.xlane.xlu0 %1772
        %v1774 = vsel %vm1502, %v1700, 0.0
        %1775 = vadd.xlane.f32.xlu0 %v1774
        %v1776 = vpop.xlane.xlu0 %1775
        %v1777 = vsel %vm1502, %v1701, 0.0
        %1778 = vadd.xlane.f32.xlu0 %v1777
        %v1779 = vpop.xlane.xlu0 %1778
        %v1780 = vsel %vm1502, %v1702, 0.0
        %1781 = vadd.xlane.f32.xlu0 %v1780
        %v1782 = vpop.xlane.xlu0 %1781
        %v1783 = vsel %vm1502, %v1703, 0.0
        %1784 = vadd.xlane.f32.xlu0 %v1783
        %v1785 = vpop.xlane.xlu0 %1784
        %v1786 = vsel %vm1502, %v1704, 0.0
        %1787 = vadd.xlane.f32.xlu0 %v1786
        %v1788 = vpop.xlane.xlu0 %1787
        %v1789 = vsel %vm1502, %v1705, 0.0
        %1790 = vadd.xlane.f32.xlu0 %v1789
        %v1791 = vpop.xlane.xlu0 %1790
        %v1792 = vsel %vm1502, %v1706, 0.0
        %1793 = vadd.xlane.f32.xlu0 %v1792
        %v1794 = vpop.xlane.xlu0 %1793
        %v1795 = vsel %vm1502, %v1707, 0.0
        %1796 = vadd.xlane.f32.xlu0 %v1795
        %v1797 = vpop.xlane.xlu0 %1796
        %v1798 = vsel %vm1502, %v1708, 0.0
        %1799 = vadd.xlane.f32.xlu0 %v1798
        %v1800 = vpop.xlane.xlu0 %1799
        %v1801 = vsel %vm1502, %v1709, 0.0
        %1802 = vadd.xlane.f32.xlu0 %v1801
        %v1803 = vpop.xlane.xlu0 %1802
        %v1804 = vsel %vm1502, %v1710, 0.0
        %1805 = vadd.xlane.f32.xlu0 %v1804
        %v1806 = vpop.xlane.xlu0 %1805
        %v1807 = vadd.f32 %v1713, 0.0
        %v1808 = vadd.f32 %v1716, 0.0
        %v1809 = vadd.f32 %v1719, 0.0
        %v1810 = vadd.f32 %v1722, 0.0
        %v1811 = vadd.f32 %v1725, 0.0
        %v1812 = vadd.f32 %v1728, 0.0
        %v1813 = vadd.f32 %v1731, 0.0
        %v1814 = vadd.f32 %v1734, 0.0
        %v1815 = vadd.f32 %v1737, 0.0
        %v1816 = vadd.f32 %v1740, 0.0
        %v1817 = vadd.f32 %v1743, 0.0
        %v1818 = vadd.f32 %v1746, 0.0
        %v1819 = vadd.f32 %v1749, 0.0
        %v1820 = vadd.f32 %v1752, 0.0
        %v1821 = vadd.f32 %v1755, 0.0
        %v1822 = vadd.f32 %v1758, 0.0
        %v1823 = vadd.f32 %v1761, 0.0
        %v1824 = vadd.f32 %v1764, 0.0
        %v1825 = vadd.f32 %v1767, 0.0
        %v1826 = vadd.f32 %v1770, 0.0
        %v1827 = vadd.f32 %v1773, 0.0
        %v1828 = vadd.f32 %v1776, 0.0
        %v1829 = vadd.f32 %v1779, 0.0
        %v1830 = vadd.f32 %v1782, 0.0
        %v1831 = vadd.f32 %v1785, 0.0
        %v1832 = vadd.f32 %v1788, 0.0
        %v1833 = vadd.f32 %v1791, 0.0
        %v1834 = vadd.f32 %v1794, 0.0
        %v1835 = vadd.f32 %v1797, 0.0
        %v1836 = vadd.f32 %v1800, 0.0
        %v1837 = vadd.f32 %v1803, 0.0
        %v1838 = vadd.f32 %v1806, 0.0
        %v1841 = vrot.slane %v1132, 1
        %v1842 = vrot.slane %v1132, 2
        %v1843 = vrot.slane %v1132, 3
        %v1844 = vrot.slane %v1132, 4
        %v1845 = vrot.slane %v1132, 5
        %v1846 = vrot.slane %v1132, 6
        %v1847 = vrot.slane %v1132, 7
        %v1848 = vrot.slane %v1133, 1
        %v1849 = vrot.slane %v1133, 2
        %v1850 = vrot.slane %v1133, 3
        %v1851 = vrot.slane %v1133, 4
        %v1852 = vrot.slane %v1133, 5
        %v1853 = vrot.slane %v1133, 6
        %v1854 = vrot.slane %v1133, 7
        %v1855 = vperm.slane %v1132, 0
        %v1856 = vperm.slane %v1841, 0
        %v1857 = vperm.slane %v1842, 0
        %v1858 = vperm.slane %v1843, 0
        %v1859 = vperm.slane %v1844, 0
        %v1860 = vperm.slane %v1845, 0
        %v1861 = vperm.slane %v1846, 0
        %v1862 = vperm.slane %v1847, 0
        %v1863 = vperm.slane %v1133, 0
        %v1864 = vperm.slane %v1848, 0
        %v1865 = vperm.slane %v1849, 0
        %v1866 = vperm.slane %v1850, 0
        %v1867 = vperm.slane %v1851, 0
        %v1868 = vperm.slane %v1852, 0
        %v1869 = vperm.slane %v1853, 0
        %v1870 = vperm.slane %v1854, 0
        %v1887 = vmul.f32 %v1390, %v1855
        %v1888 = vmul.f32 %v1391, %v1855
        %v1889 = vmul.f32 %v1392, %v1856
        %v1890 = vmul.f32 %v1393, %v1856
        %v1891 = vmul.f32 %v1394, %v1857
        %v1892 = vmul.f32 %v1395, %v1857
        %v1893 = vmul.f32 %v1396, %v1858
        %v1894 = vmul.f32 %v1397, %v1858
        %v1895 = vmul.f32 %v1398, %v1859
        %v1896 = vmul.f32 %v1399, %v1859
        %v1897 = vmul.f32 %v1400, %v1860
        %v1898 = vmul.f32 %v1401, %v1860
        %v1899 = vmul.f32 %v1402, %v1861
        %v1900 = vmul.f32 %v1403, %v1861
        %v1901 = vmul.f32 %v1404, %v1862
        %v1902 = vmul.f32 %v1405, %v1862
        %v1903 = vmul.f32 %v1406, %v1863
        %v1904 = vmul.f32 %v1407, %v1863
        %v1905 = vmul.f32 %v1408, %v1864
        %v1906 = vmul.f32 %v1409, %v1864
        %v1907 = vmul.f32 %v1410, %v1865
        %v1908 = vmul.f32 %v1411, %v1865
        %v1909 = vmul.f32 %v1412, %v1866
        %v1910 = vmul.f32 %v1413, %v1866
        %v1911 = vmul.f32 %v1414, %v1867
        %v1912 = vmul.f32 %v1415, %v1867
        %v1913 = vmul.f32 %v1416, %v1868
        %v1914 = vmul.f32 %v1417, %v1868
        %v1915 = vmul.f32 %v1418, %v1869
        %v1916 = vmul.f32 %v1419, %v1869
        %v1917 = vmul.f32 %v1420, %v1870
        %v1918 = vmul.f32 %v1421, %v1870
        %v1919 = vsel %vm1502, %v1887, 0.0
        %1920 = vadd.xlane.f32.xlu0 %v1919
        %v1921 = vpop.xlane.xlu0 %1920
        %v1922 = vsel %vm1502, %v1888, 0.0
        %1923 = vadd.xlane.f32.xlu0 %v1922
        %v1924 = vpop.xlane.xlu0 %1923
        %v1925 = vsel %vm1502, %v1889, 0.0
        %1926 = vadd.xlane.f32.xlu0 %v1925
        %v1927 = vpop.xlane.xlu0 %1926
        %v1928 = vsel %vm1502, %v1890, 0.0
        %1929 = vadd.xlane.f32.xlu0 %v1928
        %v1930 = vpop.xlane.xlu0 %1929
        %v1931 = vsel %vm1502, %v1891, 0.0
        %1932 = vadd.xlane.f32.xlu0 %v1931
        %v1933 = vpop.xlane.xlu0 %1932
        %v1934 = vsel %vm1502, %v1892, 0.0
        %1935 = vadd.xlane.f32.xlu0 %v1934
        %v1936 = vpop.xlane.xlu0 %1935
        %v1937 = vsel %vm1502, %v1893, 0.0
        %1938 = vadd.xlane.f32.xlu0 %v1937
        %v1939 = vpop.xlane.xlu0 %1938
        %v1940 = vsel %vm1502, %v1894, 0.0
        %1941 = vadd.xlane.f32.xlu0 %v1940
        %v1942 = vpop.xlane.xlu0 %1941
        %v1943 = vsel %vm1502, %v1895, 0.0
        %1944 = vadd.xlane.f32.xlu0 %v1943
        %v1945 = vpop.xlane.xlu0 %1944
        %v1946 = vsel %vm1502, %v1896, 0.0
        %1947 = vadd.xlane.f32.xlu0 %v1946
        %v1948 = vpop.xlane.xlu0 %1947
        %v1949 = vsel %vm1502, %v1897, 0.0
        %1950 = vadd.xlane.f32.xlu0 %v1949
        %v1951 = vpop.xlane.xlu0 %1950
        %v1952 = vsel %vm1502, %v1898, 0.0
        %1953 = vadd.xlane.f32.xlu0 %v1952
        %v1954 = vpop.xlane.xlu0 %1953
        %v1955 = vsel %vm1502, %v1899, 0.0
        %1956 = vadd.xlane.f32.xlu0 %v1955
        %v1957 = vpop.xlane.xlu0 %1956
        %v1958 = vsel %vm1502, %v1900, 0.0
        %1959 = vadd.xlane.f32.xlu0 %v1958
        %v1960 = vpop.xlane.xlu0 %1959
        %v1961 = vsel %vm1502, %v1901, 0.0
        %1962 = vadd.xlane.f32.xlu0 %v1961
        %v1963 = vpop.xlane.xlu0 %1962
        %v1964 = vsel %vm1502, %v1902, 0.0
        %1965 = vadd.xlane.f32.xlu0 %v1964
        %v1966 = vpop.xlane.xlu0 %1965
        %v1967 = vsel %vm1502, %v1903, 0.0
        %1968 = vadd.xlane.f32.xlu0 %v1967
        %v1969 = vpop.xlane.xlu0 %1968
        %v1970 = vsel %vm1502, %v1904, 0.0
        %1971 = vadd.xlane.f32.xlu0 %v1970
        %v1972 = vpop.xlane.xlu0 %1971
        %v1973 = vsel %vm1502, %v1905, 0.0
        %1974 = vadd.xlane.f32.xlu0 %v1973
        %v1975 = vpop.xlane.xlu0 %1974
        %v1976 = vsel %vm1502, %v1906, 0.0
        %1977 = vadd.xlane.f32.xlu0 %v1976
        %v1978 = vpop.xlane.xlu0 %1977
        %v1979 = vsel %vm1502, %v1907, 0.0
        %1980 = vadd.xlane.f32.xlu0 %v1979
        %v1981 = vpop.xlane.xlu0 %1980
        %v1982 = vsel %vm1502, %v1908, 0.0
        %1983 = vadd.xlane.f32.xlu0 %v1982
        %v1984 = vpop.xlane.xlu0 %1983
        %v1985 = vsel %vm1502, %v1909, 0.0
        %1986 = vadd.xlane.f32.xlu0 %v1985
        %v1987 = vpop.xlane.xlu0 %1986
        %v1988 = vsel %vm1502, %v1910, 0.0
        %1989 = vadd.xlane.f32.xlu0 %v1988
        %v1990 = vpop.xlane.xlu0 %1989
        %v1991 = vsel %vm1502, %v1911, 0.0
        %1992 = vadd.xlane.f32.xlu0 %v1991
        %v1993 = vpop.xlane.xlu0 %1992
        %v1994 = vsel %vm1502, %v1912, 0.0
        %1995 = vadd.xlane.f32.xlu0 %v1994
        %v1996 = vpop.xlane.xlu0 %1995
        %v1997 = vsel %vm1502, %v1913, 0.0
        %1998 = vadd.xlane.f32.xlu0 %v1997
        %v1999 = vpop.xlane.xlu0 %1998
        %v2000 = vsel %vm1502, %v1914, 0.0
        %2001 = vadd.xlane.f32.xlu0 %v2000
        %v2002 = vpop.xlane.xlu0 %2001
        %v2003 = vsel %vm1502, %v1915, 0.0
        %2004 = vadd.xlane.f32.xlu0 %v2003
        %v2005 = vpop.xlane.xlu0 %2004
        %v2006 = vsel %vm1502, %v1916, 0.0
        %2007 = vadd.xlane.f32.xlu0 %v2006
        %v2008 = vpop.xlane.xlu0 %2007
        %v2009 = vsel %vm1502, %v1917, 0.0
        %2010 = vadd.xlane.f32.xlu0 %v2009
        %v2011 = vpop.xlane.xlu0 %2010
        %v2012 = vsel %vm1502, %v1918, 0.0
        %2013 = vadd.xlane.f32.xlu0 %v2012
        %v2014 = vpop.xlane.xlu0 %2013
        %v2015 = vadd.f32 %v1921, 0.0
        %v2016 = vadd.f32 %v1924, 0.0
        %v2017 = vadd.f32 %v1927, 0.0
        %v2018 = vadd.f32 %v1930, 0.0
        %v2019 = vadd.f32 %v1933, 0.0
        %v2020 = vadd.f32 %v1936, 0.0
        %v2021 = vadd.f32 %v1939, 0.0
        %v2022 = vadd.f32 %v1942, 0.0
        %v2023 = vadd.f32 %v1945, 0.0
        %v2024 = vadd.f32 %v1948, 0.0
        %v2025 = vadd.f32 %v1951, 0.0
        %v2026 = vadd.f32 %v1954, 0.0
        %v2027 = vadd.f32 %v1957, 0.0
        %v2028 = vadd.f32 %v1960, 0.0
        %v2029 = vadd.f32 %v1963, 0.0
        %v2030 = vadd.f32 %v1966, 0.0
        %v2031 = vadd.f32 %v1969, 0.0
        %v2032 = vadd.f32 %v1972, 0.0
        %v2033 = vadd.f32 %v1975, 0.0
        %v2034 = vadd.f32 %v1978, 0.0
        %v2035 = vadd.f32 %v1981, 0.0
        %v2036 = vadd.f32 %v1984, 0.0
        %v2037 = vadd.f32 %v1987, 0.0
        %v2038 = vadd.f32 %v1990, 0.0
        %v2039 = vadd.f32 %v1993, 0.0
        %v2040 = vadd.f32 %v1996, 0.0
        %v2041 = vadd.f32 %v1999, 0.0
        %v2042 = vadd.f32 %v2002, 0.0
        %v2043 = vadd.f32 %v2005, 0.0
        %v2044 = vadd.f32 %v2008, 0.0
        %v2045 = vadd.f32 %v2011, 0.0
        %v2046 = vadd.f32 %v2014, 0.0
        %v2079 = vperm.slane %v1599, %v274
        %v2080 = vadd.s32 %v274, 4294967288
        %v2081 = vperm.slane %v1600, %v2080
        %vm2082 = vcmask 130112
        %v2083 = vsel %vm2082, %v2081, %v2079
        %v2084 = vperm.slane %v1601, %v274
        %v2085 = vperm.slane %v1602, %v2080
        %v2086 = vsel %vm2082, %v2085, %v2084
        %v2087 = vperm.slane %v1603, %v274
        %v2088 = vperm.slane %v1604, %v2080
        %v2089 = vsel %vm2082, %v2088, %v2087
        %v2090 = vperm.slane %v1605, %v274
        %v2091 = vperm.slane %v1606, %v2080
        %v2092 = vsel %vm2082, %v2091, %v2090
        %v2093 = vperm.slane %v1607, %v274
        %v2094 = vperm.slane %v1608, %v2080
        %v2095 = vsel %vm2082, %v2094, %v2093
        %v2096 = vperm.slane %v1609, %v274
        %v2097 = vperm.slane %v1610, %v2080
        %v2098 = vsel %vm2082, %v2097, %v2096
        %v2099 = vperm.slane %v1611, %v274
        %v2100 = vperm.slane %v1612, %v2080
        %v2101 = vsel %vm2082, %v2100, %v2099
        %v2102 = vperm.slane %v1613, %v274
        %v2103 = vperm.slane %v1614, %v2080
        %v2104 = vsel %vm2082, %v2103, %v2102
        %v2105 = vperm.slane %v1615, %v274
        %v2106 = vperm.slane %v1616, %v2080
        %v2107 = vsel %vm2082, %v2106, %v2105
        %v2108 = vperm.slane %v1617, %v274
        %v2109 = vperm.slane %v1618, %v2080
        %v2110 = vsel %vm2082, %v2109, %v2108
        %v2111 = vperm.slane %v1619, %v274
        %v2112 = vperm.slane %v1620, %v2080
        %v2113 = vsel %vm2082, %v2112, %v2111
        %v2114 = vperm.slane %v1621, %v274
        %v2115 = vperm.slane %v1622, %v2080
        %v2116 = vsel %vm2082, %v2115, %v2114
        %v2117 = vperm.slane %v1623, %v274
        %v2118 = vperm.slane %v1624, %v2080
        %v2119 = vsel %vm2082, %v2118, %v2117
        %v2120 = vperm.slane %v1625, %v274
        %v2121 = vperm.slane %v1626, %v2080
        %v2122 = vsel %vm2082, %v2121, %v2120
        %v2123 = vperm.slane %v1627, %v274
        %v2124 = vperm.slane %v1628, %v2080
        %v2125 = vsel %vm2082, %v2124, %v2123
        %v2126 = vperm.slane %v1629, %v274
        %v2127 = vperm.slane %v1630, %v2080
        %v2128 = vsel %vm2082, %v2127, %v2126
        %vm2129 = vcmask 1041409
        %v2130 = vsel %vm2129, %v2086, %v2083
        %vm2131 = vcmask 1042434
        %v2132 = vsel %vm2131, %v2089, %v2130
        %vm2133 = vcmask 1043459
        %v2134 = vsel %vm2133, %v2092, %v2132
        %vm2135 = vcmask 1044484
        %v2136 = vsel %vm2135, %v2095, %v2134
        %vm2137 = vcmask 1045509
        %v2138 = vsel %vm2137, %v2098, %v2136
        %vm2139 = vcmask 1046534
        %v2140 = vsel %vm2139, %v2101, %v2138
        %vm2141 = vcmask 1047559
        %v2142 = vsel %vm2141, %v2104, %v2140
        %v2143 = vsel %vm2129, %v2110, %v2107
        %v2144 = vsel %vm2131, %v2113, %v2143
        %v2145 = vsel %vm2133, %v2116, %v2144
        %v2146 = vsel %vm2135, %v2119, %v2145
        %v2147 = vsel %vm2137, %v2122, %v2146
        %v2148 = vsel %vm2139, %v2125, %v2147
        %v2149 = vsel %vm2141, %v2128, %v2148
        %vm2152 = vcmask 130048
        %2153 = vst.msk [vmem:[%s269] sm:$0xff] %vm2152, %v2142
        %2154 = vst.msk [vmem:[%s269 + $0x8] sm:$0xff] %vm2152, %v2149
        %v2187 = vperm.slane %v1807, %v274
        %v2188 = vperm.slane %v1808, %v2080
        %v2189 = vsel %vm2082, %v2188, %v2187
        %v2190 = vperm.slane %v1809, %v274
        %v2191 = vperm.slane %v1810, %v2080
        %v2192 = vsel %vm2082, %v2191, %v2190
        %v2193 = vperm.slane %v1811, %v274
        %v2194 = vperm.slane %v1812, %v2080
        %v2195 = vsel %vm2082, %v2194, %v2193
        %v2196 = vperm.slane %v1813, %v274
        %v2197 = vperm.slane %v1814, %v2080
        %v2198 = vsel %vm2082, %v2197, %v2196
        %v2199 = vperm.slane %v1815, %v274
        %v2200 = vperm.slane %v1816, %v2080
        %v2201 = vsel %vm2082, %v2200, %v2199
        %v2202 = vperm.slane %v1817, %v274
        %v2203 = vperm.slane %v1818, %v2080
        %v2204 = vsel %vm2082, %v2203, %v2202
        %v2205 = vperm.slane %v1819, %v274
        %v2206 = vperm.slane %v1820, %v2080
        %v2207 = vsel %vm2082, %v2206, %v2205
        %v2208 = vperm.slane %v1821, %v274
        %v2209 = vperm.slane %v1822, %v2080
        %v2210 = vsel %vm2082, %v2209, %v2208
        %v2211 = vperm.slane %v1823, %v274
        %v2212 = vperm.slane %v1824, %v2080
        %v2213 = vsel %vm2082, %v2212, %v2211
        %v2214 = vperm.slane %v1825, %v274
        %v2215 = vperm.slane %v1826, %v2080
        %v2216 = vsel %vm2082, %v2215, %v2214
        %v2217 = vperm.slane %v1827, %v274
        %v2218 = vperm.slane %v1828, %v2080
        %v2219 = vsel %vm2082, %v2218, %v2217
        %v2220 = vperm.slane %v1829, %v274
        %v2221 = vperm.slane %v1830, %v2080
        %v2222 = vsel %vm2082, %v2221, %v2220
        %v2223 = vperm.slane %v1831, %v274
        %v2224 = vperm.slane %v1832, %v2080
        %v2225 = vsel %vm2082, %v2224, %v2223
        %v2226 = vperm.slane %v1833, %v274
        %v2227 = vperm.slane %v1834, %v2080
        %v2228 = vsel %vm2082, %v2227, %v2226
        %v2229 = vperm.slane %v1835, %v274
        %v2230 = vperm.slane %v1836, %v2080
        %v2231 = vsel %vm2082, %v2230, %v2229
        %v2232 = vperm.slane %v1837, %v274
        %v2233 = vperm.slane %v1838, %v2080
        %v2234 = vsel %vm2082, %v2233, %v2232
        %v2235 = vsel %vm2129, %v2192, %v2189
        %v2236 = vsel %vm2131, %v2195, %v2235
        %v2237 = vsel %vm2133, %v2198, %v2236
        %v2238 = vsel %vm2135, %v2201, %v2237
        %v2239 = vsel %vm2137, %v2204, %v2238
        %v2240 = vsel %vm2139, %v2207, %v2239
        %v2241 = vsel %vm2141, %v2210, %v2240
        %v2242 = vsel %vm2129, %v2216, %v2213
        %v2243 = vsel %vm2131, %v2219, %v2242
        %v2244 = vsel %vm2133, %v2222, %v2243
        %v2245 = vsel %vm2135, %v2225, %v2244
        %v2246 = vsel %vm2137, %v2228, %v2245
        %v2247 = vsel %vm2139, %v2231, %v2246
        %v2248 = vsel %vm2141, %v2234, %v2247
        %s2251 = scalar_lea.vmem %s269, 16
        %2252 = vst.msk [vmem:[%s2251] sm:$0xff] %vm2152, %v2241
        %2253 = vst.msk [vmem:[%s2251 + $0x8] sm:$0xff] %vm2152, %v2248
        %v2286 = vperm.slane %v2015, %v274
        %v2287 = vperm.slane %v2016, %v2080
        %v2288 = vsel %vm2082, %v2287, %v2286
        %v2289 = vperm.slane %v2017, %v274
        %v2290 = vperm.slane %v2018, %v2080
        %v2291 = vsel %vm2082, %v2290, %v2289
        %v2292 = vperm.slane %v2019, %v274
        %v2293 = vperm.slane %v2020, %v2080
        %v2294 = vsel %vm2082, %v2293, %v2292
        %v2295 = vperm.slane %v2021, %v274
        %v2296 = vperm.slane %v2022, %v2080
        %v2297 = vsel %vm2082, %v2296, %v2295
        %v2298 = vperm.slane %v2023, %v274
        %v2299 = vperm.slane %v2024, %v2080
        %v2300 = vsel %vm2082, %v2299, %v2298
        %v2301 = vperm.slane %v2025, %v274
        %v2302 = vperm.slane %v2026, %v2080
        %v2303 = vsel %vm2082, %v2302, %v2301
        %v2304 = vperm.slane %v2027, %v274
        %v2305 = vperm.slane %v2028, %v2080
        %v2306 = vsel %vm2082, %v2305, %v2304
        %v2307 = vperm.slane %v2029, %v274
        %v2308 = vperm.slane %v2030, %v2080
        %v2309 = vsel %vm2082, %v2308, %v2307
        %v2310 = vperm.slane %v2031, %v274
        %v2311 = vperm.slane %v2032, %v2080
        %v2312 = vsel %vm2082, %v2311, %v2310
        %v2313 = vperm.slane %v2033, %v274
        %v2314 = vperm.slane %v2034, %v2080
        %v2315 = vsel %vm2082, %v2314, %v2313
        %v2316 = vperm.slane %v2035, %v274
        %v2317 = vperm.slane %v2036, %v2080
        %v2318 = vsel %vm2082, %v2317, %v2316
        %v2319 = vperm.slane %v2037, %v274
        %v2320 = vperm.slane %v2038, %v2080
        %v2321 = vsel %vm2082, %v2320, %v2319
        %v2322 = vperm.slane %v2039, %v274
        %v2323 = vperm.slane %v2040, %v2080
        %v2324 = vsel %vm2082, %v2323, %v2322
        %v2325 = vperm.slane %v2041, %v274
        %v2326 = vperm.slane %v2042, %v2080
        %v2327 = vsel %vm2082, %v2326, %v2325
        %v2328 = vperm.slane %v2043, %v274
        %v2329 = vperm.slane %v2044, %v2080
        %v2330 = vsel %vm2082, %v2329, %v2328
        %v2331 = vperm.slane %v2045, %v274
        %v2332 = vperm.slane %v2046, %v2080
        %v2333 = vsel %vm2082, %v2332, %v2331
        %v2334 = vsel %vm2129, %v2291, %v2288
        %v2335 = vsel %vm2131, %v2294, %v2334
        %v2336 = vsel %vm2133, %v2297, %v2335
        %v2337 = vsel %vm2135, %v2300, %v2336
        %v2338 = vsel %vm2137, %v2303, %v2337
        %v2339 = vsel %vm2139, %v2306, %v2338
        %v2340 = vsel %vm2141, %v2309, %v2339
        %v2341 = vsel %vm2129, %v2315, %v2312
        %v2342 = vsel %vm2131, %v2318, %v2341
        %v2343 = vsel %vm2133, %v2321, %v2342
        %v2344 = vsel %vm2135, %v2324, %v2343
        %v2345 = vsel %vm2137, %v2327, %v2344
        %v2346 = vsel %vm2139, %v2330, %v2345
        %v2347 = vsel %vm2141, %v2333, %v2346
        %s2350 = scalar_lea.vmem %s269, 32
        %2351 = vst.msk [vmem:[%s2350] sm:$0xff] %vm2152, %v2340
        %2352 = vst.msk [vmem:[%s2350 + $0x8] sm:$0xff] %vm2152, %v2347
        %s2353 = smul.u32 2, %s18
        %p2354 = scmp.lt.s32.totalorder %s17, 1
        %s2355 = scalar_select %p2354, %s17, 1
        %p2356 = scmp.lt.s32.totalorder %s2353, 1
        %s2357 = scalar_select %p2356, %s2353, 1
        %s2358 = smul.addr %s2355, 6
        %s2359 = sadd.s32 %s2357, %s2358
        %s2360 = smul.addr %s2359, 8
        %s2361 = scalar_lea.vmem %s2, %s2360
        // Predicated region
        $region67: #{lr_loss.7} parent=61 // pred_check
          %p2362 = pneg %p99
        $region68: #{lr_loss.7} parent=61 // pred_check_branch
          %2364 = sbr.rel (%p2362) target = $region70
        $region69: #{lr_loss.7} parent=61 // pred_region
          %s2365 = smul.u32 2, %s18
        $region70: #{lr_loss.7} parent=61 // pred_fallthru
          _
      $region62: #{lr_loss.7} parent=5 // pred_fallthru
        _
      %p2366 = scmp.le.s32.totalorder 2, %s8
      // Predicated region
      $region71: #{lr_loss.7} parent=5 // pred_check
        %p2367 = pneg %p2366
      $region72: #{lr_loss.7} parent=5 // pred_check_branch
        %2369 = sbr.rel (%p2367) target = $region74
      $region73: #{lr_loss.7} parent=5 // pred_region
        %s2370 = ssub.s32 %s8, 2
        // Predicated region
        $region75: #{lr_loss.7} parent=73 // pred_check
          %p2371 = pneg %p105
        $region76: #{lr_loss.7} parent=73 // pred_check_branch
          %2373 = sbr.rel (%p2371) target = $region78
        $region77: #{lr_loss.7} parent=73 // pred_region
          %s2374 = smul.u32 2, %s20
          %p2375 = scmp.lt.s32.totalorder %s19, 1
          %s2376 = scalar_select %p2375, %s19, 1
          %p2377 = scmp.lt.s32.totalorder %s2374, 1
          %s2378 = scalar_select %p2377, %s2374, 1
          %s2379 = smul.addr %s2376, 6
          %s2380 = sadd.s32 %s2378, %s2379
          %s2381 = smul.addr %s2380, 8
          %s2382 = scalar_lea.vmem %s2, %s2381
        $region78: #{lr_loss.7} parent=73 // pred_fallthru
          _
      $region74: #{lr_loss.7} parent=5 // pred_fallthru
        _
    $region6: #{lr_loss.7} parent=1 // loop_footer
      %s12 = sadd.s32 1, %s8
    $region7: #{lr_loss.7} parent=1 // loop_footer_branch
      %7 = sbr.rel target = $region3
    $region8: #{lr_loss.7} parent=1 // loop_exit
      _

</llo_original>
